<compile_context>
chip_gen: v6e
topology: v6e:2x2x1
jax: 0.10.0
libtpu: 0.0.40
codegen_flags: <defaults>
</compile_context>

<pallas_src>
import math

import jax
import jax.numpy as jnp
from jax import lax
from jax.experimental import pallas as pl
from jax.experimental.pallas import tpu as pltpu

# ---- small "bert-base"-style config (synthetic, scaled down) ----
VOCAB_SIZE = 100
MAX_POS = 16
TYPE_VOCAB = 2
HIDDEN = 32
NUM_HEADS = 4
HEAD_DIM = HIDDEN // NUM_HEADS
NUM_LAYERS = 2
INTERMEDIATE = 64
N_CLASSES = 3
N_CLASSES_PAD = 128      # lane-dense classifier output; real logits are [..., :N_CLASSES]
OUT_SUBLANES = 8         # sublane-dense output tile; real logits row is [:, 0, :]
LN_EPS = 1e-12           # BERT LayerNorm eps
ATT_SCALE = 1.0 / math.sqrt(HEAD_DIM)


# ---------------- in-kernel helpers ----------------

def _layernorm(h, g, b):
    mu = jnp.mean(h, axis=-1, keepdims=True)
    xc = h - mu
    var = jnp.mean(xc * xc, axis=-1, keepdims=True)
    return xc * lax.rsqrt(var + LN_EPS) * g + b


def _gelu_tanh(y):
    # TODO(synk): HF 'bert-base-uncased' uses the exact erf-GELU; tanh approximation here.
    c = 0.7978845608028654  # sqrt(2/pi)
    return 0.5 * y * (1.0 + jnp.tanh(c * (y + 0.044715 * y * y * y)))


# ---------------- the fused, layer-streaming Pallas kernel ----------------

def _bert_kernel(
    x_emb_ref,                       # (1, S, H) f32   word+pos+type embedding sum (batch b)
    mask_ref,                        # (1, 1, S) f32   attention mask (1 keep / 0 pad)
    emb_ln_g_ref, emb_ln_b_ref,      # (1, H)    f32
    wq_ref, wk_ref, wv_ref,          # (1, H, H) bf16  (out_features, in_features)
    bq_ref, bk_ref, bv_ref,          # (1, H, 1) f32
    wo_ref, bo_ref,                  # (1, H, H) bf16 (in,out), (1, 1, H) f32
    ln1_g_ref, ln1_b_ref,            # (1, 1, H) f32
    w1_ref, b1_ref,                  # (1, H, I) bf16, (1, 1, I) f32
    w2_ref, b2_ref,                  # (1, I, H) bf16, (1, 1, H) f32
    ln2_g_ref, ln2_b_ref,            # (1, 1, H) f32
    wp_ref, bp_ref,                  # (H, H) bf16, (1, H) f32            pooler
    wc_ref, bc_ref,                  # (H, NC_PAD) bf16, (1, NC_PAD) f32  classifier
    logits_ref,                      # out: (1, 8, NC_PAD) f32
    x_scratch,                       # VMEM (S, H) f32 resident activation
):
    """grid = (batch, layer): batch is 'parallel' (one sequence per step), layer is
    'arbitrary' (per-layer weights streamed HBM->VMEM while the activation stays
    resident in the VMEM scratch)."""
    _, S, H = x_emb_ref.shape
    nH, d = NUM_HEADS, HEAD_DIM
    bf16 = jnp.bfloat16
    layer = pl.program_id(1)

    # ---- first layer step: embedding LayerNorm into the resident activation ----
    @pl.when(layer == 0)
    def _():
        # (embedding dropout p=0.1 is identity in eval mode)
        x_scratch[...] = _layernorm(x_emb_ref[0], emb_ln_g_ref[...], emb_ln_b_ref[...])

    x = x_scratch[...]                                     # (S, H) f32
    add_mask = (1.0 - mask_ref[0]) * -10000.0              # (1, S): 0 keep / -1e4 pad

    # ---- QKV, feature-major (q^T = Wq @ x^T): head split becomes a free reshape ----
    xT_bf = x.T.astype(bf16)                               # (H, S)
    qT = jnp.dot(wq_ref[0], xT_bf, preferred_element_type=jnp.float32) + bq_ref[0]
    kT = jnp.dot(wk_ref[0], xT_bf, preferred_element_type=jnp.float32) + bk_ref[0]
    vT = jnp.dot(wv_ref[0], xT_bf, preferred_element_type=jnp.float32) + bv_ref[0]
    qh = qT.reshape(nH, d, S)                              # sublane-dim split (no lane relayout)
    kh = kT.reshape(nH, d, S)
    vh = vT.reshape(nH, d, S)

    # ---- batched multi-head attention: two einsums, no per-head loop / lane concat ----
    q_sd = jnp.transpose(qh, (0, 2, 1)).astype(bf16)       # (nH, S, d)  minor-dim transpose
    v_sd = jnp.transpose(vh, (0, 2, 1)).astype(bf16)       # (nH, S, d)
    s = jnp.einsum("hqd,hdk->hqk", q_sd, kh.astype(bf16),
                   preferred_element_type=jnp.float32)     # (nH, S, S)
    s = s * ATT_SCALE + add_mask[None, :, :]
    s = s - jnp.max(s, axis=-1, keepdims=True)
    p = jnp.exp(s)
    p = p / jnp.sum(p, axis=-1, keepdims=True)             # exact softmax
    # (attention-prob dropout p=0.1 is identity in eval mode)
    ctx = jnp.einsum("hqk,hkd->hqd", p.astype(bf16), v_sd,
                     preferred_element_type=jnp.float32)   # (nH, S, d)
    ctx_tok = jnp.transpose(ctx, (0, 2, 1)).reshape(H, S).T    # (S, H) token-major
    # TODO(synk): for long sequences, switch to flash-style K-tiled online softmax.

    # ---- attention output projection + residual LayerNorm ----
    attn = jnp.dot(ctx_tok.astype(bf16), wo_ref[0],
                   preferred_element_type=jnp.float32) + bo_ref[0]
    x = _layernorm(attn + x, ln1_g_ref[0], ln1_b_ref[0])

    # ---- GELU FFN + residual LayerNorm ----
    hmid = _gelu_tanh(jnp.dot(x.astype(bf16), w1_ref[0],
                              preferred_element_type=jnp.float32) + b1_ref[0])
    ffn = jnp.dot(hmid.astype(bf16), w2_ref[0],
                  preferred_element_type=jnp.float32) + b2_ref[0]
    x = _layernorm(ffn + x, ln2_g_ref[0], ln2_b_ref[0])
    x_scratch[...] = x

    # ---- last layer step: pooler (tanh on [CLS]) + classifier ----
    @pl.when(layer == pl.num_programs(1) - 1)
    def _():
        cls = x[0:1, :]                                    # (1, H) [CLS] token
        pooled = jnp.tanh(jnp.dot(cls.astype(bf16), wp_ref[...],
                                  preferred_element_type=jnp.float32) + bp_ref[...])
        # TODO(synk): nn.Dropout(0.3) is identity in eval mode; training dropout omitted.
        logits = jnp.dot(pooled.astype(bf16), wc_ref[...],
                         preferred_element_type=jnp.float32) + bc_ref[...]   # (1, NC_PAD)
        logits_ref[0] = jnp.broadcast_to(logits, (OUT_SUBLANES, N_CLASSES_PAD))


# ---------------- BlockSpec helpers ----------------

def _const_spec(shape):
    zeros = (0,) * len(shape)
    return pl.BlockSpec(shape, lambda b, l: zeros)


def _layer_spec(shape):
    ztail = (0,) * (len(shape) - 1)
    return pl.BlockSpec(shape, lambda b, l: (l,) + ztail)


def _batch_spec(shape):
    ztail = (0,) * (len(shape) - 1)
    return pl.BlockSpec(shape, lambda b, l: (b,) + ztail)


# ---------------- parameters (deterministic synthetic init, stacked per layer) ----------------

def init_params(key):
    ks = jax.random.split(key, 11)
    (k_word, k_pos, k_type, k_q, k_k, k_v, k_o, k_1, k_2, k_p, k_c) = ks
    bf16 = jnp.bfloat16

    def dense(k, shape):
        return jax.random.normal(k, shape, jnp.float32) * 0.02

    wc = jnp.pad(dense(k_c, (HIDDEN, N_CLASSES)),
                 ((0, 0), (0, N_CLASSES_PAD - N_CLASSES)))
    return {
        "word_emb": dense(k_word, (VOCAB_SIZE, HIDDEN)),
        "pos_emb": dense(k_pos, (MAX_POS, HIDDEN)),
        "type_emb": dense(k_type, (TYPE_VOCAB, HIDDEN)),
        "emb_ln_g": jnp.ones((1, HIDDEN), jnp.float32),
        "emb_ln_b": jnp.zeros((1, HIDDEN), jnp.float32),
        # per-layer weights stacked on a leading NUM_LAYERS axis and streamed by the
        # layer grid axis; matmul weights in bf16 (MXU-native), biases / LN in f32.
        # Q/K/V weights are in PyTorch (out_features, in_features) orientation.
        "wq": dense(k_q, (NUM_LAYERS, HIDDEN, HIDDEN)).astype(bf16),
        "wk": dense(k_k, (NUM_LAYERS, HIDDEN, HIDDEN)).astype(bf16),
        "wv": dense(k_v, (NUM_LAYERS, HIDDEN, HIDDEN)).astype(bf16),
        "bq": jnp.zeros((NUM_LAYERS, HIDDEN, 1), jnp.float32),
        "bk": jnp.zeros((NUM_LAYERS, HIDDEN, 1), jnp.float32),
        "bv": jnp.zeros((NUM_LAYERS, HIDDEN, 1), jnp.float32),
        "wo": dense(k_o, (NUM_LAYERS, HIDDEN, HIDDEN)).astype(bf16),
        "bo": jnp.zeros((NUM_LAYERS, 1, HIDDEN), jnp.float32),
        "ln1_g": jnp.ones((NUM_LAYERS, 1, HIDDEN), jnp.float32),
        "ln1_b": jnp.zeros((NUM_LAYERS, 1, HIDDEN), jnp.float32),
        "w1": dense(k_1, (NUM_LAYERS, HIDDEN, INTERMEDIATE)).astype(bf16),
        "b1": jnp.zeros((NUM_LAYERS, 1, INTERMEDIATE), jnp.float32),
        "w2": dense(k_2, (NUM_LAYERS, INTERMEDIATE, HIDDEN)).astype(bf16),
        "b2": jnp.zeros((NUM_LAYERS, 1, HIDDEN), jnp.float32),
        "ln2_g": jnp.ones((NUM_LAYERS, 1, HIDDEN), jnp.float32),
        "ln2_b": jnp.zeros((NUM_LAYERS, 1, HIDDEN), jnp.float32),
        "wp": dense(k_p, (HIDDEN, HIDDEN)).astype(bf16),
        "bp": jnp.zeros((1, HIDDEN), jnp.float32),
        "wc": wc.astype(bf16),                   # lane-padded to 128 output features
        "bc": jnp.zeros((1, N_CLASSES_PAD), jnp.float32),
    }


# ---------------- forward (embedding gathers in XLA glue, everything else fused) ----------------

def bert_classifier_forward(params, input_ids, attention_mask, token_type_ids):
    B, S = input_ids.shape
    H, I = HIDDEN, INTERMEDIATE

    # Embedding table gathers stay in XLA glue; their sum feeds the fused kernel.
    x_emb = (params["word_emb"][input_ids]
             + params["pos_emb"][jnp.arange(S)][None, :, :]
             + params["type_emb"][token_type_ids]).astype(jnp.float32)      # (B, S, H)
    mask = attention_mask.astype(jnp.float32).reshape(B, 1, S)

    in_specs = [
        _batch_spec((1, S, H)),                                   # x_emb
        _batch_spec((1, 1, S)),                                   # mask
        _const_spec((1, H)), _const_spec((1, H)),                 # emb LN
        _layer_spec((1, H, H)), _layer_spec((1, H, H)), _layer_spec((1, H, H)),   # wq wk wv
        _layer_spec((1, H, 1)), _layer_spec((1, H, 1)), _layer_spec((1, H, 1)),   # bq bk bv
        _layer_spec((1, H, H)), _layer_spec((1, 1, H)),           # wo bo
        _layer_spec((1, 1, H)), _layer_spec((1, 1, H)),           # ln1
        _layer_spec((1, H, I)), _layer_spec((1, 1, I)),           # w1 b1
        _layer_spec((1, I, H)), _layer_spec((1, 1, H)),           # w2 b2
        _layer_spec((1, 1, H)), _layer_spec((1, 1, H)),           # ln2
        _const_spec((H, H)), _const_spec((1, H)),                 # pooler
        _const_spec((H, N_CLASSES_PAD)), _const_spec((1, N_CLASSES_PAD)),  # classifier
    ]
    out_specs = _batch_spec((1, OUT_SUBLANES, N_CLASSES_PAD))

    logits_pad = pl.pallas_call(
        _bert_kernel,
        out_shape=jax.ShapeDtypeStruct((B, OUT_SUBLANES, N_CLASSES_PAD), jnp.float32),
        grid_spec=pltpu.PrefetchScalarGridSpec(
            num_scalar_prefetch=0,
            grid=(B, NUM_LAYERS),                 # batch (parallel) x layer (arbitrary)
            in_specs=in_specs,
            out_specs=out_specs,
            scratch_shapes=[pltpu.VMEM((S, H), jnp.float32)],     # resident activation
        ),
        compiler_params=pltpu.CompilerParams(
            dimension_semantics=("parallel", "arbitrary"),
            vmem_limit_bytes=32 * 1024 * 1024,
        ),
        # NOTE: at these toy shapes the kernel is launch-overhead-bound (B*S=16 rows);
        # fill the MXU M dimension by batching more sequences per call at real sizes.
    )(x_emb, mask,
      params["emb_ln_g"], params["emb_ln_b"],
      params["wq"], params["wk"], params["wv"],
      params["bq"], params["bk"], params["bv"],
      params["wo"], params["bo"], params["ln1_g"], params["ln1_b"],
      params["w1"], params["b1"], params["w2"], params["b2"],
      params["ln2_g"], params["ln2_b"],
      params["wp"], params["bp"], params["wc"], params["bc"])

    # kernel emits a sublane/lane-dense (B, 8, 128) tile; slice the 3 real logits once.
    return logits_pad[:, 0, :N_CLASSES]


if __name__ == "__main__":
    key = jax.random.PRNGKey(0)
    pkey, ikey = jax.random.split(key)
    params = init_params(pkey)

    B, S = 2, 8
    input_ids = jax.random.randint(ikey, (B, S), 0, VOCAB_SIZE, dtype=jnp.int32)
    attention_mask = jnp.array([[1] * S,
                                [1] * (S - 2) + [0, 0]], dtype=jnp.int32)
    token_type_ids = jnp.concatenate(
        [jnp.zeros((B, S // 2), jnp.int32), jnp.ones((B, S // 2), jnp.int32)], axis=1)

    fwd = jax.jit(bert_classifier_forward)
    logits = fwd(params, input_ids, attention_mask, token_type_ids)
    jax.block_until_ready(logits)
    assert logits.shape == (B, N_CLASSES) and logits.dtype == jnp.float32
    print("KERNEL_OK")
</pallas_src>

<mosaic_0001>
module attributes {stable_mosaic.version = 11 : i64} {
  func.func @_bert_kernel(%arg0: i32, %arg1: i32, %arg2: memref<1x8x32xf32, #tpu.memory_space<vmem>>, %arg3: memref<1x1x8xf32, #tpu.memory_space<vmem>>, %arg4: memref<1x32xf32, #tpu.memory_space<vmem>>, %arg5: memref<1x32xf32, #tpu.memory_space<vmem>>, %arg6: memref<1x32x32xbf16, #tpu.memory_space<vmem>>, %arg7: memref<1x32x32xbf16, #tpu.memory_space<vmem>>, %arg8: memref<1x32x32xbf16, #tpu.memory_space<vmem>>, %arg9: memref<1x32x1xf32, #tpu.memory_space<vmem>>, %arg10: memref<1x32x1xf32, #tpu.memory_space<vmem>>, %arg11: memref<1x32x1xf32, #tpu.memory_space<vmem>>, %arg12: memref<1x32x32xbf16, #tpu.memory_space<vmem>>, %arg13: memref<1x1x32xf32, #tpu.memory_space<vmem>>, %arg14: memref<1x1x32xf32, #tpu.memory_space<vmem>>, %arg15: memref<1x1x32xf32, #tpu.memory_space<vmem>>, %arg16: memref<1x32x64xbf16, #tpu.memory_space<vmem>>, %arg17: memref<1x1x64xf32, #tpu.memory_space<vmem>>, %arg18: memref<1x64x32xbf16, #tpu.memory_space<vmem>>, %arg19: memref<1x1x32xf32, #tpu.memory_space<vmem>>, %arg20: memref<1x1x32xf32, #tpu.memory_space<vmem>>, %arg21: memref<1x1x32xf32, #tpu.memory_space<vmem>>, %arg22: memref<32x32xbf16, #tpu.memory_space<vmem>>, %arg23: memref<1x32xf32, #tpu.memory_space<vmem>>, %arg24: memref<32x128xbf16, #tpu.memory_space<vmem>>, %arg25: memref<1x128xf32, #tpu.memory_space<vmem>>, %arg26: memref<1x8x128xf32, #tpu.memory_space<vmem>>, %arg27: memref<8x32xf32, #tpu.memory_space<vmem>>) attributes {dimension_semantics = [#tpu.dimension_semantics<parallel>, #tpu.dimension_semantics<arbitrary>], iteration_bounds = array<i64: 2, 2>, scalar_prefetch = 0 : i64, scratch_operands = 1 : i64, tpu.core_type = #tpu.core_type<tc>, window_params = [{transform_indices = @transform_0, window_bounds = array<i64: 1, 8, 32>}, {transform_indices = @transform_1, window_bounds = array<i64: 1, 1, 8>}, {pipeline_mode = #tpu.pipeline_mode<synchronous>, transform_indices = @transform_2, window_bounds = array<i64: 1, 32>}, {pipeline_mode = #tpu.pipeline_mode<synchronous>, transform_indices = @transform_3, window_bounds = array<i64: 1, 32>}, {transform_indices = @transform_4, window_bounds = array<i64: 1, 32, 32>}, {transform_indices = @transform_5, window_bounds = array<i64: 1, 32, 32>}, {transform_indices = @transform_6, window_bounds = array<i64: 1, 32, 32>}, {transform_indices = @transform_7, window_bounds = array<i64: 1, 32, 1>}, {transform_indices = @transform_8, window_bounds = array<i64: 1, 32, 1>}, {transform_indices = @transform_9, window_bounds = array<i64: 1, 32, 1>}, {transform_indices = @transform_10, window_bounds = array<i64: 1, 32, 32>}, {transform_indices = @transform_11, window_bounds = array<i64: 1, 1, 32>}, {transform_indices = @transform_12, window_bounds = array<i64: 1, 1, 32>}, {transform_indices = @transform_13, window_bounds = array<i64: 1, 1, 32>}, {transform_indices = @transform_14, window_bounds = array<i64: 1, 32, 64>}, {transform_indices = @transform_15, window_bounds = array<i64: 1, 1, 64>}, {transform_indices = @transform_16, window_bounds = array<i64: 1, 64, 32>}, {transform_indices = @transform_17, window_bounds = array<i64: 1, 1, 32>}, {transform_indices = @transform_18, window_bounds = array<i64: 1, 1, 32>}, {transform_indices = @transform_19, window_bounds = array<i64: 1, 1, 32>}, {pipeline_mode = #tpu.pipeline_mode<synchronous>, transform_indices = @transform_20, window_bounds = array<i64: 32, 32>}, {pipeline_mode = #tpu.pipeline_mode<synchronous>, transform_indices = @transform_21, window_bounds = array<i64: 1, 32>}, {pipeline_mode = #tpu.pipeline_mode<synchronous>, transform_indices = @transform_22, window_bounds = array<i64: 32, 128>}, {pipeline_mode = #tpu.pipeline_mode<synchronous>, transform_indices = @transform_23, window_bounds = array<i64: 1, 128>}, {transform_indices = @transform_24, window_bounds = array<i64: 1, 8, 128>}]} {
    %c0_i32 = arith.constant 0 : i32
    %0 = arith.cmpi eq, %arg1, %c0_i32 : i32
    %1 = arith.extui %0 : i1 to i32
    %c0_i32_0 = arith.constant 0 : i32
    %2 = arith.cmpi ne, %1, %c0_i32_0 : i32
    scf.if %2 {
      %c0_82 = arith.constant 0 : index
      %c0_83 = arith.constant 0 : index
      %c0_84 = arith.constant 0 : index
      %152 = vector.load %arg2[%c0_82, %c0_83, %c0_84] : memref<1x8x32xf32, #tpu.memory_space<vmem>>, vector<1x8x32xf32>
      %153 = vector.shape_cast %152 : vector<1x8x32xf32> to vector<8x32xf32>
      %c0_85 = arith.constant 0 : index
      %c0_86 = arith.constant 0 : index
      %154 = vector.load %arg4[%c0_85, %c0_86] : memref<1x32xf32, #tpu.memory_space<vmem>>, vector<1x32xf32>
      %c0_87 = arith.constant 0 : index
      %c0_88 = arith.constant 0 : index
      %155 = vector.load %arg5[%c0_87, %c0_88] : memref<1x32xf32, #tpu.memory_space<vmem>>, vector<1x32xf32>
      %cst_89 = arith.constant dense<0.000000e+00> : vector<8xf32>
      %156 = vector.multi_reduction <add>, %153, %cst_89 [1] : vector<8x32xf32> to vector<8xf32>
      %157 = vector.shape_cast %156 : vector<8xf32> to vector<8x1xf32>
      %cst_90 = arith.constant 3.200000e+01 : f32
      %158 = vector.broadcast %cst_90 : f32 to vector<8x1xf32>
      %159 = arith.divf %157, %158 : vector<8x1xf32>
      %160 = vector.broadcast %159 : vector<8x1xf32> to vector<8x32xf32>
      %161 = arith.subf %153, %160 : vector<8x32xf32>
      %162 = arith.mulf %161, %161 : vector<8x32xf32>
      %cst_91 = arith.constant dense<0.000000e+00> : vector<8xf32>
      %163 = vector.multi_reduction <add>, %162, %cst_91 [1] : vector<8x32xf32> to vector<8xf32>
      %164 = vector.shape_cast %163 : vector<8xf32> to vector<8x1xf32>
      %cst_92 = arith.constant 3.200000e+01 : f32
      %165 = vector.broadcast %cst_92 : f32 to vector<8x1xf32>
      %166 = arith.divf %164, %165 : vector<8x1xf32>
      %cst_93 = arith.constant 9.99999996E-13 : f32
      %167 = vector.broadcast %cst_93 : f32 to vector<8x1xf32>
      %168 = arith.addf %166, %167 : vector<8x1xf32>
      %169 = math.rsqrt %168 : vector<8x1xf32>
      %170 = vector.broadcast %169 : vector<8x1xf32> to vector<8x32xf32>
      %171 = arith.mulf %161, %170 : vector<8x32xf32>
      %172 = vector.broadcast %154 : vector<1x32xf32> to vector<8x32xf32>
      %173 = arith.mulf %171, %172 : vector<8x32xf32>
      %174 = vector.broadcast %155 : vector<1x32xf32> to vector<8x32xf32>
      %175 = arith.addf %173, %174 : vector<8x32xf32>
      %c0_94 = arith.constant 0 : index
      %c0_95 = arith.constant 0 : index
      %176 = vector.load %arg27[%c0_94, %c0_95] : memref<8x32xf32, #tpu.memory_space<vmem>>, vector<8x32xf32>
      tpu.vector_store %arg27[%c0_94, %c0_95], %175 {strides = array<i32>} : memref<8x32xf32, #tpu.memory_space<vmem>>, vector<8x32xf32>,
    } else {
    }
    %c0 = arith.constant 0 : index
    %c0_1 = arith.constant 0 : index
    %3 = vector.load %arg27[%c0, %c0_1] : memref<8x32xf32, #tpu.memory_space<vmem>>, vector<8x32xf32>
    %c0_2 = arith.constant 0 : index
    %c0_3 = arith.constant 0 : index
    %c0_4 = arith.constant 0 : index
    %4 = vector.load %arg3[%c0_2, %c0_3, %c0_4] : memref<1x1x8xf32, #tpu.memory_space<vmem>>, vector<1x1x8xf32>
    %5 = vector.shape_cast %4 : vector<1x1x8xf32> to vector<1x8xf32>
    %cst = arith.constant 1.000000e+00 : f32
    %6 = vector.broadcast %cst : f32 to vector<1x8xf32>
    %7 = arith.subf %6, %5 : vector<1x8xf32>
    %cst_5 = arith.constant -1.000000e+04 : f32
    %8 = vector.broadcast %cst_5 : f32 to vector<1x8xf32>
    %9 = arith.mulf %7, %8 : vector<1x8xf32>
    %10 = tpu.transpose %3, [1, 0] : vector<8x32xf32> -> vector<32x8xf32>
    %11 = arith.truncf %10 : vector<32x8xf32> to vector<32x8xbf16>
    %c0_6 = arith.constant 0 : index
    %c0_7 = arith.constant 0 : index
    %c0_8 = arith.constant 0 : index
    %12 = vector.load %arg6[%c0_6, %c0_7, %c0_8] : memref<1x32x32xbf16, #tpu.memory_space<vmem>>, vector<1x32x32xbf16>
    %13 = vector.shape_cast %12 : vector<1x32x32xbf16> to vector<32x32xbf16>
    %cst_9 = arith.constant dense<0.000000e+00> : vector<32x8xf32>
    %14 = tpu.matmul %13, %11, %cst_9 {dimension_numbers = #tpu.dot_dimension_numbers<[1], [0], [0], [1], [0, 0, 1, 1], [], []>} : vector<32x32xbf16>, vector<32x8xbf16>, vector<32x8xf32> -> vector<32x8xf32>
    %c0_10 = arith.constant 0 : index
    %c0_11 = arith.constant 0 : index
    %c0_12 = arith.constant 0 : index
    %15 = vector.load %arg9[%c0_10, %c0_11, %c0_12] : memref<1x32x1xf32, #tpu.memory_space<vmem>>, vector<1x32x1xf32>
    %16 = vector.shape_cast %15 : vector<1x32x1xf32> to vector<32x1xf32>
    %17 = vector.broadcast %16 : vector<32x1xf32> to vector<32x8xf32>
    %18 = arith.addf %14, %17 : vector<32x8xf32>
    %c0_13 = arith.constant 0 : index
    %c0_14 = arith.constant 0 : index
    %c0_15 = arith.constant 0 : index
    %19 = vector.load %arg7[%c0_13, %c0_14, %c0_15] : memref<1x32x32xbf16, #tpu.memory_space<vmem>>, vector<1x32x32xbf16>
    %20 = vector.shape_cast %19 : vector<1x32x32xbf16> to vector<32x32xbf16>
    %cst_16 = arith.constant dense<0.000000e+00> : vector<32x8xf32>
    %21 = tpu.matmul %20, %11, %cst_16 {dimension_numbers = #tpu.dot_dimension_numbers<[1], [0], [0], [1], [0, 0, 1, 1], [], []>} : vector<32x32xbf16>, vector<32x8xbf16>, vector<32x8xf32> -> vector<32x8xf32>
    %c0_17 = arith.constant 0 : index
    %c0_18 = arith.constant 0 : index
    %c0_19 = arith.constant 0 : index
    %22 = vector.load %arg10[%c0_17, %c0_18, %c0_19] : memref<1x32x1xf32, #tpu.memory_space<vmem>>, vector<1x32x1xf32>
    %23 = vector.shape_cast %22 : vector<1x32x1xf32> to vector<32x1xf32>
    %24 = vector.broadcast %23 : vector<32x1xf32> to vector<32x8xf32>
    %25 = arith.addf %21, %24 : vector<32x8xf32>
    %c0_20 = arith.constant 0 : index
    %c0_21 = arith.constant 0 : index
    %c0_22 = arith.constant 0 : index
    %26 = vector.load %arg8[%c0_20, %c0_21, %c0_22] : memref<1x32x32xbf16, #tpu.memory_space<vmem>>, vector<1x32x32xbf16>
    %27 = vector.shape_cast %26 : vector<1x32x32xbf16> to vector<32x32xbf16>
    %cst_23 = arith.constant dense<0.000000e+00> : vector<32x8xf32>
    %28 = tpu.matmul %27, %11, %cst_23 {dimension_numbers = #tpu.dot_dimension_numbers<[1], [0], [0], [1], [0, 0, 1, 1], [], []>} : vector<32x32xbf16>, vector<32x8xbf16>, vector<32x8xf32> -> vector<32x8xf32>
    %c0_24 = arith.constant 0 : index
    %c0_25 = arith.constant 0 : index
    %c0_26 = arith.constant 0 : index
    %29 = vector.load %arg11[%c0_24, %c0_25, %c0_26] : memref<1x32x1xf32, #tpu.memory_space<vmem>>, vector<1x32x1xf32>
    %30 = vector.shape_cast %29 : vector<1x32x1xf32> to vector<32x1xf32>
    %31 = vector.broadcast %30 : vector<32x1xf32> to vector<32x8xf32>
    %32 = arith.addf %28, %31 : vector<32x8xf32>
    %33 = vector.shape_cast %18 : vector<32x8xf32> to vector<4x8x8xf32>
    %34 = vector.shape_cast %25 : vector<32x8xf32> to vector<4x8x8xf32>
    %35 = vector.shape_cast %32 : vector<32x8xf32> to vector<4x8x8xf32>
    %36 = tpu.transpose %33, [0, 2, 1] : vector<4x8x8xf32> -> vector<4x8x8xf32>
    %37 = arith.truncf %36 : vector<4x8x8xf32> to vector<4x8x8xbf16>
    %38 = tpu.transpose %35, [0, 2, 1] : vector<4x8x8xf32> -> vector<4x8x8xf32>
    %39 = arith.truncf %38 : vector<4x8x8xf32> to vector<4x8x8xbf16>
    %40 = arith.truncf %34 : vector<4x8x8xf32> to vector<4x8x8xbf16>
    "tpu.trace_start"() <{level = 10 : i32, message = "hqd,hdk->hqk"}> : () -> ()
    %cst_27 = arith.constant dense<0.000000e+00> : vector<4x8x8xf32>
    %41 = tpu.matmul %37, %40, %cst_27 {dimension_numbers = #tpu.dot_dimension_numbers<[2], [1], [1], [2], [0, 0, 0, 1, 1, 2], [0], [0]>} : vector<4x8x8xbf16>, vector<4x8x8xbf16>, vector<4x8x8xf32> -> vector<4x8x8xf32>
    "tpu.trace_stop"() : () -> ()
    %cst_28 = arith.constant 0.353553385 : f32
    %42 = vector.broadcast %cst_28 : f32 to vector<4x8x8xf32>
    %43 = arith.mulf %41, %42 : vector<4x8x8xf32>
    %44 = vector.shape_cast %9 : vector<1x8xf32> to vector<1x1x8xf32>
    %45 = vector.broadcast %44 : vector<1x1x8xf32> to vector<4x8x8xf32>
    %46 = arith.addf %43, %45 : vector<4x8x8xf32>
    %cst_29 = arith.constant dense<0xFF800000> : vector<4x8xf32>
    %47 = vector.multi_reduction <maximumf>, %46, %cst_29 [2] : vector<4x8x8xf32> to vector<4x8xf32>
    %48 = vector.shape_cast %47 : vector<4x8xf32> to vector<4x8x1xf32>
    %49 = vector.broadcast %48 : vector<4x8x1xf32> to vector<4x8x8xf32>
    %50 = arith.subf %46, %49 : vector<4x8x8xf32>
    %51 = math.exp %50 : vector<4x8x8xf32>
    %cst_30 = arith.constant dense<0.000000e+00> : vector<4x8xf32>
    %52 = vector.multi_reduction <add>, %51, %cst_30 [2] : vector<4x8x8xf32> to vector<4x8xf32>
    %53 = vector.shape_cast %52 : vector<4x8xf32> to vector<4x8x1xf32>
    %54 = vector.broadcast %53 : vector<4x8x1xf32> to vector<4x8x8xf32>
    %55 = arith.divf %51, %54 : vector<4x8x8xf32>
    %56 = arith.truncf %55 : vector<4x8x8xf32> to vector<4x8x8xbf16>
    "tpu.trace_start"() <{level = 10 : i32, message = "hqk,hkd->hqd"}> : () -> ()
    %cst_31 = arith.constant dense<0.000000e+00> : vector<4x8x8xf32>
    %57 = tpu.matmul %56, %39, %cst_31 {dimension_numbers = #tpu.dot_dimension_numbers<[2], [1], [1], [2], [0, 0, 0, 1, 1, 2], [0], [0]>} : vector<4x8x8xbf16>, vector<4x8x8xbf16>, vector<4x8x8xf32> -> vector<4x8x8xf32>
    "tpu.trace_stop"() : () -> ()
    %58 = tpu.transpose %57, [0, 2, 1] : vector<4x8x8xf32> -> vector<4x8x8xf32>
    %59 = vector.shape_cast %58 : vector<4x8x8xf32> to vector<32x8xf32>
    %60 = tpu.transpose %59, [1, 0] : vector<32x8xf32> -> vector<8x32xf32>
    %61 = arith.truncf %60 : vector<8x32xf32> to vector<8x32xbf16>
    %c0_32 = arith.constant 0 : index
    %c0_33 = arith.constant 0 : index
    %c0_34 = arith.constant 0 : index
    %62 = vector.load %arg12[%c0_32, %c0_33, %c0_34] : memref<1x32x32xbf16, #tpu.memory_space<vmem>>, vector<1x32x32xbf16>
    %63 = vector.shape_cast %62 : vector<1x32x32xbf16> to vector<32x32xbf16>
    %cst_35 = arith.constant dense<0.000000e+00> : vector<8x32xf32>
    %64 = tpu.matmul %61, %63, %cst_35 {dimension_numbers = #tpu.dot_dimension_numbers<[1], [0], [0], [1], [0, 0, 1, 1], [], []>} : vector<8x32xbf16>, vector<32x32xbf16>, vector<8x32xf32> -> vector<8x32xf32>
    %c0_36 = arith.constant 0 : index
    %c0_37 = arith.constant 0 : index
    %c0_38 = arith.constant 0 : index
    %65 = vector.load %arg13[%c0_36, %c0_37, %c0_38] : memref<1x1x32xf32, #tpu.memory_space<vmem>>, vector<1x1x32xf32>
    %66 = vector.shape_cast %65 : vector<1x1x32xf32> to vector<1x32xf32>
    %67 = vector.broadcast %66 : vector<1x32xf32> to vector<8x32xf32>
    %68 = arith.addf %64, %67 : vector<8x32xf32>
    %69 = arith.addf %68, %3 : vector<8x32xf32>
    %c0_39 = arith.constant 0 : index
    %c0_40 = arith.constant 0 : index
    %c0_41 = arith.constant 0 : index
    %70 = vector.load %arg14[%c0_39, %c0_40, %c0_41] : memref<1x1x32xf32, #tpu.memory_space<vmem>>, vector<1x1x32xf32>
    %71 = vector.shape_cast %70 : vector<1x1x32xf32> to vector<1x32xf32>
    %c0_42 = arith.constant 0 : index
    %c0_43 = arith.constant 0 : index
    %c0_44 = arith.constant 0 : index
    %72 = vector.load %arg15[%c0_42, %c0_43, %c0_44] : memref<1x1x32xf32, #tpu.memory_space<vmem>>, vector<1x1x32xf32>
    %73 = vector.shape_cast %72 : vector<1x1x32xf32> to vector<1x32xf32>
    %cst_45 = arith.constant dense<0.000000e+00> : vector<8xf32>
    %74 = vector.multi_reduction <add>, %69, %cst_45 [1] : vector<8x32xf32> to vector<8xf32>
    %75 = vector.shape_cast %74 : vector<8xf32> to vector<8x1xf32>
    %cst_46 = arith.constant 3.200000e+01 : f32
    %76 = vector.broadcast %cst_46 : f32 to vector<8x1xf32>
    %77 = arith.divf %75, %76 : vector<8x1xf32>
    %78 = vector.broadcast %77 : vector<8x1xf32> to vector<8x32xf32>
    %79 = arith.subf %69, %78 : vector<8x32xf32>
    %80 = arith.mulf %79, %79 : vector<8x32xf32>
    %cst_47 = arith.constant dense<0.000000e+00> : vector<8xf32>
    %81 = vector.multi_reduction <add>, %80, %cst_47 [1] : vector<8x32xf32> to vector<8xf32>
    %82 = vector.shape_cast %81 : vector<8xf32> to vector<8x1xf32>
    %cst_48 = arith.constant 3.200000e+01 : f32
    %83 = vector.broadcast %cst_48 : f32 to vector<8x1xf32>
    %84 = arith.divf %82, %83 : vector<8x1xf32>
    %cst_49 = arith.constant 9.99999996E-13 : f32
    %85 = vector.broadcast %cst_49 : f32 to vector<8x1xf32>
    %86 = arith.addf %84, %85 : vector<8x1xf32>
    %87 = math.rsqrt %86 : vector<8x1xf32>
    %88 = vector.broadcast %87 : vector<8x1xf32> to vector<8x32xf32>
    %89 = arith.mulf %79, %88 : vector<8x32xf32>
    %90 = vector.broadcast %71 : vector<1x32xf32> to vector<8x32xf32>
    %91 = arith.mulf %89, %90 : vector<8x32xf32>
    %92 = vector.broadcast %73 : vector<1x32xf32> to vector<8x32xf32>
    %93 = arith.addf %91, %92 : vector<8x32xf32>
    %94 = arith.truncf %93 : vector<8x32xf32> to vector<8x32xbf16>
    %c0_50 = arith.constant 0 : index
    %c0_51 = arith.constant 0 : index
    %c0_52 = arith.constant 0 : index
    %95 = vector.load %arg16[%c0_50, %c0_51, %c0_52] : memref<1x32x64xbf16, #tpu.memory_space<vmem>>, vector<1x32x64xbf16>
    %96 = vector.shape_cast %95 : vector<1x32x64xbf16> to vector<32x64xbf16>
    %cst_53 = arith.constant dense<0.000000e+00> : vector<8x64xf32>
    %97 = tpu.matmul %94, %96, %cst_53 {dimension_numbers = #tpu.dot_dimension_numbers<[1], [0], [0], [1], [0, 0, 1, 1], [], []>} : vector<8x32xbf16>, vector<32x64xbf16>, vector<8x64xf32> -> vector<8x64xf32>
    %c0_54 = arith.constant 0 : index
    %c0_55 = arith.constant 0 : index
    %c0_56 = arith.constant 0 : index
    %98 = vector.load %arg17[%c0_54, %c0_55, %c0_56] : memref<1x1x64xf32, #tpu.memory_space<vmem>>, vector<1x1x64xf32>
    %99 = vector.shape_cast %98 : vector<1x1x64xf32> to vector<1x64xf32>
    %100 = vector.broadcast %99 : vector<1x64xf32> to vector<8x64xf32>
    %101 = arith.addf %97, %100 : vector<8x64xf32>
    %cst_57 = arith.constant 5.000000e-01 : f32
    %102 = vector.broadcast %cst_57 : f32 to vector<8x64xf32>
    %103 = arith.mulf %102, %101 : vector<8x64xf32>
    %cst_58 = arith.constant 4.471500e-02 : f32
    %104 = vector.broadcast %cst_58 : f32 to vector<8x64xf32>
    %105 = arith.mulf %104, %101 : vector<8x64xf32>
    %106 = arith.mulf %105, %101 : vector<8x64xf32>
    %107 = arith.mulf %106, %101 : vector<8x64xf32>
    %108 = arith.addf %101, %107 : vector<8x64xf32>
    %cst_59 = arith.constant 0.797884583 : f32
    %109 = vector.broadcast %cst_59 : f32 to vector<8x64xf32>
    %110 = arith.mulf %109, %108 : vector<8x64xf32>
    %111 = math.tanh %110 : vector<8x64xf32>
    %cst_60 = arith.constant 1.000000e+00 : f32
    %112 = vector.broadcast %cst_60 : f32 to vector<8x64xf32>
    %113 = arith.addf %112, %111 : vector<8x64xf32>
    %114 = arith.mulf %103, %113 : vector<8x64xf32>
    %115 = arith.truncf %114 : vector<8x64xf32> to vector<8x64xbf16>
    %c0_61 = arith.constant 0 : index
    %c0_62 = arith.constant 0 : index
    %c0_63 = arith.constant 0 : index
    %116 = vector.load %arg18[%c0_61, %c0_62, %c0_63] : memref<1x64x32xbf16, #tpu.memory_space<vmem>>, vector<1x64x32xbf16>
    %117 = vector.shape_cast %116 : vector<1x64x32xbf16> to vector<64x32xbf16>
    %cst_64 = arith.constant dense<0.000000e+00> : vector<8x32xf32>
    %118 = tpu.matmul %115, %117, %cst_64 {dimension_numbers = #tpu.dot_dimension_numbers<[1], [0], [0], [1], [0, 0, 1, 1], [], []>} : vector<8x64xbf16>, vector<64x32xbf16>, vector<8x32xf32> -> vector<8x32xf32>
    %c0_65 = arith.constant 0 : index
    %c0_66 = arith.constant 0 : index
    %c0_67 = arith.constant 0 : index
    %119 = vector.load %arg19[%c0_65, %c0_66, %c0_67] : memref<1x1x32xf32, #tpu.memory_space<vmem>>, vector<1x1x32xf32>
    %120 = vector.shape_cast %119 : vector<1x1x32xf32> to vector<1x32xf32>
    %121 = vector.broadcast %120 : vector<1x32xf32> to vector<8x32xf32>
    %122 = arith.addf %118, %121 : vector<8x32xf32>
    %123 = arith.addf %122, %93 : vector<8x32xf32>
    %c0_68 = arith.constant 0 : index
    %c0_69 = arith.constant 0 : index
    %c0_70 = arith.constant 0 : index
    %124 = vector.load %arg20[%c0_68, %c0_69, %c0_70] : memref<1x1x32xf32, #tpu.memory_space<vmem>>, vector<1x1x32xf32>
    %125 = vector.shape_cast %124 : vector<1x1x32xf32> to vector<1x32xf32>
    %c0_71 = arith.constant 0 : index
    %c0_72 = arith.constant 0 : index
    %c0_73 = arith.constant 0 : index
    %126 = vector.load %arg21[%c0_71, %c0_72, %c0_73] : memref<1x1x32xf32, #tpu.memory_space<vmem>>, vector<1x1x32xf32>
    %127 = vector.shape_cast %126 : vector<1x1x32xf32> to vector<1x32xf32>
    %cst_74 = arith.constant dense<0.000000e+00> : vector<8xf32>
    %128 = vector.multi_reduction <add>, %123, %cst_74 [1] : vector<8x32xf32> to vector<8xf32>
    %129 = vector.shape_cast %128 : vector<8xf32> to vector<8x1xf32>
    %cst_75 = arith.constant 3.200000e+01 : f32
    %130 = vector.broadcast %cst_75 : f32 to vector<8x1xf32>
    %131 = arith.divf %129, %130 : vector<8x1xf32>
    %132 = vector.broadcast %131 : vector<8x1xf32> to vector<8x32xf32>
    %133 = arith.subf %123, %132 : vector<8x32xf32>
    %134 = arith.mulf %133, %133 : vector<8x32xf32>
    %cst_76 = arith.constant dense<0.000000e+00> : vector<8xf32>
    %135 = vector.multi_reduction <add>, %134, %cst_76 [1] : vector<8x32xf32> to vector<8xf32>
    %136 = vector.shape_cast %135 : vector<8xf32> to vector<8x1xf32>
    %cst_77 = arith.constant 3.200000e+01 : f32
    %137 = vector.broadcast %cst_77 : f32 to vector<8x1xf32>
    %138 = arith.divf %136, %137 : vector<8x1xf32>
    %cst_78 = arith.constant 9.99999996E-13 : f32
    %139 = vector.broadcast %cst_78 : f32 to vector<8x1xf32>
    %140 = arith.addf %138, %139 : vector<8x1xf32>
    %141 = math.rsqrt %140 : vector<8x1xf32>
    %142 = vector.broadcast %141 : vector<8x1xf32> to vector<8x32xf32>
    %143 = arith.mulf %133, %142 : vector<8x32xf32>
    %144 = vector.broadcast %125 : vector<1x32xf32> to vector<8x32xf32>
    %145 = arith.mulf %143, %144 : vector<8x32xf32>
    %146 = vector.broadcast %127 : vector<1x32xf32> to vector<8x32xf32>
    %147 = arith.addf %145, %146 : vector<8x32xf32>
    %c0_79 = arith.constant 0 : index
    %c0_80 = arith.constant 0 : index
    %148 = vector.load %arg27[%c0_79, %c0_80] : memref<8x32xf32, #tpu.memory_space<vmem>>, vector<8x32xf32>
    tpu.vector_store %arg27[%c0_79, %c0_80], %147 {strides = array<i32>} : memref<8x32xf32, #tpu.memory_space<vmem>>, vector<8x32xf32>,
    %c1_i32 = arith.constant 1 : i32
    %149 = arith.cmpi eq, %arg1, %c1_i32 : i32
    %150 = arith.extui %149 : i1 to i32
    %c0_i32_81 = arith.constant 0 : i32
    %151 = arith.cmpi ne, %150, %c0_i32_81 : i32
    scf.if %151 {
      %152 = vector.extract_strided_slice %147 {offsets = [0, 0], sizes = [1, 32], strides = [1, 1]} : vector<8x32xf32> to vector<1x32xf32>
      %153 = arith.truncf %152 : vector<1x32xf32> to vector<1x32xbf16>
      %c0_82 = arith.constant 0 : index
      %c0_83 = arith.constant 0 : index
      %154 = vector.load %arg22[%c0_82, %c0_83] : memref<32x32xbf16, #tpu.memory_space<vmem>>, vector<32x32xbf16>
      %cst_84 = arith.constant dense<0.000000e+00> : vector<1x32xf32>
      %155 = tpu.matmul %153, %154, %cst_84 {dimension_numbers = #tpu.dot_dimension_numbers<[1], [0], [0], [1], [0, 0, 1, 1], [], []>} : vector<1x32xbf16>, vector<32x32xbf16>, vector<1x32xf32> -> vector<1x32xf32>
      %c0_85 = arith.constant 0 : index
      %c0_86 = arith.constant 0 : index
      %156 = vector.load %arg23[%c0_85, %c0_86] : memref<1x32xf32, #tpu.memory_space<vmem>>, vector<1x32xf32>
      %157 = arith.addf %155, %156 : vector<1x32xf32>
      %158 = math.tanh %157 : vector<1x32xf32>
      %159 = arith.truncf %158 : vector<1x32xf32> to vector<1x32xbf16>
      %c0_87 = arith.constant 0 : index
      %c0_88 = arith.constant 0 : index
      %160 = vector.load %arg24[%c0_87, %c0_88] : memref<32x128xbf16, #tpu.memory_space<vmem>>, vector<32x128xbf16>
      %cst_89 = arith.constant dense<0.000000e+00> : vector<1x128xf32>
      %161 = tpu.matmul %159, %160, %cst_89 {dimension_numbers = #tpu.dot_dimension_numbers<[1], [0], [0], [1], [0, 0, 1, 1], [], []>} : vector<1x32xbf16>, vector<32x128xbf16>, vector<1x128xf32> -> vector<1x128xf32>
      %c0_90 = arith.constant 0 : index
      %c0_91 = arith.constant 0 : index
      %162 = vector.load %arg25[%c0_90, %c0_91] : memref<1x128xf32, #tpu.memory_space<vmem>>, vector<1x128xf32>
      %163 = arith.addf %161, %162 : vector<1x128xf32>
      %164 = vector.shape_cast %163 : vector<1x128xf32> to vector<1x128xf32>
      %165 = vector.broadcast %164 : vector<1x128xf32> to vector<8x128xf32>
      %c0_92 = arith.constant 0 : index
      %c0_93 = arith.constant 0 : index
      %c0_94 = arith.constant 0 : index
      %166 = vector.load %arg26[%c0_92, %c0_93, %c0_94] : memref<1x8x128xf32, #tpu.memory_space<vmem>>, vector<1x8x128xf32>
      %167 = vector.shape_cast %166 : vector<1x8x128xf32> to vector<8x128xf32>
      %168 = vector.shape_cast %165 : vector<8x128xf32> to vector<1x8x128xf32>
      tpu.vector_store %arg26[%c0_92, %c0_93, %c0_94], %168 {strides = array<i32>} : memref<1x8x128xf32, #tpu.memory_space<vmem>>, vector<1x8x128xf32>,
    } else {
    }
    return
  }
  func.func @transform_0(%arg0: i32, %arg1: i32) -> (i32, i32, i32) {
    %c0_i32 = arith.constant 0 : i32
    %c0_i32_0 = arith.constant 0 : i32
    %c0_i32_1 = arith.constant 0 : i32
    return %arg0, %c0_i32, %c0_i32_0 : i32, i32, i32
  }
  func.func @transform_1(%arg0: i32, %arg1: i32) -> (i32, i32, i32) {
    %c0_i32 = arith.constant 0 : i32
    %c0_i32_0 = arith.constant 0 : i32
    %c0_i32_1 = arith.constant 0 : i32
    return %arg0, %c0_i32, %c0_i32_0 : i32, i32, i32
  }
  func.func @transform_2(%arg0: i32, %arg1: i32) -> (i32, i32) {
    %c0_i32 = arith.constant 0 : i32
    %c0_i32_0 = arith.constant 0 : i32
    %c0_i32_1 = arith.constant 0 : i32
    return %c0_i32, %c0_i32_0 : i32, i32
  }
  func.func @transform_3(%arg0: i32, %arg1: i32) -> (i32, i32) {
    %c0_i32 = arith.constant 0 : i32
    %c0_i32_0 = arith.constant 0 : i32
    %c0_i32_1 = arith.constant 0 : i32
    return %c0_i32, %c0_i32_0 : i32, i32
  }
  func.func @transform_4(%arg0: i32, %arg1: i32) -> (i32, i32, i32) {
    %c0_i32 = arith.constant 0 : i32
    %c0_i32_0 = arith.constant 0 : i32
    %c0_i32_1 = arith.constant 0 : i32
    return %arg1, %c0_i32, %c0_i32_0 : i32, i32, i32
  }
  func.func @transform_5(%arg0: i32, %arg1: i32) -> (i32, i32, i32) {
    %c0_i32 = arith.constant 0 : i32
    %c0_i32_0 = arith.constant 0 : i32
    %c0_i32_1 = arith.constant 0 : i32
    return %arg1, %c0_i32, %c0_i32_0 : i32, i32, i32
  }
  func.func @transform_6(%arg0: i32, %arg1: i32) -> (i32, i32, i32) {
    %c0_i32 = arith.constant 0 : i32
    %c0_i32_0 = arith.constant 0 : i32
    %c0_i32_1 = arith.constant 0 : i32
    return %arg1, %c0_i32, %c0_i32_0 : i32, i32, i32
  }
  func.func @transform_7(%arg0: i32, %arg1: i32) -> (i32, i32, i32) {
    %c0_i32 = arith.constant 0 : i32
    %c0_i32_0 = arith.constant 0 : i32
    %c0_i32_1 = arith.constant 0 : i32
    return %arg1, %c0_i32, %c0_i32_0 : i32, i32, i32
  }
  func.func @transform_8(%arg0: i32, %arg1: i32) -> (i32, i32, i32) {
    %c0_i32 = arith.constant 0 : i32
    %c0_i32_0 = arith.constant 0 : i32
    %c0_i32_1 = arith.constant 0 : i32
    return %arg1, %c0_i32, %c0_i32_0 : i32, i32, i32
  }
  func.func @transform_9(%arg0: i32, %arg1: i32) -> (i32, i32, i32) {
    %c0_i32 = arith.constant 0 : i32
    %c0_i32_0 = arith.constant 0 : i32
    %c0_i32_1 = arith.constant 0 : i32
    return %arg1, %c0_i32, %c0_i32_0 : i32, i32, i32
  }
  func.func @transform_10(%arg0: i32, %arg1: i32) -> (i32, i32, i32) {
    %c0_i32 = arith.constant 0 : i32
    %c0_i32_0 = arith.constant 0 : i32
    %c0_i32_1 = arith.constant 0 : i32
    return %arg1, %c0_i32, %c0_i32_0 : i32, i32, i32
  }
  func.func @transform_11(%arg0: i32, %arg1: i32) -> (i32, i32, i32) {
    %c0_i32 = arith.constant 0 : i32
    %c0_i32_0 = arith.constant 0 : i32
    %c0_i32_1 = arith.constant 0 : i32
    return %arg1, %c0_i32, %c0_i32_0 : i32, i32, i32
  }
  func.func @transform_12(%arg0: i32, %arg1: i32) -> (i32, i32, i32) {
    %c0_i32 = arith.constant 0 : i32
    %c0_i32_0 = arith.constant 0 : i32
    %c0_i32_1 = arith.constant 0 : i32
    return %arg1, %c0_i32, %c0_i32_0 : i32, i32, i32
  }
  func.func @transform_13(%arg0: i32, %arg1: i32) -> (i32, i32, i32) {
    %c0_i32 = arith.constant 0 : i32
    %c0_i32_0 = arith.constant 0 : i32
    %c0_i32_1 = arith.constant 0 : i32
    return %arg1, %c0_i32, %c0_i32_0 : i32, i32, i32
  }
  func.func @transform_14(%arg0: i32, %arg1: i32) -> (i32, i32, i32) {
    %c0_i32 = arith.constant 0 : i32
    %c0_i32_0 = arith.constant 0 : i32
    %c0_i32_1 = arith.constant 0 : i32
    return %arg1, %c0_i32, %c0_i32_0 : i32, i32, i32
  }
  func.func @transform_15(%arg0: i32, %arg1: i32) -> (i32, i32, i32) {
    %c0_i32 = arith.constant 0 : i32
    %c0_i32_0 = arith.constant 0 : i32
    %c0_i32_1 = arith.constant 0 : i32
    return %arg1, %c0_i32, %c0_i32_0 : i32, i32, i32
  }
  func.func @transform_16(%arg0: i32, %arg1: i32) -> (i32, i32, i32) {
    %c0_i32 = arith.constant 0 : i32
    %c0_i32_0 = arith.constant 0 : i32
    %c0_i32_1 = arith.constant 0 : i32
    return %arg1, %c0_i32, %c0_i32_0 : i32, i32, i32
  }
  func.func @transform_17(%arg0: i32, %arg1: i32) -> (i32, i32, i32) {
    %c0_i32 = arith.constant 0 : i32
    %c0_i32_0 = arith.constant 0 : i32
    %c0_i32_1 = arith.constant 0 : i32
    return %arg1, %c0_i32, %c0_i32_0 : i32, i32, i32
  }
  func.func @transform_18(%arg0: i32, %arg1: i32) -> (i32, i32, i32) {
    %c0_i32 = arith.constant 0 : i32
    %c0_i32_0 = arith.constant 0 : i32
    %c0_i32_1 = arith.constant 0 : i32
    return %arg1, %c0_i32, %c0_i32_0 : i32, i32, i32
  }
  func.func @transform_19(%arg0: i32, %arg1: i32) -> (i32, i32, i32) {
    %c0_i32 = arith.constant 0 : i32
    %c0_i32_0 = arith.constant 0 : i32
    %c0_i32_1 = arith.constant 0 : i32
    return %arg1, %c0_i32, %c0_i32_0 : i32, i32, i32
  }
  func.func @transform_20(%arg0: i32, %arg1: i32) -> (i32, i32) {
    %c0_i32 = arith.constant 0 : i32
    %c0_i32_0 = arith.constant 0 : i32
    %c0_i32_1 = arith.constant 0 : i32
    return %c0_i32, %c0_i32_0 : i32, i32
  }
  func.func @transform_21(%arg0: i32, %arg1: i32) -> (i32, i32) {
    %c0_i32 = arith.constant 0 : i32
    %c0_i32_0 = arith.constant 0 : i32
    %c0_i32_1 = arith.constant 0 : i32
    return %c0_i32, %c0_i32_0 : i32, i32
  }
  func.func @transform_22(%arg0: i32, %arg1: i32) -> (i32, i32) {
    %c0_i32 = arith.constant 0 : i32
    %c0_i32_0 = arith.constant 0 : i32
    %c0_i32_1 = arith.constant 0 : i32
    return %c0_i32, %c0_i32_0 : i32, i32
  }
  func.func @transform_23(%arg0: i32, %arg1: i32) -> (i32, i32) {
    %c0_i32 = arith.constant 0 : i32
    %c0_i32_0 = arith.constant 0 : i32
    %c0_i32_1 = arith.constant 0 : i32
    return %c0_i32, %c0_i32_0 : i32, i32
  }
  func.func @transform_24(%arg0: i32, %arg1: i32) -> (i32, i32, i32) {
    %c0_i32 = arith.constant 0 : i32
    %c0_i32_0 = arith.constant 0 : i32
    %c0_i32_1 = arith.constant 0 : i32
    return %arg0, %c0_i32, %c0_i32_0 : i32, i32, i32
  }
}

</mosaic_0001>

<llo_original>
// kernel: bert_classifier_forward.1
$region0: #{bert_classifier_forward.1}
  #allocation0 [shape = 'u32[]', space=smem, size = 0x4, offset = 0x4, fixed_abs, tag = 'smem constant byte address 0x4 - core index']
  #allocation1 [shape = 'u32[144,128]{1,0:T(1,128)}', space=vmem, size = 0x12000, scoped, tag = 'internal scratch']
  #allocation2 [shape = 'f32[8,32]{1,0:T(8,128)}', space=vmem, size = 0x1000, scoped, tag = 'scratch operand']
  %s0 = inlined_call_operand.vmem [shape: f32[2,8,32], index: 0, kind: input, shape index: {}]
  %s1 = inlined_call_operand.vmem [shape: f32[2,1,8], index: 1, kind: input, shape index: {}]
  %s2 = inlined_call_operand.vmem [shape: f32[1,32], index: 2, kind: input, shape index: {}]
  %s3 = inlined_call_operand.vmem [shape: f32[1,32], index: 3, kind: input, shape index: {}]
  %s4 = inlined_call_operand.vmem [shape: bf16[2,32,32], index: 4, kind: input, shape index: {}]
  %s5 = inlined_call_operand.vmem [shape: bf16[2,32,32], index: 5, kind: input, shape index: {}]
  %s6 = inlined_call_operand.vmem [shape: bf16[2,32,32], index: 6, kind: input, shape index: {}]
  %s7 = inlined_call_operand.vmem [shape: f32[2,32,1], index: 7, kind: input, shape index: {}]
  %s8 = inlined_call_operand.vmem [shape: f32[2,32,1], index: 8, kind: input, shape index: {}]
  %s9 = inlined_call_operand.vmem [shape: f32[2,32,1], index: 9, kind: input, shape index: {}]
  %s10 = inlined_call_operand.vmem [shape: bf16[2,32,32], index: 10, kind: input, shape index: {}]
  %s11 = inlined_call_operand.vmem [shape: f32[2,1,32], index: 11, kind: input, shape index: {}]
  %s12 = inlined_call_operand.vmem [shape: f32[2,1,32], index: 12, kind: input, shape index: {}]
  %s13 = inlined_call_operand.vmem [shape: f32[2,1,32], index: 13, kind: input, shape index: {}]
  %s14 = inlined_call_operand.vmem [shape: bf16[2,32,64], index: 14, kind: input, shape index: {}]
  %s15 = inlined_call_operand.vmem [shape: f32[2,1,64], index: 15, kind: input, shape index: {}]
  %s16 = inlined_call_operand.vmem [shape: bf16[2,64,32], index: 16, kind: input, shape index: {}]
  %s17 = inlined_call_operand.vmem [shape: f32[2,1,32], index: 17, kind: input, shape index: {}]
  %s18 = inlined_call_operand.vmem [shape: f32[2,1,32], index: 18, kind: input, shape index: {}]
  %s19 = inlined_call_operand.vmem [shape: f32[2,1,32], index: 19, kind: input, shape index: {}]
  %s20 = inlined_call_operand.vmem [shape: bf16[32,32], index: 20, kind: input, shape index: {}]
  %s21 = inlined_call_operand.vmem [shape: f32[1,32], index: 21, kind: input, shape index: {}]
  %s22 = inlined_call_operand.vmem [shape: bf16[32,128], index: 22, kind: input, shape index: {}]
  %s23 = inlined_call_operand.vmem [shape: f32[1,128], index: 23, kind: input, shape index: {}]
  %s24 = inlined_call_operand.vmem [shape: f32[2,8,128], index: 24, kind: output, shape index: {}]
  %s25 = sld [smem:[#allocation0]]
  $region137: #{bert_classifier_forward.1} parent=0
    _
  %s27 = ssub.s32 1, %s25
  %s28 = scalar_select 0, %s27, %s25
  loop: start=0, step=1, limit=6
  $region2: #{bert_classifier_forward.1} parent=0 // loop_pre_header
    _
  $region3: #{bert_classifier_forward.1} parent=0 // loop_header
    %s30 = sphi 0, %s34
    %p31 = scmp.ge.s32.totalorder %s30, 6
    %s37 = sphi 0, %s49
    %s38 = sphi 0, %s45
    %s39 = sphi 0, %s37
    %s40 = sphi 0, %s38
    %s41 = sphi 0, %s39
    %s42 = sphi 0, %s40
    %s52 = sphi 0, %s54
    %s55 = sphi 0, %s52
    %s56 = sphi 0, %s55
    %s72 = sphi 0, %s56
    %s78 = sphi 0, %s80
    %s81 = sphi 0, %s78
    %s82 = sphi 0, %s81
    %s98 = sphi 0, %s82
    %s102 = sphi 0, %s102
    %s104 = sphi 0, %s102
    %s105 = sphi 0, %s104
    %s119 = sphi 0, %s105
    %s123 = sphi 0, %s123
    %s125 = sphi 0, %s123
    %s126 = sphi 0, %s125
    %s140 = sphi 0, %s126
    %s146 = sphi 0, %s148
    %s149 = sphi 0, %s146
    %s150 = sphi 0, %s149
    %s166 = sphi 0, %s150
    %s172 = sphi 0, %s174
    %s175 = sphi 0, %s172
    %s176 = sphi 0, %s175
    %s192 = sphi 0, %s176
    %s198 = sphi 0, %s200
    %s201 = sphi 0, %s198
    %s202 = sphi 0, %s201
    %s218 = sphi 0, %s202
    %s224 = sphi 0, %s226
    %s227 = sphi 0, %s224
    %s228 = sphi 0, %s227
    %s244 = sphi 0, %s228
    %s250 = sphi 0, %s252
    %s253 = sphi 0, %s250
    %s254 = sphi 0, %s253
    %s270 = sphi 0, %s254
    %s276 = sphi 0, %s278
    %s279 = sphi 0, %s276
    %s280 = sphi 0, %s279
    %s296 = sphi 0, %s280
    %s302 = sphi 0, %s304
    %s305 = sphi 0, %s302
    %s306 = sphi 0, %s305
    %s322 = sphi 0, %s306
    %s328 = sphi 0, %s330
    %s331 = sphi 0, %s328
    %s332 = sphi 0, %s331
    %s348 = sphi 0, %s332
    %s354 = sphi 0, %s356
    %s357 = sphi 0, %s354
    %s358 = sphi 0, %s357
    %s374 = sphi 0, %s358
    %s380 = sphi 0, %s382
    %s383 = sphi 0, %s380
    %s384 = sphi 0, %s383
    %s400 = sphi 0, %s384
    %s406 = sphi 0, %s408
    %s409 = sphi 0, %s406
    %s410 = sphi 0, %s409
    %s426 = sphi 0, %s410
    %s432 = sphi 0, %s434
    %s435 = sphi 0, %s432
    %s436 = sphi 0, %s435
    %s452 = sphi 0, %s436
    %s458 = sphi 0, %s460
    %s461 = sphi 0, %s458
    %s462 = sphi 0, %s461
    %s478 = sphi 0, %s462
    %s484 = sphi 0, %s486
    %s487 = sphi 0, %s484
    %s488 = sphi 0, %s487
    %s504 = sphi 0, %s488
    %s510 = sphi 0, %s512
    %s513 = sphi 0, %s510
    %s514 = sphi 0, %s513
    %s530 = sphi 0, %s514
    %s536 = sphi 0, %s538
    %s539 = sphi 0, %s536
    %s540 = sphi 0, %s539
    %s556 = sphi 0, %s540
    %s560 = sphi 0, %s560
    %s562 = sphi 0, %s560
    %s563 = sphi 0, %s562
    %s577 = sphi 0, %s563
    %s581 = sphi 0, %s581
    %s583 = sphi 0, %s581
    %s584 = sphi 0, %s583
    %s598 = sphi 0, %s584
    %s602 = sphi 0, %s602
    %s604 = sphi 0, %s602
    %s605 = sphi 0, %s604
    %s619 = sphi 0, %s605
    %s623 = sphi 0, %s623
    %s625 = sphi 0, %s623
    %s626 = sphi 0, %s625
    %s640 = sphi 0, %s626
    %s646 = sphi 0, %s648
    %s649 = sphi 0, %s646
    %s650 = sphi 0, %s649
    %s666 = sphi 0, %s650
  $region4: #{bert_classifier_forward.1} parent=0 // loop_header_branch
    %33 = sbr.rel (%p31) target = $region8
  $region5: #{bert_classifier_forward.1} parent=0 // loop_body
    %s35 = ssub.s32 %s30, 1
    %s36 = ssub.s32 %s30, 2
    %s43 = sadd.s32 1, %s38
    %p44 = scmp.ge.s32.totalorder %s43, 2
    %s45 = scalar_select %p44, 0, %s43
    %s46 = sadd.s32 1, %s37
    %s47 = scalar_select %p44, %s46, %s37
    %p48 = scmp.ge.s32.totalorder %s47, 2
    %s49 = scalar_select %p48, 0, %s47
    %s50 = ssub.s32 %s37, %s49
    %p51 = scmp.eq.s32.totalorder %s50, 0
    %s53 = sadd.s32 %s52, 1
    %s54 = scalar_select %p51, %s52, %s53
    %p57 = pneg %p51
    %p58 = scmp.eq.s32.totalorder %s30, 3
    %p59 = por %p57, %p58
    %p60 = scmp.ne.s32.totalorder %s52, %s55
    %p61 = scmp.eq.s32.totalorder %s30, 0
    %p62 = por %p60, %p61
    %p63 = scmp.ne.s32.totalorder %s52, %s55
    %p64 = scmp.eq.s32.totalorder %s35, 3
    %p65 = por %p63, %p64
    %p66 = scmp.ne.s32.totalorder %s55, %s56
    %p67 = scmp.eq.s32.totalorder %s35, 0
    %p68 = por %p66, %p67
    %p69 = scmp.ne.s32.totalorder %s55, %s56
    %p70 = scmp.eq.s32.totalorder %s36, 3
    %p71 = por %p69, %p70
    %p73 = scmp.ne.s32.totalorder %s56, %s72
    %p74 = scmp.eq.s32.totalorder %s36, 0
    %p75 = por %p73, %p74
    %s76 = ssub.s32 %s37, %s49
    %p77 = scmp.eq.s32.totalorder %s76, 0
    %s79 = sadd.s32 %s78, 1
    %s80 = scalar_select %p77, %s78, %s79
    %p83 = pneg %p77
    %p84 = scmp.eq.s32.totalorder %s30, 3
    %p85 = por %p83, %p84
    %p86 = scmp.ne.s32.totalorder %s78, %s81
    %p87 = scmp.eq.s32.totalorder %s30, 0
    %p88 = por %p86, %p87
    %p89 = scmp.ne.s32.totalorder %s78, %s81
    %p90 = scmp.eq.s32.totalorder %s35, 3
    %p91 = por %p89, %p90
    %p92 = scmp.ne.s32.totalorder %s81, %s82
    %p93 = scmp.eq.s32.totalorder %s35, 0
    %p94 = por %p92, %p93
    %p95 = scmp.ne.s32.totalorder %s81, %s82
    %p96 = scmp.eq.s32.totalorder %s36, 3
    %p97 = por %p95, %p96
    %p99 = scmp.ne.s32.totalorder %s82, %s98
    %p100 = scmp.eq.s32.totalorder %s36, 0
    %p101 = por %p99, %p100
    %s103 = sadd.s32 %s102, 1
    %p106 = scmp.eq.s32.totalorder %s30, 3
    %p107 = scmp.ne.s32.totalorder %s102, %s104
    %p108 = scmp.eq.s32.totalorder %s30, 0
    %p109 = por %p107, %p108
    %p110 = scmp.ne.s32.totalorder %s102, %s104
    %p111 = scmp.eq.s32.totalorder %s35, 3
    %p112 = por %p110, %p111
    %p113 = scmp.ne.s32.totalorder %s104, %s105
    %p114 = scmp.eq.s32.totalorder %s35, 0
    %p115 = por %p113, %p114
    %p116 = scmp.ne.s32.totalorder %s104, %s105
    %p117 = scmp.eq.s32.totalorder %s36, 3
    %p118 = por %p116, %p117
    %p120 = scmp.ne.s32.totalorder %s105, %s119
    %p121 = scmp.eq.s32.totalorder %s36, 0
    %p122 = por %p120, %p121
    %s124 = sadd.s32 %s123, 1
    %p127 = scmp.eq.s32.totalorder %s30, 3
    %p128 = scmp.ne.s32.totalorder %s123, %s125
    %p129 = scmp.eq.s32.totalorder %s30, 0
    %p130 = por %p128, %p129
    %p131 = scmp.ne.s32.totalorder %s123, %s125
    %p132 = scmp.eq.s32.totalorder %s35, 3
    %p133 = por %p131, %p132
    %p134 = scmp.ne.s32.totalorder %s125, %s126
    %p135 = scmp.eq.s32.totalorder %s35, 0
    %p136 = por %p134, %p135
    %p137 = scmp.ne.s32.totalorder %s125, %s126
    %p138 = scmp.eq.s32.totalorder %s36, 3
    %p139 = por %p137, %p138
    %p141 = scmp.ne.s32.totalorder %s126, %s140
    %p142 = scmp.eq.s32.totalorder %s36, 0
    %p143 = por %p141, %p142
    %s144 = ssub.s32 %s38, %s45
    %p145 = scmp.eq.s32.totalorder %s144, 0
    %s147 = sadd.s32 %s146, 1
    %s148 = scalar_select %p145, %s146, %s147
    %p151 = pneg %p145
    %p152 = scmp.eq.s32.totalorder %s30, 3
    %p153 = por %p151, %p152
    %p154 = scmp.ne.s32.totalorder %s146, %s149
    %p155 = scmp.eq.s32.totalorder %s30, 0
    %p156 = por %p154, %p155
    %p157 = scmp.ne.s32.totalorder %s146, %s149
    %p158 = scmp.eq.s32.totalorder %s35, 3
    %p159 = por %p157, %p158
    %p160 = scmp.ne.s32.totalorder %s149, %s150
    %p161 = scmp.eq.s32.totalorder %s35, 0
    %p162 = por %p160, %p161
    %p163 = scmp.ne.s32.totalorder %s149, %s150
    %p164 = scmp.eq.s32.totalorder %s36, 3
    %p165 = por %p163, %p164
    %p167 = scmp.ne.s32.totalorder %s150, %s166
    %p168 = scmp.eq.s32.totalorder %s36, 0
    %p169 = por %p167, %p168
    %s170 = ssub.s32 %s38, %s45
    %p171 = scmp.eq.s32.totalorder %s170, 0
    %s173 = sadd.s32 %s172, 1
    %s174 = scalar_select %p171, %s172, %s173
    %p177 = pneg %p171
    %p178 = scmp.eq.s32.totalorder %s30, 3
    %p179 = por %p177, %p178
    %p180 = scmp.ne.s32.totalorder %s172, %s175
    %p181 = scmp.eq.s32.totalorder %s30, 0
    %p182 = por %p180, %p181
    %p183 = scmp.ne.s32.totalorder %s172, %s175
    %p184 = scmp.eq.s32.totalorder %s35, 3
    %p185 = por %p183, %p184
    %p186 = scmp.ne.s32.totalorder %s175, %s176
    %p187 = scmp.eq.s32.totalorder %s35, 0
    %p188 = por %p186, %p187
    %p189 = scmp.ne.s32.totalorder %s175, %s176
    %p190 = scmp.eq.s32.totalorder %s36, 3
    %p191 = por %p189, %p190
    %p193 = scmp.ne.s32.totalorder %s176, %s192
    %p194 = scmp.eq.s32.totalorder %s36, 0
    %p195 = por %p193, %p194
    %s196 = ssub.s32 %s38, %s45
    %p197 = scmp.eq.s32.totalorder %s196, 0
    %s199 = sadd.s32 %s198, 1
    %s200 = scalar_select %p197, %s198, %s199
    %p203 = pneg %p197
    %p204 = scmp.eq.s32.totalorder %s30, 3
    %p205 = por %p203, %p204
    %p206 = scmp.ne.s32.totalorder %s198, %s201
    %p207 = scmp.eq.s32.totalorder %s30, 0
    %p208 = por %p206, %p207
    %p209 = scmp.ne.s32.totalorder %s198, %s201
    %p210 = scmp.eq.s32.totalorder %s35, 3
    %p211 = por %p209, %p210
    %p212 = scmp.ne.s32.totalorder %s201, %s202
    %p213 = scmp.eq.s32.totalorder %s35, 0
    %p214 = por %p212, %p213
    %p215 = scmp.ne.s32.totalorder %s201, %s202
    %p216 = scmp.eq.s32.totalorder %s36, 3
    %p217 = por %p215, %p216
    %p219 = scmp.ne.s32.totalorder %s202, %s218
    %p220 = scmp.eq.s32.totalorder %s36, 0
    %p221 = por %p219, %p220
    %s222 = ssub.s32 %s38, %s45
    %p223 = scmp.eq.s32.totalorder %s222, 0
    %s225 = sadd.s32 %s224, 1
    %s226 = scalar_select %p223, %s224, %s225
    %p229 = pneg %p223
    %p230 = scmp.eq.s32.totalorder %s30, 3
    %p231 = por %p229, %p230
    %p232 = scmp.ne.s32.totalorder %s224, %s227
    %p233 = scmp.eq.s32.totalorder %s30, 0
    %p234 = por %p232, %p233
    %p235 = scmp.ne.s32.totalorder %s224, %s227
    %p236 = scmp.eq.s32.totalorder %s35, 3
    %p237 = por %p235, %p236
    %p238 = scmp.ne.s32.totalorder %s227, %s228
    %p239 = scmp.eq.s32.totalorder %s35, 0
    %p240 = por %p238, %p239
    %p241 = scmp.ne.s32.totalorder %s227, %s228
    %p242 = scmp.eq.s32.totalorder %s36, 3
    %p243 = por %p241, %p242
    %p245 = scmp.ne.s32.totalorder %s228, %s244
    %p246 = scmp.eq.s32.totalorder %s36, 0
    %p247 = por %p245, %p246
    %s248 = ssub.s32 %s38, %s45
    %p249 = scmp.eq.s32.totalorder %s248, 0
    %s251 = sadd.s32 %s250, 1
    %s252 = scalar_select %p249, %s250, %s251
    %p255 = pneg %p249
    %p256 = scmp.eq.s32.totalorder %s30, 3
    %p257 = por %p255, %p256
    %p258 = scmp.ne.s32.totalorder %s250, %s253
    %p259 = scmp.eq.s32.totalorder %s30, 0
    %p260 = por %p258, %p259
    %p261 = scmp.ne.s32.totalorder %s250, %s253
    %p262 = scmp.eq.s32.totalorder %s35, 3
    %p263 = por %p261, %p262
    %p264 = scmp.ne.s32.totalorder %s253, %s254
    %p265 = scmp.eq.s32.totalorder %s35, 0
    %p266 = por %p264, %p265
    %p267 = scmp.ne.s32.totalorder %s253, %s254
    %p268 = scmp.eq.s32.totalorder %s36, 3
    %p269 = por %p267, %p268
    %p271 = scmp.ne.s32.totalorder %s254, %s270
    %p272 = scmp.eq.s32.totalorder %s36, 0
    %p273 = por %p271, %p272
    %s274 = ssub.s32 %s38, %s45
    %p275 = scmp.eq.s32.totalorder %s274, 0
    %s277 = sadd.s32 %s276, 1
    %s278 = scalar_select %p275, %s276, %s277
    %p281 = pneg %p275
    %p282 = scmp.eq.s32.totalorder %s30, 3
    %p283 = por %p281, %p282
    %p284 = scmp.ne.s32.totalorder %s276, %s279
    %p285 = scmp.eq.s32.totalorder %s30, 0
    %p286 = por %p284, %p285
    %p287 = scmp.ne.s32.totalorder %s276, %s279
    %p288 = scmp.eq.s32.totalorder %s35, 3
    %p289 = por %p287, %p288
    %p290 = scmp.ne.s32.totalorder %s279, %s280
    %p291 = scmp.eq.s32.totalorder %s35, 0
    %p292 = por %p290, %p291
    %p293 = scmp.ne.s32.totalorder %s279, %s280
    %p294 = scmp.eq.s32.totalorder %s36, 3
    %p295 = por %p293, %p294
    %p297 = scmp.ne.s32.totalorder %s280, %s296
    %p298 = scmp.eq.s32.totalorder %s36, 0
    %p299 = por %p297, %p298
    %s300 = ssub.s32 %s38, %s45
    %p301 = scmp.eq.s32.totalorder %s300, 0
    %s303 = sadd.s32 %s302, 1
    %s304 = scalar_select %p301, %s302, %s303
    %p307 = pneg %p301
    %p308 = scmp.eq.s32.totalorder %s30, 3
    %p309 = por %p307, %p308
    %p310 = scmp.ne.s32.totalorder %s302, %s305
    %p311 = scmp.eq.s32.totalorder %s30, 0
    %p312 = por %p310, %p311
    %p313 = scmp.ne.s32.totalorder %s302, %s305
    %p314 = scmp.eq.s32.totalorder %s35, 3
    %p315 = por %p313, %p314
    %p316 = scmp.ne.s32.totalorder %s305, %s306
    %p317 = scmp.eq.s32.totalorder %s35, 0
    %p318 = por %p316, %p317
    %p319 = scmp.ne.s32.totalorder %s305, %s306
    %p320 = scmp.eq.s32.totalorder %s36, 3
    %p321 = por %p319, %p320
    %p323 = scmp.ne.s32.totalorder %s306, %s322
    %p324 = scmp.eq.s32.totalorder %s36, 0
    %p325 = por %p323, %p324
    %s326 = ssub.s32 %s38, %s45
    %p327 = scmp.eq.s32.totalorder %s326, 0
    %s329 = sadd.s32 %s328, 1
    %s330 = scalar_select %p327, %s328, %s329
    %p333 = pneg %p327
    %p334 = scmp.eq.s32.totalorder %s30, 3
    %p335 = por %p333, %p334
    %p336 = scmp.ne.s32.totalorder %s328, %s331
    %p337 = scmp.eq.s32.totalorder %s30, 0
    %p338 = por %p336, %p337
    %p339 = scmp.ne.s32.totalorder %s328, %s331
    %p340 = scmp.eq.s32.totalorder %s35, 3
    %p341 = por %p339, %p340
    %p342 = scmp.ne.s32.totalorder %s331, %s332
    %p343 = scmp.eq.s32.totalorder %s35, 0
    %p344 = por %p342, %p343
    %p345 = scmp.ne.s32.totalorder %s331, %s332
    %p346 = scmp.eq.s32.totalorder %s36, 3
    %p347 = por %p345, %p346
    %p349 = scmp.ne.s32.totalorder %s332, %s348
    %p350 = scmp.eq.s32.totalorder %s36, 0
    %p351 = por %p349, %p350
    %s352 = ssub.s32 %s38, %s45
    %p353 = scmp.eq.s32.totalorder %s352, 0
    %s355 = sadd.s32 %s354, 1
    %s356 = scalar_select %p353, %s354, %s355
    %p359 = pneg %p353
    %p360 = scmp.eq.s32.totalorder %s30, 3
    %p361 = por %p359, %p360
    %p362 = scmp.ne.s32.totalorder %s354, %s357
    %p363 = scmp.eq.s32.totalorder %s30, 0
    %p364 = por %p362, %p363
    %p365 = scmp.ne.s32.totalorder %s354, %s357
    %p366 = scmp.eq.s32.totalorder %s35, 3
    %p367 = por %p365, %p366
    %p368 = scmp.ne.s32.totalorder %s357, %s358
    %p369 = scmp.eq.s32.totalorder %s35, 0
    %p370 = por %p368, %p369
    %p371 = scmp.ne.s32.totalorder %s357, %s358
    %p372 = scmp.eq.s32.totalorder %s36, 3
    %p373 = por %p371, %p372
    %p375 = scmp.ne.s32.totalorder %s358, %s374
    %p376 = scmp.eq.s32.totalorder %s36, 0
    %p377 = por %p375, %p376
    %s378 = ssub.s32 %s38, %s45
    %p379 = scmp.eq.s32.totalorder %s378, 0
    %s381 = sadd.s32 %s380, 1
    %s382 = scalar_select %p379, %s380, %s381
    %p385 = pneg %p379
    %p386 = scmp.eq.s32.totalorder %s30, 3
    %p387 = por %p385, %p386
    %p388 = scmp.ne.s32.totalorder %s380, %s383
    %p389 = scmp.eq.s32.totalorder %s30, 0
    %p390 = por %p388, %p389
    %p391 = scmp.ne.s32.totalorder %s380, %s383
    %p392 = scmp.eq.s32.totalorder %s35, 3
    %p393 = por %p391, %p392
    %p394 = scmp.ne.s32.totalorder %s383, %s384
    %p395 = scmp.eq.s32.totalorder %s35, 0
    %p396 = por %p394, %p395
    %p397 = scmp.ne.s32.totalorder %s383, %s384
    %p398 = scmp.eq.s32.totalorder %s36, 3
    %p399 = por %p397, %p398
    %p401 = scmp.ne.s32.totalorder %s384, %s400
    %p402 = scmp.eq.s32.totalorder %s36, 0
    %p403 = por %p401, %p402
    %s404 = ssub.s32 %s38, %s45
    %p405 = scmp.eq.s32.totalorder %s404, 0
    %s407 = sadd.s32 %s406, 1
    %s408 = scalar_select %p405, %s406, %s407
    %p411 = pneg %p405
    %p412 = scmp.eq.s32.totalorder %s30, 3
    %p413 = por %p411, %p412
    %p414 = scmp.ne.s32.totalorder %s406, %s409
    %p415 = scmp.eq.s32.totalorder %s30, 0
    %p416 = por %p414, %p415
    %p417 = scmp.ne.s32.totalorder %s406, %s409
    %p418 = scmp.eq.s32.totalorder %s35, 3
    %p419 = por %p417, %p418
    %p420 = scmp.ne.s32.totalorder %s409, %s410
    %p421 = scmp.eq.s32.totalorder %s35, 0
    %p422 = por %p420, %p421
    %p423 = scmp.ne.s32.totalorder %s409, %s410
    %p424 = scmp.eq.s32.totalorder %s36, 3
    %p425 = por %p423, %p424
    %p427 = scmp.ne.s32.totalorder %s410, %s426
    %p428 = scmp.eq.s32.totalorder %s36, 0
    %p429 = por %p427, %p428
    %s430 = ssub.s32 %s38, %s45
    %p431 = scmp.eq.s32.totalorder %s430, 0
    %s433 = sadd.s32 %s432, 1
    %s434 = scalar_select %p431, %s432, %s433
    %p437 = pneg %p431
    %p438 = scmp.eq.s32.totalorder %s30, 3
    %p439 = por %p437, %p438
    %p440 = scmp.ne.s32.totalorder %s432, %s435
    %p441 = scmp.eq.s32.totalorder %s30, 0
    %p442 = por %p440, %p441
    %p443 = scmp.ne.s32.totalorder %s432, %s435
    %p444 = scmp.eq.s32.totalorder %s35, 3
    %p445 = por %p443, %p444
    %p446 = scmp.ne.s32.totalorder %s435, %s436
    %p447 = scmp.eq.s32.totalorder %s35, 0
    %p448 = por %p446, %p447
    %p449 = scmp.ne.s32.totalorder %s435, %s436
    %p450 = scmp.eq.s32.totalorder %s36, 3
    %p451 = por %p449, %p450
    %p453 = scmp.ne.s32.totalorder %s436, %s452
    %p454 = scmp.eq.s32.totalorder %s36, 0
    %p455 = por %p453, %p454
    %s456 = ssub.s32 %s38, %s45
    %p457 = scmp.eq.s32.totalorder %s456, 0
    %s459 = sadd.s32 %s458, 1
    %s460 = scalar_select %p457, %s458, %s459
    %p463 = pneg %p457
    %p464 = scmp.eq.s32.totalorder %s30, 3
    %p465 = por %p463, %p464
    %p466 = scmp.ne.s32.totalorder %s458, %s461
    %p467 = scmp.eq.s32.totalorder %s30, 0
    %p468 = por %p466, %p467
    %p469 = scmp.ne.s32.totalorder %s458, %s461
    %p470 = scmp.eq.s32.totalorder %s35, 3
    %p471 = por %p469, %p470
    %p472 = scmp.ne.s32.totalorder %s461, %s462
    %p473 = scmp.eq.s32.totalorder %s35, 0
    %p474 = por %p472, %p473
    %p475 = scmp.ne.s32.totalorder %s461, %s462
    %p476 = scmp.eq.s32.totalorder %s36, 3
    %p477 = por %p475, %p476
    %p479 = scmp.ne.s32.totalorder %s462, %s478
    %p480 = scmp.eq.s32.totalorder %s36, 0
    %p481 = por %p479, %p480
    %s482 = ssub.s32 %s38, %s45
    %p483 = scmp.eq.s32.totalorder %s482, 0
    %s485 = sadd.s32 %s484, 1
    %s486 = scalar_select %p483, %s484, %s485
    %p489 = pneg %p483
    %p490 = scmp.eq.s32.totalorder %s30, 3
    %p491 = por %p489, %p490
    %p492 = scmp.ne.s32.totalorder %s484, %s487
    %p493 = scmp.eq.s32.totalorder %s30, 0
    %p494 = por %p492, %p493
    %p495 = scmp.ne.s32.totalorder %s484, %s487
    %p496 = scmp.eq.s32.totalorder %s35, 3
    %p497 = por %p495, %p496
    %p498 = scmp.ne.s32.totalorder %s487, %s488
    %p499 = scmp.eq.s32.totalorder %s35, 0
    %p500 = por %p498, %p499
    %p501 = scmp.ne.s32.totalorder %s487, %s488
    %p502 = scmp.eq.s32.totalorder %s36, 3
    %p503 = por %p501, %p502
    %p505 = scmp.ne.s32.totalorder %s488, %s504
    %p506 = scmp.eq.s32.totalorder %s36, 0
    %p507 = por %p505, %p506
    %s508 = ssub.s32 %s38, %s45
    %p509 = scmp.eq.s32.totalorder %s508, 0
    %s511 = sadd.s32 %s510, 1
    %s512 = scalar_select %p509, %s510, %s511
    %p515 = pneg %p509
    %p516 = scmp.eq.s32.totalorder %s30, 3
    %p517 = por %p515, %p516
    %p518 = scmp.ne.s32.totalorder %s510, %s513
    %p519 = scmp.eq.s32.totalorder %s30, 0
    %p520 = por %p518, %p519
    %p521 = scmp.ne.s32.totalorder %s510, %s513
    %p522 = scmp.eq.s32.totalorder %s35, 3
    %p523 = por %p521, %p522
    %p524 = scmp.ne.s32.totalorder %s513, %s514
    %p525 = scmp.eq.s32.totalorder %s35, 0
    %p526 = por %p524, %p525
    %p527 = scmp.ne.s32.totalorder %s513, %s514
    %p528 = scmp.eq.s32.totalorder %s36, 3
    %p529 = por %p527, %p528
    %p531 = scmp.ne.s32.totalorder %s514, %s530
    %p532 = scmp.eq.s32.totalorder %s36, 0
    %p533 = por %p531, %p532
    %s534 = ssub.s32 %s38, %s45
    %p535 = scmp.eq.s32.totalorder %s534, 0
    %s537 = sadd.s32 %s536, 1
    %s538 = scalar_select %p535, %s536, %s537
    %p541 = pneg %p535
    %p542 = scmp.eq.s32.totalorder %s30, 3
    %p543 = por %p541, %p542
    %p544 = scmp.ne.s32.totalorder %s536, %s539
    %p545 = scmp.eq.s32.totalorder %s30, 0
    %p546 = por %p544, %p545
    %p547 = scmp.ne.s32.totalorder %s536, %s539
    %p548 = scmp.eq.s32.totalorder %s35, 3
    %p549 = por %p547, %p548
    %p550 = scmp.ne.s32.totalorder %s539, %s540
    %p551 = scmp.eq.s32.totalorder %s35, 0
    %p552 = por %p550, %p551
    %p553 = scmp.ne.s32.totalorder %s539, %s540
    %p554 = scmp.eq.s32.totalorder %s36, 3
    %p555 = por %p553, %p554
    %p557 = scmp.ne.s32.totalorder %s540, %s556
    %p558 = scmp.eq.s32.totalorder %s36, 0
    %p559 = por %p557, %p558
    %s561 = sadd.s32 %s560, 1
    %p564 = scmp.eq.s32.totalorder %s30, 3
    %p565 = scmp.ne.s32.totalorder %s560, %s562
    %p566 = scmp.eq.s32.totalorder %s30, 0
    %p567 = por %p565, %p566
    %p568 = scmp.ne.s32.totalorder %s560, %s562
    %p569 = scmp.eq.s32.totalorder %s35, 3
    %p570 = por %p568, %p569
    %p571 = scmp.ne.s32.totalorder %s562, %s563
    %p572 = scmp.eq.s32.totalorder %s35, 0
    %p573 = por %p571, %p572
    %p574 = scmp.ne.s32.totalorder %s562, %s563
    %p575 = scmp.eq.s32.totalorder %s36, 3
    %p576 = por %p574, %p575
    %p578 = scmp.ne.s32.totalorder %s563, %s577
    %p579 = scmp.eq.s32.totalorder %s36, 0
    %p580 = por %p578, %p579
    %s582 = sadd.s32 %s581, 1
    %p585 = scmp.eq.s32.totalorder %s30, 3
    %p586 = scmp.ne.s32.totalorder %s581, %s583
    %p587 = scmp.eq.s32.totalorder %s30, 0
    %p588 = por %p586, %p587
    %p589 = scmp.ne.s32.totalorder %s581, %s583
    %p590 = scmp.eq.s32.totalorder %s35, 3
    %p591 = por %p589, %p590
    %p592 = scmp.ne.s32.totalorder %s583, %s584
    %p593 = scmp.eq.s32.totalorder %s35, 0
    %p594 = por %p592, %p593
    %p595 = scmp.ne.s32.totalorder %s583, %s584
    %p596 = scmp.eq.s32.totalorder %s36, 3
    %p597 = por %p595, %p596
    %p599 = scmp.ne.s32.totalorder %s584, %s598
    %p600 = scmp.eq.s32.totalorder %s36, 0
    %p601 = por %p599, %p600
    %s603 = sadd.s32 %s602, 1
    %p606 = scmp.eq.s32.totalorder %s30, 3
    %p607 = scmp.ne.s32.totalorder %s602, %s604
    %p608 = scmp.eq.s32.totalorder %s30, 0
    %p609 = por %p607, %p608
    %p610 = scmp.ne.s32.totalorder %s602, %s604
    %p611 = scmp.eq.s32.totalorder %s35, 3
    %p612 = por %p610, %p611
    %p613 = scmp.ne.s32.totalorder %s604, %s605
    %p614 = scmp.eq.s32.totalorder %s35, 0
    %p615 = por %p613, %p614
    %p616 = scmp.ne.s32.totalorder %s604, %s605
    %p617 = scmp.eq.s32.totalorder %s36, 3
    %p618 = por %p616, %p617
    %p620 = scmp.ne.s32.totalorder %s605, %s619
    %p621 = scmp.eq.s32.totalorder %s36, 0
    %p622 = por %p620, %p621
    %s624 = sadd.s32 %s623, 1
    %p627 = scmp.eq.s32.totalorder %s30, 3
    %p628 = scmp.ne.s32.totalorder %s623, %s625
    %p629 = scmp.eq.s32.totalorder %s30, 0
    %p630 = por %p628, %p629
    %p631 = scmp.ne.s32.totalorder %s623, %s625
    %p632 = scmp.eq.s32.totalorder %s35, 3
    %p633 = por %p631, %p632
    %p634 = scmp.ne.s32.totalorder %s625, %s626
    %p635 = scmp.eq.s32.totalorder %s35, 0
    %p636 = por %p634, %p635
    %p637 = scmp.ne.s32.totalorder %s625, %s626
    %p638 = scmp.eq.s32.totalorder %s36, 3
    %p639 = por %p637, %p638
    %p641 = scmp.ne.s32.totalorder %s626, %s640
    %p642 = scmp.eq.s32.totalorder %s36, 0
    %p643 = por %p641, %p642
    %s644 = ssub.s32 %s37, %s49
    %p645 = scmp.eq.s32.totalorder %s644, 0
    %s647 = sadd.s32 %s646, 1
    %s648 = scalar_select %p645, %s646, %s647
    %p651 = pneg %p645
    %p652 = scmp.eq.s32.totalorder %s30, 3
    %p653 = por %p651, %p652
    %p654 = scmp.ne.s32.totalorder %s646, %s649
    %p655 = scmp.eq.s32.totalorder %s30, 0
    %p656 = por %p654, %p655
    %p657 = scmp.ne.s32.totalorder %s646, %s649
    %p658 = scmp.eq.s32.totalorder %s35, 3
    %p659 = por %p657, %p658
    %p660 = scmp.ne.s32.totalorder %s649, %s650
    %p661 = scmp.eq.s32.totalorder %s35, 0
    %p662 = por %p660, %p661
    %p663 = scmp.ne.s32.totalorder %s649, %s650
    %p664 = scmp.eq.s32.totalorder %s36, 3
    %p665 = por %p663, %p664
    %p667 = scmp.ne.s32.totalorder %s650, %s666
    %p668 = scmp.eq.s32.totalorder %s36, 0
    %p669 = por %p667, %p668
    %p670 = scmp.le.s32.totalorder 1, %s30
    %p671 = scmp.lt.s32.totalorder %s30, 5
    %p672 = pnand %p670, %p671
    %p673 = pneg %p672
    // Predicated region
    $region9: #{bert_classifier_forward.1} parent=5 // pred_check
      _
    $region10: #{bert_classifier_forward.1} parent=5 // pred_check_branch
      %675 = sbr.rel (%p672) target = $region12
    $region11: #{bert_classifier_forward.1} parent=5 // pred_region
      %s676 = ssub.s32 %s30, 1
      // Predicated region
      $region13: #{bert_classifier_forward.1} parent=11 // pred_check
        %p677 = pneg %p115
      $region14: #{bert_classifier_forward.1} parent=11 // pred_check_branch
        %679 = sbr.rel (%p677) target = $region16
      $region15: #{bert_classifier_forward.1} parent=11 // pred_region
        _
      $region16: #{bert_classifier_forward.1} parent=11 // pred_fallthru
        _
      // Predicated region
      $region17: #{bert_classifier_forward.1} parent=11 // pred_check
        %p680 = pneg %p136
      $region18: #{bert_classifier_forward.1} parent=11 // pred_check_branch
        %682 = sbr.rel (%p680) target = $region20
      $region19: #{bert_classifier_forward.1} parent=11 // pred_region
        _
      $region20: #{bert_classifier_forward.1} parent=11 // pred_fallthru
        _
      // Predicated region
      $region21: #{bert_classifier_forward.1} parent=11 // pred_check
        %p683 = pneg %p573
      $region22: #{bert_classifier_forward.1} parent=11 // pred_check_branch
        %685 = sbr.rel (%p683) target = $region24
      $region23: #{bert_classifier_forward.1} parent=11 // pred_region
        _
      $region24: #{bert_classifier_forward.1} parent=11 // pred_fallthru
        _
      // Predicated region
      $region25: #{bert_classifier_forward.1} parent=11 // pred_check
        %p686 = pneg %p594
      $region26: #{bert_classifier_forward.1} parent=11 // pred_check_branch
        %688 = sbr.rel (%p686) target = $region28
      $region27: #{bert_classifier_forward.1} parent=11 // pred_region
        _
      $region28: #{bert_classifier_forward.1} parent=11 // pred_fallthru
        _
      // Predicated region
      $region29: #{bert_classifier_forward.1} parent=11 // pred_check
        %p689 = pneg %p615
      $region30: #{bert_classifier_forward.1} parent=11 // pred_check_branch
        %691 = sbr.rel (%p689) target = $region32
      $region31: #{bert_classifier_forward.1} parent=11 // pred_region
        _
      $region32: #{bert_classifier_forward.1} parent=11 // pred_fallthru
        _
      // Predicated region
      $region33: #{bert_classifier_forward.1} parent=11 // pred_check
        %p692 = pneg %p636
      $region34: #{bert_classifier_forward.1} parent=11 // pred_check_branch
        %694 = sbr.rel (%p692) target = $region36
      $region35: #{bert_classifier_forward.1} parent=11 // pred_region
        _
      $region36: #{bert_classifier_forward.1} parent=11 // pred_fallthru
        _
    $region12: #{bert_classifier_forward.1} parent=5 // pred_fallthru
      _
    %p695 = scmp.lt.s32.totalorder %s30, 4
    // Predicated region
    $region37: #{bert_classifier_forward.1} parent=5 // pred_check
      %p696 = pneg %p695
    $region38: #{bert_classifier_forward.1} parent=5 // pred_check_branch
      %698 = sbr.rel (%p696) target = $region40
    $region39: #{bert_classifier_forward.1} parent=5 // pred_region
      // Predicated region
      $region41: #{bert_classifier_forward.1} parent=39 // pred_check
        %p699 = pneg %p62
      $region42: #{bert_classifier_forward.1} parent=39 // pred_check_branch
        %701 = sbr.rel (%p699) target = $region44
      $region43: #{bert_classifier_forward.1} parent=39 // pred_region
        %p702 = scmp.lt.s32.totalorder %s37, 1
        %s703 = scalar_select %p702, %s37, 1
        %s704 = smul.addr %s703, 8
        %s705 = scalar_lea.vmem %s0, %s704
      $region44: #{bert_classifier_forward.1} parent=39 // pred_fallthru
        _
      // Predicated region
      $region45: #{bert_classifier_forward.1} parent=39 // pred_check
        %p706 = pneg %p88
      $region46: #{bert_classifier_forward.1} parent=39 // pred_check_branch
        %708 = sbr.rel (%p706) target = $region48
      $region47: #{bert_classifier_forward.1} parent=39 // pred_region
        %p709 = scmp.lt.s32.totalorder %s37, 1
        %s710 = scalar_select %p709, %s37, 1
        %s711 = scalar_lea.vmem %s1, %s710
      $region48: #{bert_classifier_forward.1} parent=39 // pred_fallthru
        _
      // Predicated region
      $region49: #{bert_classifier_forward.1} parent=39 // pred_check
        %p712 = pneg %p156
      $region50: #{bert_classifier_forward.1} parent=39 // pred_check_branch
        %714 = sbr.rel (%p712) target = $region52
      $region51: #{bert_classifier_forward.1} parent=39 // pred_region
        %p715 = scmp.lt.s32.totalorder %s38, 1
        %s716 = scalar_select %p715, %s38, 1
        %s717 = smul.addr %s716, 4
        %s718 = smul.addr %s717, 4
        %s719 = scalar_lea.vmem %s4, %s718
      $region52: #{bert_classifier_forward.1} parent=39 // pred_fallthru
        _
      // Predicated region
      $region53: #{bert_classifier_forward.1} parent=39 // pred_check
        %p720 = pneg %p182
      $region54: #{bert_classifier_forward.1} parent=39 // pred_check_branch
        %722 = sbr.rel (%p720) target = $region56
      $region55: #{bert_classifier_forward.1} parent=39 // pred_region
        %p723 = scmp.lt.s32.totalorder %s38, 1
        %s724 = scalar_select %p723, %s38, 1
        %s725 = smul.addr %s724, 4
        %s726 = smul.addr %s725, 4
        %s727 = scalar_lea.vmem %s5, %s726
      $region56: #{bert_classifier_forward.1} parent=39 // pred_fallthru
        _
      // Predicated region
      $region57: #{bert_classifier_forward.1} parent=39 // pred_check
        %p728 = pneg %p208
      $region58: #{bert_classifier_forward.1} parent=39 // pred_check_branch
        %730 = sbr.rel (%p728) target = $region60
      $region59: #{bert_classifier_forward.1} parent=39 // pred_region
        %p731 = scmp.lt.s32.totalorder %s38, 1
        %s732 = scalar_select %p731, %s38, 1
        %s733 = smul.addr %s732, 4
        %s734 = smul.addr %s733, 4
        %s735 = scalar_lea.vmem %s6, %s734
      $region60: #{bert_classifier_forward.1} parent=39 // pred_fallthru
        _
      // Predicated region
      $region61: #{bert_classifier_forward.1} parent=39 // pred_check
        %p736 = pneg %p234
      $region62: #{bert_classifier_forward.1} parent=39 // pred_check_branch
        %738 = sbr.rel (%p736) target = $region64
      $region63: #{bert_classifier_forward.1} parent=39 // pred_region
        %p739 = scmp.lt.s32.totalorder %s38, 1
        %s740 = scalar_select %p739, %s38, 1
        %s741 = smul.addr %s740, 4
        %s742 = smul.addr %s741, 8
        %s743 = scalar_lea.vmem %s7, %s742
      $region64: #{bert_classifier_forward.1} parent=39 // pred_fallthru
        _
      // Predicated region
      $region65: #{bert_classifier_forward.1} parent=39 // pred_check
        %p744 = pneg %p260
      $region66: #{bert_classifier_forward.1} parent=39 // pred_check_branch
        %746 = sbr.rel (%p744) target = $region68
      $region67: #{bert_classifier_forward.1} parent=39 // pred_region
        %p747 = scmp.lt.s32.totalorder %s38, 1
        %s748 = scalar_select %p747, %s38, 1
        %s749 = smul.addr %s748, 4
        %s750 = smul.addr %s749, 8
        %s751 = scalar_lea.vmem %s8, %s750
      $region68: #{bert_classifier_forward.1} parent=39 // pred_fallthru
        _
      // Predicated region
      $region69: #{bert_classifier_forward.1} parent=39 // pred_check
        %p752 = pneg %p286
      $region70: #{bert_classifier_forward.1} parent=39 // pred_check_branch
        %754 = sbr.rel (%p752) target = $region72
      $region71: #{bert_classifier_forward.1} parent=39 // pred_region
        %p755 = scmp.lt.s32.totalorder %s38, 1
        %s756 = scalar_select %p755, %s38, 1
        %s757 = smul.addr %s756, 4
        %s758 = smul.addr %s757, 8
        %s759 = scalar_lea.vmem %s9, %s758
      $region72: #{bert_classifier_forward.1} parent=39 // pred_fallthru
        _
      // Predicated region
      $region73: #{bert_classifier_forward.1} parent=39 // pred_check
        %p760 = pneg %p312
      $region74: #{bert_classifier_forward.1} parent=39 // pred_check_branch
        %762 = sbr.rel (%p760) target = $region76
      $region75: #{bert_classifier_forward.1} parent=39 // pred_region
        %p763 = scmp.lt.s32.totalorder %s38, 1
        %s764 = scalar_select %p763, %s38, 1
        %s765 = smul.addr %s764, 4
        %s766 = smul.addr %s765, 4
        %s767 = scalar_lea.vmem %s10, %s766
      $region76: #{bert_classifier_forward.1} parent=39 // pred_fallthru
        _
      // Predicated region
      $region77: #{bert_classifier_forward.1} parent=39 // pred_check
        %p768 = pneg %p338
      $region78: #{bert_classifier_forward.1} parent=39 // pred_check_branch
        %770 = sbr.rel (%p768) target = $region80
      $region79: #{bert_classifier_forward.1} parent=39 // pred_region
        %p771 = scmp.lt.s32.totalorder %s38, 1
        %s772 = scalar_select %p771, %s38, 1
        %s773 = scalar_lea.vmem %s11, %s772
      $region80: #{bert_classifier_forward.1} parent=39 // pred_fallthru
        _
      // Predicated region
      $region81: #{bert_classifier_forward.1} parent=39 // pred_check
        %p774 = pneg %p364
      $region82: #{bert_classifier_forward.1} parent=39 // pred_check_branch
        %776 = sbr.rel (%p774) target = $region84
      $region83: #{bert_classifier_forward.1} parent=39 // pred_region
        %p777 = scmp.lt.s32.totalorder %s38, 1
        %s778 = scalar_select %p777, %s38, 1
        %s779 = scalar_lea.vmem %s12, %s778
      $region84: #{bert_classifier_forward.1} parent=39 // pred_fallthru
        _
      // Predicated region
      $region85: #{bert_classifier_forward.1} parent=39 // pred_check
        %p780 = pneg %p390
      $region86: #{bert_classifier_forward.1} parent=39 // pred_check_branch
        %782 = sbr.rel (%p780) target = $region88
      $region87: #{bert_classifier_forward.1} parent=39 // pred_region
        %p783 = scmp.lt.s32.totalorder %s38, 1
        %s784 = scalar_select %p783, %s38, 1
        %s785 = scalar_lea.vmem %s13, %s784
      $region88: #{bert_classifier_forward.1} parent=39 // pred_fallthru
        _
      // Predicated region
      $region89: #{bert_classifier_forward.1} parent=39 // pred_check
        %p786 = pneg %p416
      $region90: #{bert_classifier_forward.1} parent=39 // pred_check_branch
        %788 = sbr.rel (%p786) target = $region92
      $region91: #{bert_classifier_forward.1} parent=39 // pred_region
        %p789 = scmp.lt.s32.totalorder %s38, 1
        %s790 = scalar_select %p789, %s38, 1
        %s791 = smul.addr %s790, 4
        %s792 = smul.addr %s791, 4
        %s793 = scalar_lea.vmem %s14, %s792
      $region92: #{bert_classifier_forward.1} parent=39 // pred_fallthru
        _
      // Predicated region
      $region93: #{bert_classifier_forward.1} parent=39 // pred_check
        %p794 = pneg %p442
      $region94: #{bert_classifier_forward.1} parent=39 // pred_check_branch
        %796 = sbr.rel (%p794) target = $region96
      $region95: #{bert_classifier_forward.1} parent=39 // pred_region
        %p797 = scmp.lt.s32.totalorder %s38, 1
        %s798 = scalar_select %p797, %s38, 1
        %s799 = scalar_lea.vmem %s15, %s798
      $region96: #{bert_classifier_forward.1} parent=39 // pred_fallthru
        _
      // Predicated region
      $region97: #{bert_classifier_forward.1} parent=39 // pred_check
        %p800 = pneg %p468
      $region98: #{bert_classifier_forward.1} parent=39 // pred_check_branch
        %802 = sbr.rel (%p800) target = $region100
      $region99: #{bert_classifier_forward.1} parent=39 // pred_region
        %p803 = scmp.lt.s32.totalorder %s38, 1
        %s804 = scalar_select %p803, %s38, 1
        %s805 = smul.addr %s804, 8
        %s806 = smul.addr %s805, 4
        %s807 = scalar_lea.vmem %s16, %s806
      $region100: #{bert_classifier_forward.1} parent=39 // pred_fallthru
        _
      // Predicated region
      $region101: #{bert_classifier_forward.1} parent=39 // pred_check
        %p808 = pneg %p494
      $region102: #{bert_classifier_forward.1} parent=39 // pred_check_branch
        %810 = sbr.rel (%p808) target = $region104
      $region103: #{bert_classifier_forward.1} parent=39 // pred_region
        %p811 = scmp.lt.s32.totalorder %s38, 1
        %s812 = scalar_select %p811, %s38, 1
        %s813 = scalar_lea.vmem %s17, %s812
      $region104: #{bert_classifier_forward.1} parent=39 // pred_fallthru
        _
      // Predicated region
      $region105: #{bert_classifier_forward.1} parent=39 // pred_check
        %p814 = pneg %p520
      $region106: #{bert_classifier_forward.1} parent=39 // pred_check_branch
        %816 = sbr.rel (%p814) target = $region108
      $region107: #{bert_classifier_forward.1} parent=39 // pred_region
        %p817 = scmp.lt.s32.totalorder %s38, 1
        %s818 = scalar_select %p817, %s38, 1
        %s819 = scalar_lea.vmem %s18, %s818
      $region108: #{bert_classifier_forward.1} parent=39 // pred_fallthru
        _
      // Predicated region
      $region109: #{bert_classifier_forward.1} parent=39 // pred_check
        %p820 = pneg %p546
      $region110: #{bert_classifier_forward.1} parent=39 // pred_check_branch
        %822 = sbr.rel (%p820) target = $region112
      $region111: #{bert_classifier_forward.1} parent=39 // pred_region
        %p823 = scmp.lt.s32.totalorder %s38, 1
        %s824 = scalar_select %p823, %s38, 1
        %s825 = scalar_lea.vmem %s19, %s824
      $region112: #{bert_classifier_forward.1} parent=39 // pred_fallthru
        _
    $region40: #{bert_classifier_forward.1} parent=5 // pred_fallthru
      _
    %p826 = scmp.le.s32.totalorder 1, %s30
    %p827 = scmp.lt.s32.totalorder %s30, 5
    %p828 = pnand %p826, %p827
    %p829 = pneg %p828
    // Predicated region
    $region113: #{bert_classifier_forward.1} parent=5 // pred_check
      _
    $region114: #{bert_classifier_forward.1} parent=5 // pred_check_branch
      %831 = sbr.rel (%p828) target = $region116
    $region115: #{bert_classifier_forward.1} parent=5 // pred_region
      %s832 = ssub.s32 %s30, 1
      %p833 = scmp.lt.s32.totalorder %s39, 1
      %s834 = scalar_select %p833, %s39, 1
      %s835 = smul.addr %s834, 8
      %s836 = scalar_lea.vmem %s0, %s835
      %p837 = pneg %p68
      %p838 = pneg %p65
      %p839 = scmp.lt.s32.totalorder %s39, 1
      %s840 = scalar_select %p839, %s39, 1
      %s841 = scalar_lea.vmem %s1, %s840
      %p842 = pneg %p94
      %p843 = pneg %p91
      %p844 = pneg %p115
      %p845 = pneg %p112
      %p846 = pneg %p136
      %p847 = pneg %p133
      %p848 = scmp.lt.s32.totalorder %s40, 1
      %s849 = scalar_select %p848, %s40, 1
      %s850 = smul.addr %s849, 4
      %s851 = smul.addr %s850, 4
      %s852 = scalar_lea.vmem %s4, %s851
      %p853 = pneg %p162
      %p854 = pneg %p159
      %p855 = scmp.lt.s32.totalorder %s40, 1
      %s856 = scalar_select %p855, %s40, 1
      %s857 = smul.addr %s856, 4
      %s858 = smul.addr %s857, 4
      %s859 = scalar_lea.vmem %s5, %s858
      %p860 = pneg %p188
      %p861 = pneg %p185
      %p862 = scmp.lt.s32.totalorder %s40, 1
      %s863 = scalar_select %p862, %s40, 1
      %s864 = smul.addr %s863, 4
      %s865 = smul.addr %s864, 4
      %s866 = scalar_lea.vmem %s6, %s865
      %p867 = pneg %p214
      %p868 = pneg %p211
      %p869 = scmp.lt.s32.totalorder %s40, 1
      %s870 = scalar_select %p869, %s40, 1
      %s871 = smul.addr %s870, 4
      %s872 = smul.addr %s871, 8
      %s873 = scalar_lea.vmem %s7, %s872
      %p874 = pneg %p240
      %p875 = pneg %p237
      %p876 = scmp.lt.s32.totalorder %s40, 1
      %s877 = scalar_select %p876, %s40, 1
      %s878 = smul.addr %s877, 4
      %s879 = smul.addr %s878, 8
      %s880 = scalar_lea.vmem %s8, %s879
      %p881 = pneg %p266
      %p882 = pneg %p263
      %p883 = scmp.lt.s32.totalorder %s40, 1
      %s884 = scalar_select %p883, %s40, 1
      %s885 = smul.addr %s884, 4
      %s886 = smul.addr %s885, 8
      %s887 = scalar_lea.vmem %s9, %s886
      %p888 = pneg %p292
      %p889 = pneg %p289
      %p890 = scmp.lt.s32.totalorder %s40, 1
      %s891 = scalar_select %p890, %s40, 1
      %s892 = smul.addr %s891, 4
      %s893 = smul.addr %s892, 4
      %s894 = scalar_lea.vmem %s10, %s893
      %p895 = pneg %p318
      %p896 = pneg %p315
      %p897 = scmp.lt.s32.totalorder %s40, 1
      %s898 = scalar_select %p897, %s40, 1
      %s899 = scalar_lea.vmem %s11, %s898
      %p900 = pneg %p344
      %p901 = pneg %p341
      %p902 = scmp.lt.s32.totalorder %s40, 1
      %s903 = scalar_select %p902, %s40, 1
      %s904 = scalar_lea.vmem %s12, %s903
      %p905 = pneg %p370
      %p906 = pneg %p367
      %p907 = scmp.lt.s32.totalorder %s40, 1
      %s908 = scalar_select %p907, %s40, 1
      %s909 = scalar_lea.vmem %s13, %s908
      %p910 = pneg %p396
      %p911 = pneg %p393
      %p912 = scmp.lt.s32.totalorder %s40, 1
      %s913 = scalar_select %p912, %s40, 1
      %s914 = smul.addr %s913, 4
      %s915 = smul.addr %s914, 4
      %s916 = scalar_lea.vmem %s14, %s915
      %p917 = pneg %p422
      %p918 = pneg %p419
      %p919 = scmp.lt.s32.totalorder %s40, 1
      %s920 = scalar_select %p919, %s40, 1
      %s921 = scalar_lea.vmem %s15, %s920
      %p922 = pneg %p448
      %p923 = pneg %p445
      %p924 = scmp.lt.s32.totalorder %s40, 1
      %s925 = scalar_select %p924, %s40, 1
      %s926 = smul.addr %s925, 8
      %s927 = smul.addr %s926, 4
      %s928 = scalar_lea.vmem %s16, %s927
      %p929 = pneg %p474
      %p930 = pneg %p471
      %p931 = scmp.lt.s32.totalorder %s40, 1
      %s932 = scalar_select %p931, %s40, 1
      %s933 = scalar_lea.vmem %s17, %s932
      %p934 = pneg %p500
      %p935 = pneg %p497
      %p936 = scmp.lt.s32.totalorder %s40, 1
      %s937 = scalar_select %p936, %s40, 1
      %s938 = scalar_lea.vmem %s18, %s937
      %p939 = pneg %p526
      %p940 = pneg %p523
      %p941 = scmp.lt.s32.totalorder %s40, 1
      %s942 = scalar_select %p941, %s40, 1
      %s943 = scalar_lea.vmem %s19, %s942
      %p944 = pneg %p552
      %p945 = pneg %p549
      %p946 = pneg %p573
      %p947 = pneg %p570
      %p948 = pneg %p594
      %p949 = pneg %p591
      %p950 = pneg %p615
      %p951 = pneg %p612
      %p952 = pneg %p636
      %p953 = pneg %p633
      %p954 = pneg %p662
      %p955 = pneg %p659
      %p956 = scmp.lt.s32.totalorder %s39, 1
      %s957 = scalar_select %p956, %s39, 1
      %s958 = smul.addr %s957, 8
      %s959 = scalar_lea.vmem %s24, %s958
      %p960 = scmp.lt.s32.totalorder %s39, 1
      %s961 = scalar_select %p960, %s39, 1
      %s962 = smul.addr %s961, 8
      %s963 = scalar_lea.vmem %s0, %s962
      %p964 = scmp.lt.s32.totalorder %s39, 1
      %s965 = scalar_select %p964, %s39, 1
      %s966 = scalar_lea.vmem %s1, %s965
      %p967 = scmp.lt.s32.totalorder %s40, 1
      %s968 = scalar_select %p967, %s40, 1
      %s969 = smul.addr %s968, 4
      %s970 = smul.addr %s969, 4
      %s971 = scalar_lea.vmem %s4, %s970
      %p972 = scmp.lt.s32.totalorder %s40, 1
      %s973 = scalar_select %p972, %s40, 1
      %s974 = smul.addr %s973, 4
      %s975 = smul.addr %s974, 4
      %s976 = scalar_lea.vmem %s5, %s975
      %p977 = scmp.lt.s32.totalorder %s40, 1
      %s978 = scalar_select %p977, %s40, 1
      %s979 = smul.addr %s978, 4
      %s980 = smul.addr %s979, 4
      %s981 = scalar_lea.vmem %s6, %s980
      %p982 = scmp.lt.s32.totalorder %s40, 1
      %s983 = scalar_select %p982, %s40, 1
      %s984 = smul.addr %s983, 4
      %s985 = smul.addr %s984, 8
      %s986 = scalar_lea.vmem %s7, %s985
      %p987 = scmp.lt.s32.totalorder %s40, 1
      %s988 = scalar_select %p987, %s40, 1
      %s989 = smul.addr %s988, 4
      %s990 = smul.addr %s989, 8
      %s991 = scalar_lea.vmem %s8, %s990
      %p992 = scmp.lt.s32.totalorder %s40, 1
      %s993 = scalar_select %p992, %s40, 1
      %s994 = smul.addr %s993, 4
      %s995 = smul.addr %s994, 8
      %s996 = scalar_lea.vmem %s9, %s995
      %p997 = scmp.lt.s32.totalorder %s40, 1
      %s998 = scalar_select %p997, %s40, 1
      %s999 = smul.addr %s998, 4
      %s1000 = smul.addr %s999, 4
      %s1001 = scalar_lea.vmem %s10, %s1000
      %p1002 = scmp.lt.s32.totalorder %s40, 1
      %s1003 = scalar_select %p1002, %s40, 1
      %s1004 = scalar_lea.vmem %s11, %s1003
      %p1005 = scmp.lt.s32.totalorder %s40, 1
      %s1006 = scalar_select %p1005, %s40, 1
      %s1007 = scalar_lea.vmem %s12, %s1006
      %p1008 = scmp.lt.s32.totalorder %s40, 1
      %s1009 = scalar_select %p1008, %s40, 1
      %s1010 = scalar_lea.vmem %s13, %s1009
      %p1011 = scmp.lt.s32.totalorder %s40, 1
      %s1012 = scalar_select %p1011, %s40, 1
      %s1013 = smul.addr %s1012, 4
      %s1014 = smul.addr %s1013, 4
      %s1015 = scalar_lea.vmem %s14, %s1014
      %p1016 = scmp.lt.s32.totalorder %s40, 1
      %s1017 = scalar_select %p1016, %s40, 1
      %s1018 = scalar_lea.vmem %s15, %s1017
      %p1019 = scmp.lt.s32.totalorder %s40, 1
      %s1020 = scalar_select %p1019, %s40, 1
      %s1021 = smul.addr %s1020, 8
      %s1022 = smul.addr %s1021, 4
      %s1023 = scalar_lea.vmem %s16, %s1022
      %p1024 = scmp.lt.s32.totalorder %s40, 1
      %s1025 = scalar_select %p1024, %s40, 1
      %s1026 = scalar_lea.vmem %s17, %s1025
      %p1027 = scmp.lt.s32.totalorder %s40, 1
      %s1028 = scalar_select %p1027, %s40, 1
      %s1029 = scalar_lea.vmem %s18, %s1028
      %p1030 = scmp.lt.s32.totalorder %s40, 1
      %s1031 = scalar_select %p1030, %s40, 1
      %s1032 = scalar_lea.vmem %s19, %s1031
      %p1033 = scmp.lt.s32.totalorder %s39, 1
      %s1034 = scalar_select %p1033, %s39, 1
      %s1035 = smul.addr %s1034, 8
      %s1036 = scalar_lea.vmem %s24, %s1035
      %p1038 = scmp.eq.s32.totalorder %s40, 0
      // Predicated region
      $region117: #{bert_classifier_forward.1} parent=115 // pred_check
        %p1039 = pneg %p1038
      $region118: #{bert_classifier_forward.1} parent=115 // pred_check_branch
        %1041 = sbr.rel (%p1039) target = $region120
      $region119: #{bert_classifier_forward.1} parent=115 // pred_region
        %v1042 = vld [vmem:[%s963] sm:$0xff]
        %v1043 = vld [vmem:[%s2] sm:$0x1]
        %v1044 = vld [vmem:[%s3] sm:$0x1]
        %vm1045 = vcmask 261120
        %v1046 = vsel %vm1045, %v1042, 0.0
        %1047 = vadd.xlane.f32.xlu0 %v1046
        %v1048 = vpop.xlane.xlu0 %1047
        %v1049 = vrcp.pop 32.0
        %v1050 = vmul.f32 %v1048, %v1049
        %v1051 = vsub.f32 %v1042, %v1050
        %v1052 = vmul.f32 %v1051, %v1051
        %v1053 = vsel %vm1045, %v1052, 0.0
        %1054 = vadd.xlane.f32.xlu0 %v1053
        %v1055 = vpop.xlane.xlu0 %1054
        %v1056 = vmul.f32 %v1055, %v1049
        %v1057 = vadd.f32 %v1056, 1e-12
        %v1058 = vrsqrt.pop %v1057
        %v1059 = vmul.f32 %v1051, %v1058
        %v1061 = vlaneseq
        %v1062 = vshrl.u32 %v1061, 7
        %v1063 = vsub.s32 0, %v1062
        %v1064 = vrot.slane %v1043, %v1063
        %v1066 = vmul.f32 %v1059, %v1064
        %v1068 = vlaneseq
        %v1069 = vshrl.u32 %v1068, 7
        %v1070 = vsub.s32 0, %v1069
        %v1071 = vrot.slane %v1044, %v1070
        %v1073 = vadd.f32 %v1066, %v1071
        %1074 = vst.msk [vmem:[#allocation2] sm:$0xff] %vm1045, %v1073
      $region120: #{bert_classifier_forward.1} parent=115 // pred_fallthru
        _
      %v1075 = vld [vmem:[#allocation2] sm:$0xff]
      %v1076 = vld [vmem:[%s966] sm:$0x1]
      %v1077 = vsub.f32 1.0, %v1076
      %v1078 = vmul.f32 %v1077, -10000.0
      %1079 = vxpose.xlu0.b32.start [1/16] %v1075, 128
      %1080 = vxpose.xlu0.b32.cont [2/16] 0.0, 128
      %1081 = vxpose.xlu0.b32.cont [3/16] 0.0, 128
      %1082 = vxpose.xlu0.b32.cont [4/16] 0.0, 128
      %1083 = vxpose.xlu0.b32.cont [5/16] 0.0, 128
      %1084 = vxpose.xlu0.b32.cont [6/16] 0.0, 128
      %1085 = vxpose.xlu0.b32.cont [7/16] 0.0, 128
      %1086 = vxpose.xlu0.b32.cont [8/16] 0.0, 128
      %1087 = vxpose.xlu0.b32.cont [9/16] 0.0, 128
      %1088 = vxpose.xlu0.b32.cont [10/16] 0.0, 128
      %1089 = vxpose.xlu0.b32.cont [11/16] 0.0, 128
      %1090 = vxpose.xlu0.b32.cont [12/16] 0.0, 128
      %1091 = vxpose.xlu0.b32.cont [13/16] 0.0, 128
      %1092 = vxpose.xlu0.b32.cont [14/16] 0.0, 128
      %1093 = vxpose.xlu0.b32.cont [15/16] 0.0, 128
      %1094 = vxpose.xlu0.b32.end [16/16] 0.0, 128
      %v1095 = vpop.trf.xlu0
      %v1096 = vpop.trf.xlu0
      %v1097 = vpop.trf.xlu0
      %v1098 = vpop.trf.xlu0
      %v1099 = vpop.trf.xlu0
      %v1100 = vpop.trf.xlu0
      %v1101 = vpop.trf.xlu0
      %v1102 = vpop.trf.xlu0
      %v1103 = vpop.trf.xlu0
      %v1104 = vpop.trf.xlu0
      %v1105 = vpop.trf.xlu0
      %v1106 = vpop.trf.xlu0
      %v1107 = vpop.trf.xlu0
      %v1108 = vpop.trf.xlu0
      %v1109 = vpop.trf.xlu0
      %v1110 = vpop.trf.xlu0
      %v1111 = vpack.c.bf16 %v1096, %v1095
      %v1112 = vpack.c.bf16 %v1098, %v1097
      %v1113 = vld [vmem:[%s971] sm:$0xf]
      %v1114 = vld [vmem:[%s971 + $0x4] sm:$0xf]
      %v1115 = vld [vmem:[%s971 + $0x8] sm:$0xf]
      %v1116 = vld [vmem:[%s971 + $0xc] sm:$0xf]
      %v1117 = vld [vmem:[%s986] sm:$0xff]
      %v1118 = vld [vmem:[%s986 + $0x8] sm:$0xff]
      %v1119 = vld [vmem:[%s986 + $0x10] sm:$0xff]
      %v1120 = vld [vmem:[%s986 + $0x18] sm:$0xff]
      %1122 = vset.pattern.permute.xlu0 0
      %1123 = vperm.xlu0 %1122, %v1117
      %v1124 = vpop.permute.xlu0 %1123
      %1127 = vset.pattern.permute.xlu0 0
      %1128 = vperm.xlu0 %1127, %v1118
      %v1129 = vpop.permute.xlu0 %1128
      %1132 = vset.pattern.permute.xlu0 0
      %1133 = vperm.xlu0 %1132, %v1119
      %v1134 = vpop.permute.xlu0 %1133
      %1137 = vset.pattern.permute.xlu0 0
      %1138 = vperm.xlu0 %1137, %v1120
      %v1139 = vpop.permute.xlu0 %1138
      %v1145 = vunpack.c.l.b16 %v1113
      %v1146 = vunpack.c.l.b16 %v1114
      %v1147 = vunpack.c.l.b16 %v1115
      %v1148 = vunpack.c.l.b16 %v1116
      %v1149 = vpack.c.b16 %v1146, %v1145
      %v1150 = vpack.c.b16 %v1148, %v1147
      %vm1151 = vcmask 261120
      %v1153 = vsel %vm1151, %v1149, 0
      %v1156 = vsel %vm1151, %v1150, 0
      %1158 = vmatprep.subr.bf16.mxu0 0
      %1159 = vmatpush1.bf16.msra.mxu0 0
      %1160 = vmatprep.subr.bf16.mxu0 0
      %1161 = vmatpush1.bf16.msra.mxu0 0
      %1162 = vmatprep.subr.bf16.mxu0 0
      %1163 = vmatpush1.bf16.msra.mxu0 0
      %1164 = vmatprep.subr.bf16.mxu0 0
      %1165 = vmatpush1.bf16.msra.mxu0 0
      %1166 = vmatprep.subr.bf16.mxu0 0
      %1167 = vmatpush1.bf16.msra.mxu0 0
      %1168 = vmatprep.subr.bf16.mxu0 0
      %1169 = vmatpush1.bf16.msra.mxu0 0
      %1170 = vmatprep.subr.bf16.mxu0 0
      %1171 = vmatpush1.bf16.msra.mxu0 %v1112
      %1172 = vmatprep.subr.bf16.mxu0 0
      %1173 = vmatpush1.bf16.msra.mxu0 %v1111
      %1174 = vmatprep.subr.bf16.mxu0 0
      %1175 = vmatpush2.bf16.msra.mxu0 0
      %1176 = vmatprep.subr.bf16.mxu0 0
      %1177 = vmatpush2.bf16.msra.mxu0 0
      %1178 = vmatprep.subr.bf16.mxu0 0
      %1179 = vmatpush2.bf16.msra.mxu0 0
      %1180 = vmatprep.subr.bf16.mxu0 0
      %1181 = vmatpush2.bf16.msra.mxu0 0
      %1182 = vmatprep.subr.bf16.mxu0 0
      %1183 = vmatpush2.bf16.msra.mxu0 0
      %1184 = vmatprep.subr.bf16.mxu0 0
      %1185 = vmatpush2.bf16.msra.mxu0 0
      %1186 = vmatprep.subr.bf16.mxu0 0
      %1187 = vmatpush2.bf16.msra.mxu0 0
      %1188 = vmatprep.subr.bf16.mxu0 0
      %1189 = vmatpush2.bf16.msra.mxu0 0
      %1190 = vmatprep.mubr.bf16.mxu0 0
      %1191 = vmatmul.mubr.bf16.gmra.mxu0 %v1153
      %v1192 = vpop.f32.mrf.mxu0
      %v1193 = vadd.f32 %v1124, %v1192
      %v1194 = vpop.f32.mrf.mxu0
      %v1195 = vpop.f32.mrf.mxu0
      %v1196 = vadd.f32 %v1129, %v1195
      %v1197 = vpop.f32.mrf.mxu0
      %1198 = vmatprep.mubr.bf16.mxu0 0
      %1199 = vmatmul.mubr.bf16.gmra.mxu0 %v1156
      %v1200 = vpop.f32.mrf.mxu0
      %v1201 = vadd.f32 %v1134, %v1200
      %v1202 = vpop.f32.mrf.mxu0
      %v1203 = vpop.f32.mrf.mxu0
      %v1204 = vadd.f32 %v1139, %v1203
      %v1205 = vpop.f32.mrf.mxu0
      %1206 = vdwg.mxu0
      %v1207 = vld [vmem:[%s976] sm:$0xf]
      %v1208 = vld [vmem:[%s976 + $0x4] sm:$0xf]
      %v1209 = vld [vmem:[%s976 + $0x8] sm:$0xf]
      %v1210 = vld [vmem:[%s976 + $0xc] sm:$0xf]
      %v1211 = vld [vmem:[%s991] sm:$0xff]
      %v1212 = vld [vmem:[%s991 + $0x8] sm:$0xff]
      %v1213 = vld [vmem:[%s991 + $0x10] sm:$0xff]
      %v1214 = vld [vmem:[%s991 + $0x18] sm:$0xff]
      %1216 = vset.pattern.permute.xlu0 0
      %1217 = vperm.xlu0 %1216, %v1211
      %v1218 = vpop.permute.xlu0 %1217
      %1221 = vset.pattern.permute.xlu0 0
      %1222 = vperm.xlu0 %1221, %v1212
      %v1223 = vpop.permute.xlu0 %1222
      %1226 = vset.pattern.permute.xlu0 0
      %1227 = vperm.xlu0 %1226, %v1213
      %v1228 = vpop.permute.xlu0 %1227
      %1231 = vset.pattern.permute.xlu0 0
      %1232 = vperm.xlu0 %1231, %v1214
      %v1233 = vpop.permute.xlu0 %1232
      %v1239 = vunpack.c.l.b16 %v1207
      %v1240 = vunpack.c.l.b16 %v1208
      %v1241 = vunpack.c.l.b16 %v1209
      %v1242 = vunpack.c.l.b16 %v1210
      %v1243 = vpack.c.b16 %v1240, %v1239
      %v1244 = vpack.c.b16 %v1242, %v1241
      %v1246 = vsel %vm1151, %v1243, 0
      %v1249 = vsel %vm1151, %v1244, 0
      %1251 = vmatprep.subr.bf16.mxu0 0
      %1252 = vmatpush1.bf16.msra.mxu0 0
      %1253 = vmatprep.subr.bf16.mxu0 0
      %1254 = vmatpush1.bf16.msra.mxu0 0
      %1255 = vmatprep.subr.bf16.mxu0 0
      %1256 = vmatpush1.bf16.msra.mxu0 0
      %1257 = vmatprep.subr.bf16.mxu0 0
      %1258 = vmatpush1.bf16.msra.mxu0 0
      %1259 = vmatprep.subr.bf16.mxu0 0
      %1260 = vmatpush1.bf16.msra.mxu0 0
      %1261 = vmatprep.subr.bf16.mxu0 0
      %1262 = vmatpush1.bf16.msra.mxu0 0
      %1263 = vmatprep.subr.bf16.mxu0 0
      %1264 = vmatpush1.bf16.msra.mxu0 %v1112
      %1265 = vmatprep.subr.bf16.mxu0 0
      %1266 = vmatpush1.bf16.msra.mxu0 %v1111
      %1267 = vmatprep.subr.bf16.mxu0 0
      %1268 = vmatpush2.bf16.msra.mxu0 0
      %1269 = vmatprep.subr.bf16.mxu0 0
      %1270 = vmatpush2.bf16.msra.mxu0 0
      %1271 = vmatprep.subr.bf16.mxu0 0
      %1272 = vmatpush2.bf16.msra.mxu0 0
      %1273 = vmatprep.subr.bf16.mxu0 0
      %1274 = vmatpush2.bf16.msra.mxu0 0
      %1275 = vmatprep.subr.bf16.mxu0 0
      %1276 = vmatpush2.bf16.msra.mxu0 0
      %1277 = vmatprep.subr.bf16.mxu0 0
      %1278 = vmatpush2.bf16.msra.mxu0 0
      %1279 = vmatprep.subr.bf16.mxu0 0
      %1280 = vmatpush2.bf16.msra.mxu0 0
      %1281 = vmatprep.subr.bf16.mxu0 0
      %1282 = vmatpush2.bf16.msra.mxu0 0
      %1283 = vmatprep.mubr.bf16.mxu0 0
      %1284 = vmatmul.mubr.bf16.gmra.mxu0 %v1246
      %v1285 = vpop.f32.mrf.mxu0
      %v1286 = vadd.f32 %v1218, %v1285
      %v1287 = vpop.f32.mrf.mxu0
      %v1288 = vpop.f32.mrf.mxu0
      %v1289 = vadd.f32 %v1223, %v1288
      %v1290 = vpop.f32.mrf.mxu0
      %1291 = vmatprep.mubr.bf16.mxu0 0
      %1292 = vmatmul.mubr.bf16.gmra.mxu0 %v1249
      %v1293 = vpop.f32.mrf.mxu0
      %v1294 = vadd.f32 %v1228, %v1293
      %v1295 = vpop.f32.mrf.mxu0
      %v1296 = vpop.f32.mrf.mxu0
      %v1297 = vadd.f32 %v1233, %v1296
      %v1298 = vpop.f32.mrf.mxu0
      %1299 = vdwg.mxu0
      %v1300 = vld [vmem:[%s981] sm:$0xf]
      %v1301 = vld [vmem:[%s981 + $0x4] sm:$0xf]
      %v1302 = vld [vmem:[%s981 + $0x8] sm:$0xf]
      %v1303 = vld [vmem:[%s981 + $0xc] sm:$0xf]
      %v1304 = vld [vmem:[%s996] sm:$0xff]
      %v1305 = vld [vmem:[%s996 + $0x8] sm:$0xff]
      %v1306 = vld [vmem:[%s996 + $0x10] sm:$0xff]
      %v1307 = vld [vmem:[%s996 + $0x18] sm:$0xff]
      %1309 = vset.pattern.permute.xlu0 0
      %1310 = vperm.xlu0 %1309, %v1304
      %v1311 = vpop.permute.xlu0 %1310
      %1314 = vset.pattern.permute.xlu0 0
      %1315 = vperm.xlu0 %1314, %v1305
      %v1316 = vpop.permute.xlu0 %1315
      %1319 = vset.pattern.permute.xlu0 0
      %1320 = vperm.xlu0 %1319, %v1306
      %v1321 = vpop.permute.xlu0 %1320
      %1324 = vset.pattern.permute.xlu0 0
      %1325 = vperm.xlu0 %1324, %v1307
      %v1326 = vpop.permute.xlu0 %1325
      %v1332 = vunpack.c.l.b16 %v1300
      %v1333 = vunpack.c.l.b16 %v1301
      %v1334 = vunpack.c.l.b16 %v1302
      %v1335 = vunpack.c.l.b16 %v1303
      %v1336 = vpack.c.b16 %v1333, %v1332
      %v1337 = vpack.c.b16 %v1335, %v1334
      %v1339 = vsel %vm1151, %v1336, 0
      %v1342 = vsel %vm1151, %v1337, 0
      %1344 = vmatprep.subr.bf16.mxu0 0
      %1345 = vmatpush1.bf16.msra.mxu0 0
      %1346 = vmatprep.subr.bf16.mxu0 0
      %1347 = vmatpush1.bf16.msra.mxu0 0
      %1348 = vmatprep.subr.bf16.mxu0 0
      %1349 = vmatpush1.bf16.msra.mxu0 0
      %1350 = vmatprep.subr.bf16.mxu0 0
      %1351 = vmatpush1.bf16.msra.mxu0 0
      %1352 = vmatprep.subr.bf16.mxu0 0
      %1353 = vmatpush1.bf16.msra.mxu0 0
      %1354 = vmatprep.subr.bf16.mxu0 0
      %1355 = vmatpush1.bf16.msra.mxu0 0
      %1356 = vmatprep.subr.bf16.mxu0 0
      %1357 = vmatpush1.bf16.msra.mxu0 %v1112
      %1358 = vmatprep.subr.bf16.mxu0 0
      %1359 = vmatpush1.bf16.msra.mxu0 %v1111
      %1360 = vmatprep.subr.bf16.mxu0 0
      %1361 = vmatpush2.bf16.msra.mxu0 0
      %1362 = vmatprep.subr.bf16.mxu0 0
      %1363 = vmatpush2.bf16.msra.mxu0 0
      %1364 = vmatprep.subr.bf16.mxu0 0
      %1365 = vmatpush2.bf16.msra.mxu0 0
      %1366 = vmatprep.subr.bf16.mxu0 0
      %1367 = vmatpush2.bf16.msra.mxu0 0
      %1368 = vmatprep.subr.bf16.mxu0 0
      %1369 = vmatpush2.bf16.msra.mxu0 0
      %1370 = vmatprep.subr.bf16.mxu0 0
      %1371 = vmatpush2.bf16.msra.mxu0 0
      %1372 = vmatprep.subr.bf16.mxu0 0
      %1373 = vmatpush2.bf16.msra.mxu0 0
      %1374 = vmatprep.subr.bf16.mxu0 0
      %1375 = vmatpush2.bf16.msra.mxu0 0
      %1376 = vmatprep.mubr.bf16.mxu0 0
      %1377 = vmatmul.mubr.bf16.gmra.mxu0 %v1339
      %v1378 = vpop.f32.mrf.mxu0
      %v1379 = vadd.f32 %v1311, %v1378
      %v1380 = vpop.f32.mrf.mxu0
      %v1381 = vpop.f32.mrf.mxu0
      %v1382 = vadd.f32 %v1316, %v1381
      %v1383 = vpop.f32.mrf.mxu0
      %1384 = vmatprep.mubr.bf16.mxu0 0
      %1385 = vmatmul.mubr.bf16.gmra.mxu0 %v1342
      %v1386 = vpop.f32.mrf.mxu0
      %v1387 = vadd.f32 %v1321, %v1386
      %v1388 = vpop.f32.mrf.mxu0
      %v1389 = vpop.f32.mrf.mxu0
      %v1390 = vadd.f32 %v1326, %v1389
      %v1391 = vpop.f32.mrf.mxu0
      %1392 = vdwg.mxu0
      %1393 = vxpose.xlu0.b32.start [1/16] %v1193, 128
      %1394 = vxpose.xlu0.b32.cont [2/16] 0.0, 128
      %1395 = vxpose.xlu0.b32.cont [3/16] 0.0, 128
      %1396 = vxpose.xlu0.b32.cont [4/16] 0.0, 128
      %1397 = vxpose.xlu0.b32.cont [5/16] 0.0, 128
      %1398 = vxpose.xlu0.b32.cont [6/16] 0.0, 128
      %1399 = vxpose.xlu0.b32.cont [7/16] 0.0, 128
      %1400 = vxpose.xlu0.b32.cont [8/16] 0.0, 128
      %1401 = vxpose.xlu0.b32.cont [9/16] 0.0, 128
      %1402 = vxpose.xlu0.b32.cont [10/16] 0.0, 128
      %1403 = vxpose.xlu0.b32.cont [11/16] 0.0, 128
      %1404 = vxpose.xlu0.b32.cont [12/16] 0.0, 128
      %1405 = vxpose.xlu0.b32.cont [13/16] 0.0, 128
      %1406 = vxpose.xlu0.b32.cont [14/16] 0.0, 128
      %1407 = vxpose.xlu0.b32.cont [15/16] 0.0, 128
      %1408 = vxpose.xlu0.b32.end [16/16] 0.0, 128
      %v1409 = vpop.trf.xlu0
      %v1410 = vpop.trf.xlu0
      %v1411 = vpop.trf.xlu0
      %v1412 = vpop.trf.xlu0
      %v1413 = vpop.trf.xlu0
      %v1414 = vpop.trf.xlu0
      %v1415 = vpop.trf.xlu0
      %v1416 = vpop.trf.xlu0
      %v1417 = vpop.trf.xlu0
      %v1418 = vpop.trf.xlu0
      %v1419 = vpop.trf.xlu0
      %v1420 = vpop.trf.xlu0
      %v1421 = vpop.trf.xlu0
      %v1422 = vpop.trf.xlu0
      %v1423 = vpop.trf.xlu0
      %v1424 = vpop.trf.xlu0
      %1425 = vxpose.xlu0.b32.start [1/16] %v1196, 128
      %1426 = vxpose.xlu0.b32.cont [2/16] 0.0, 128
      %1427 = vxpose.xlu0.b32.cont [3/16] 0.0, 128
      %1428 = vxpose.xlu0.b32.cont [4/16] 0.0, 128
      %1429 = vxpose.xlu0.b32.cont [5/16] 0.0, 128
      %1430 = vxpose.xlu0.b32.cont [6/16] 0.0, 128
      %1431 = vxpose.xlu0.b32.cont [7/16] 0.0, 128
      %1432 = vxpose.xlu0.b32.cont [8/16] 0.0, 128
      %1433 = vxpose.xlu0.b32.cont [9/16] 0.0, 128
      %1434 = vxpose.xlu0.b32.cont [10/16] 0.0, 128
      %1435 = vxpose.xlu0.b32.cont [11/16] 0.0, 128
      %1436 = vxpose.xlu0.b32.cont [12/16] 0.0, 128
      %1437 = vxpose.xlu0.b32.cont [13/16] 0.0, 128
      %1438 = vxpose.xlu0.b32.cont [14/16] 0.0, 128
      %1439 = vxpose.xlu0.b32.cont [15/16] 0.0, 128
      %1440 = vxpose.xlu0.b32.end [16/16] 0.0, 128
      %v1441 = vpop.trf.xlu0
      %v1442 = vpop.trf.xlu0
      %v1443 = vpop.trf.xlu0
      %v1444 = vpop.trf.xlu0
      %v1445 = vpop.trf.xlu0
      %v1446 = vpop.trf.xlu0
      %v1447 = vpop.trf.xlu0
      %v1448 = vpop.trf.xlu0
      %v1449 = vpop.trf.xlu0
      %v1450 = vpop.trf.xlu0
      %v1451 = vpop.trf.xlu0
      %v1452 = vpop.trf.xlu0
      %v1453 = vpop.trf.xlu0
      %v1454 = vpop.trf.xlu0
      %v1455 = vpop.trf.xlu0
      %v1456 = vpop.trf.xlu0
      %1457 = vxpose.xlu0.b32.start [1/16] %v1201, 128
      %1458 = vxpose.xlu0.b32.cont [2/16] 0.0, 128
      %1459 = vxpose.xlu0.b32.cont [3/16] 0.0, 128
      %1460 = vxpose.xlu0.b32.cont [4/16] 0.0, 128
      %1461 = vxpose.xlu0.b32.cont [5/16] 0.0, 128
      %1462 = vxpose.xlu0.b32.cont [6/16] 0.0, 128
      %1463 = vxpose.xlu0.b32.cont [7/16] 0.0, 128
      %1464 = vxpose.xlu0.b32.cont [8/16] 0.0, 128
      %1465 = vxpose.xlu0.b32.cont [9/16] 0.0, 128
      %1466 = vxpose.xlu0.b32.cont [10/16] 0.0, 128
      %1467 = vxpose.xlu0.b32.cont [11/16] 0.0, 128
      %1468 = vxpose.xlu0.b32.cont [12/16] 0.0, 128
      %1469 = vxpose.xlu0.b32.cont [13/16] 0.0, 128
      %1470 = vxpose.xlu0.b32.cont [14/16] 0.0, 128
      %1471 = vxpose.xlu0.b32.cont [15/16] 0.0, 128
      %1472 = vxpose.xlu0.b32.end [16/16] 0.0, 128
      %v1473 = vpop.trf.xlu0
      %v1474 = vpop.trf.xlu0
      %v1475 = vpop.trf.xlu0
      %v1476 = vpop.trf.xlu0
      %v1477 = vpop.trf.xlu0
      %v1478 = vpop.trf.xlu0
      %v1479 = vpop.trf.xlu0
      %v1480 = vpop.trf.xlu0
      %v1481 = vpop.trf.xlu0
      %v1482 = vpop.trf.xlu0
      %v1483 = vpop.trf.xlu0
      %v1484 = vpop.trf.xlu0
      %v1485 = vpop.trf.xlu0
      %v1486 = vpop.trf.xlu0
      %v1487 = vpop.trf.xlu0
      %v1488 = vpop.trf.xlu0
      %1489 = vxpose.xlu0.b32.start [1/16] %v1204, 128
      %1490 = vxpose.xlu0.b32.cont [2/16] 0.0, 128
      %1491 = vxpose.xlu0.b32.cont [3/16] 0.0, 128
      %1492 = vxpose.xlu0.b32.cont [4/16] 0.0, 128
      %1493 = vxpose.xlu0.b32.cont [5/16] 0.0, 128
      %1494 = vxpose.xlu0.b32.cont [6/16] 0.0, 128
      %1495 = vxpose.xlu0.b32.cont [7/16] 0.0, 128
      %1496 = vxpose.xlu0.b32.cont [8/16] 0.0, 128
      %1497 = vxpose.xlu0.b32.cont [9/16] 0.0, 128
      %1498 = vxpose.xlu0.b32.cont [10/16] 0.0, 128
      %1499 = vxpose.xlu0.b32.cont [11/16] 0.0, 128
      %1500 = vxpose.xlu0.b32.cont [12/16] 0.0, 128
      %1501 = vxpose.xlu0.b32.cont [13/16] 0.0, 128
      %1502 = vxpose.xlu0.b32.cont [14/16] 0.0, 128
      %1503 = vxpose.xlu0.b32.cont [15/16] 0.0, 128
      %1504 = vxpose.xlu0.b32.end [16/16] 0.0, 128
      %v1505 = vpop.trf.xlu0
      %v1506 = vpop.trf.xlu0
      %v1507 = vpop.trf.xlu0
      %v1508 = vpop.trf.xlu0
      %v1509 = vpop.trf.xlu0
      %v1510 = vpop.trf.xlu0
      %v1511 = vpop.trf.xlu0
      %v1512 = vpop.trf.xlu0
      %v1513 = vpop.trf.xlu0
      %v1514 = vpop.trf.xlu0
      %v1515 = vpop.trf.xlu0
      %v1516 = vpop.trf.xlu0
      %v1517 = vpop.trf.xlu0
      %v1518 = vpop.trf.xlu0
      %v1519 = vpop.trf.xlu0
      %v1520 = vpop.trf.xlu0
      %v1521 = vpack.c.bf16 %v1409, %v1409
      %v1522 = vpack.c.bf16 %v1441, %v1441
      %v1523 = vpack.c.bf16 %v1473, %v1473
      %v1524 = vpack.c.bf16 %v1505, %v1505
      %1525 = vxpose.xlu0.b32.start [1/16] %v1379, 128
      %1526 = vxpose.xlu0.b32.cont [2/16] 0.0, 128
      %1527 = vxpose.xlu0.b32.cont [3/16] 0.0, 128
      %1528 = vxpose.xlu0.b32.cont [4/16] 0.0, 128
      %1529 = vxpose.xlu0.b32.cont [5/16] 0.0, 128
      %1530 = vxpose.xlu0.b32.cont [6/16] 0.0, 128
      %1531 = vxpose.xlu0.b32.cont [7/16] 0.0, 128
      %1532 = vxpose.xlu0.b32.cont [8/16] 0.0, 128
      %1533 = vxpose.xlu0.b32.cont [9/16] 0.0, 128
      %1534 = vxpose.xlu0.b32.cont [10/16] 0.0, 128
      %1535 = vxpose.xlu0.b32.cont [11/16] 0.0, 128
      %1536 = vxpose.xlu0.b32.cont [12/16] 0.0, 128
      %1537 = vxpose.xlu0.b32.cont [13/16] 0.0, 128
      %1538 = vxpose.xlu0.b32.cont [14/16] 0.0, 128
      %1539 = vxpose.xlu0.b32.cont [15/16] 0.0, 128
      %1540 = vxpose.xlu0.b32.end [16/16] 0.0, 128
      %v1541 = vpop.trf.xlu0
      %v1542 = vpop.trf.xlu0
      %v1543 = vpop.trf.xlu0
      %v1544 = vpop.trf.xlu0
      %v1545 = vpop.trf.xlu0
      %v1546 = vpop.trf.xlu0
      %v1547 = vpop.trf.xlu0
      %v1548 = vpop.trf.xlu0
      %v1549 = vpop.trf.xlu0
      %v1550 = vpop.trf.xlu0
      %v1551 = vpop.trf.xlu0
      %v1552 = vpop.trf.xlu0
      %v1553 = vpop.trf.xlu0
      %v1554 = vpop.trf.xlu0
      %v1555 = vpop.trf.xlu0
      %v1556 = vpop.trf.xlu0
      %1557 = vxpose.xlu0.b32.start [1/16] %v1382, 128
      %1558 = vxpose.xlu0.b32.cont [2/16] 0.0, 128
      %1559 = vxpose.xlu0.b32.cont [3/16] 0.0, 128
      %1560 = vxpose.xlu0.b32.cont [4/16] 0.0, 128
      %1561 = vxpose.xlu0.b32.cont [5/16] 0.0, 128
      %1562 = vxpose.xlu0.b32.cont [6/16] 0.0, 128
      %1563 = vxpose.xlu0.b32.cont [7/16] 0.0, 128
      %1564 = vxpose.xlu0.b32.cont [8/16] 0.0, 128
      %1565 = vxpose.xlu0.b32.cont [9/16] 0.0, 128
      %1566 = vxpose.xlu0.b32.cont [10/16] 0.0, 128
      %1567 = vxpose.xlu0.b32.cont [11/16] 0.0, 128
      %1568 = vxpose.xlu0.b32.cont [12/16] 0.0, 128
      %1569 = vxpose.xlu0.b32.cont [13/16] 0.0, 128
      %1570 = vxpose.xlu0.b32.cont [14/16] 0.0, 128
      %1571 = vxpose.xlu0.b32.cont [15/16] 0.0, 128
      %1572 = vxpose.xlu0.b32.end [16/16] 0.0, 128
      %v1573 = vpop.trf.xlu0
      %v1574 = vpop.trf.xlu0
      %v1575 = vpop.trf.xlu0
      %v1576 = vpop.trf.xlu0
      %v1577 = vpop.trf.xlu0
      %v1578 = vpop.trf.xlu0
      %v1579 = vpop.trf.xlu0
      %v1580 = vpop.trf.xlu0
      %v1581 = vpop.trf.xlu0
      %v1582 = vpop.trf.xlu0
      %v1583 = vpop.trf.xlu0
      %v1584 = vpop.trf.xlu0
      %v1585 = vpop.trf.xlu0
      %v1586 = vpop.trf.xlu0
      %v1587 = vpop.trf.xlu0
      %v1588 = vpop.trf.xlu0
      %1589 = vxpose.xlu0.b32.start [1/16] %v1387, 128
      %1590 = vxpose.xlu0.b32.cont [2/16] 0.0, 128
      %1591 = vxpose.xlu0.b32.cont [3/16] 0.0, 128
      %1592 = vxpose.xlu0.b32.cont [4/16] 0.0, 128
      %1593 = vxpose.xlu0.b32.cont [5/16] 0.0, 128
      %1594 = vxpose.xlu0.b32.cont [6/16] 0.0, 128
      %1595 = vxpose.xlu0.b32.cont [7/16] 0.0, 128
      %1596 = vxpose.xlu0.b32.cont [8/16] 0.0, 128
      %1597 = vxpose.xlu0.b32.cont [9/16] 0.0, 128
      %1598 = vxpose.xlu0.b32.cont [10/16] 0.0, 128
      %1599 = vxpose.xlu0.b32.cont [11/16] 0.0, 128
      %1600 = vxpose.xlu0.b32.cont [12/16] 0.0, 128
      %1601 = vxpose.xlu0.b32.cont [13/16] 0.0, 128
      %1602 = vxpose.xlu0.b32.cont [14/16] 0.0, 128
      %1603 = vxpose.xlu0.b32.cont [15/16] 0.0, 128
      %1604 = vxpose.xlu0.b32.end [16/16] 0.0, 128
      %v1605 = vpop.trf.xlu0
      %v1606 = vpop.trf.xlu0
      %v1607 = vpop.trf.xlu0
      %v1608 = vpop.trf.xlu0
      %v1609 = vpop.trf.xlu0
      %v1610 = vpop.trf.xlu0
      %v1611 = vpop.trf.xlu0
      %v1612 = vpop.trf.xlu0
      %v1613 = vpop.trf.xlu0
      %v1614 = vpop.trf.xlu0
      %v1615 = vpop.trf.xlu0
      %v1616 = vpop.trf.xlu0
      %v1617 = vpop.trf.xlu0
      %v1618 = vpop.trf.xlu0
      %v1619 = vpop.trf.xlu0
      %v1620 = vpop.trf.xlu0
      %1621 = vxpose.xlu0.b32.start [1/16] %v1390, 128
      %1622 = vxpose.xlu0.b32.cont [2/16] 0.0, 128
      %1623 = vxpose.xlu0.b32.cont [3/16] 0.0, 128
      %1624 = vxpose.xlu0.b32.cont [4/16] 0.0, 128
      %1625 = vxpose.xlu0.b32.cont [5/16] 0.0, 128
      %1626 = vxpose.xlu0.b32.cont [6/16] 0.0, 128
      %1627 = vxpose.xlu0.b32.cont [7/16] 0.0, 128
      %1628 = vxpose.xlu0.b32.cont [8/16] 0.0, 128
      %1629 = vxpose.xlu0.b32.cont [9/16] 0.0, 128
      %1630 = vxpose.xlu0.b32.cont [10/16] 0.0, 128
      %1631 = vxpose.xlu0.b32.cont [11/16] 0.0, 128
      %1632 = vxpose.xlu0.b32.cont [12/16] 0.0, 128
      %1633 = vxpose.xlu0.b32.cont [13/16] 0.0, 128
      %1634 = vxpose.xlu0.b32.cont [14/16] 0.0, 128
      %1635 = vxpose.xlu0.b32.cont [15/16] 0.0, 128
      %1636 = vxpose.xlu0.b32.end [16/16] 0.0, 128
      %v1637 = vpop.trf.xlu0
      %v1638 = vpop.trf.xlu0
      %v1639 = vpop.trf.xlu0
      %v1640 = vpop.trf.xlu0
      %v1641 = vpop.trf.xlu0
      %v1642 = vpop.trf.xlu0
      %v1643 = vpop.trf.xlu0
      %v1644 = vpop.trf.xlu0
      %v1645 = vpop.trf.xlu0
      %v1646 = vpop.trf.xlu0
      %v1647 = vpop.trf.xlu0
      %v1648 = vpop.trf.xlu0
      %v1649 = vpop.trf.xlu0
      %v1650 = vpop.trf.xlu0
      %v1651 = vpop.trf.xlu0
      %v1652 = vpop.trf.xlu0
      %v1653 = vpack.c.bf16 %v1541, %v1541
      %v1654 = vpack.c.bf16 %v1573, %v1573
      %v1655 = vpack.c.bf16 %v1605, %v1605
      %v1656 = vpack.c.bf16 %v1637, %v1637
      %v1657 = vpack.c.bf16 %v1286, %v1286
      %v1658 = vpack.c.bf16 %v1289, %v1289
      %v1659 = vpack.c.bf16 %v1294, %v1294
      %v1660 = vpack.c.bf16 %v1297, %v1297
      %vm1661 = vcmask 64512
      %v1663 = vsel %vm1661, %v1521, 0
      %vm1665 = vcmask 1043456
      %v1667 = vsel %vm1665, %v1657, 0
      %1669 = vmatprep.subr.bf16.mxu0 0
      %1670 = vmatpush1.bf16.msra.mxu0 0
      %1671 = vmatprep.subr.bf16.mxu0 0
      %1672 = vmatpush1.bf16.msra.mxu0 0
      %1673 = vmatprep.subr.bf16.mxu0 0
      %1674 = vmatpush1.bf16.msra.mxu0 0
      %1675 = vmatprep.subr.bf16.mxu0 0
      %1676 = vmatpush1.bf16.msra.mxu0 0
      %1677 = vmatprep.subr.bf16.mxu0 0
      %1678 = vmatpush1.bf16.msra.mxu0 0
      %1679 = vmatprep.subr.bf16.mxu0 0
      %1680 = vmatpush1.bf16.msra.mxu0 0
      %1681 = vmatprep.subr.bf16.mxu0 0
      %1682 = vmatpush1.bf16.msra.mxu0 0
      %1683 = vmatprep.subr.bf16.mxu0 0
      %1684 = vmatpush1.bf16.msra.mxu0 %v1667
      %1685 = vmatprep.subr.bf16.mxu0 0
      %1686 = vmatpush2.bf16.msra.mxu0 0
      %1687 = vmatprep.subr.bf16.mxu0 0
      %1688 = vmatpush2.bf16.msra.mxu0 0
      %1689 = vmatprep.subr.bf16.mxu0 0
      %1690 = vmatpush2.bf16.msra.mxu0 0
      %1691 = vmatprep.subr.bf16.mxu0 0
      %1692 = vmatpush2.bf16.msra.mxu0 0
      %1693 = vmatprep.subr.bf16.mxu0 0
      %1694 = vmatpush2.bf16.msra.mxu0 0
      %1695 = vmatprep.subr.bf16.mxu0 0
      %1696 = vmatpush2.bf16.msra.mxu0 0
      %1697 = vmatprep.subr.bf16.mxu0 0
      %1698 = vmatpush2.bf16.msra.mxu0 0
      %1699 = vmatprep.subr.bf16.mxu0 0
      %1700 = vmatpush2.bf16.msra.mxu0 0
      %1701 = vmatprep.mubr.bf16.mxu0 0
      %1702 = vmatmul.mubr.bf16.gmra.mxu0 %v1663
      %v1703 = vpop.f32.mrf.mxu0
      %v1704 = vadd.f32 0.0, %v1703
      %v1705 = vpop.f32.mrf.mxu0
      %v1706 = vpop.f32.mrf.mxu0
      %v1707 = vpop.f32.mrf.mxu0
      %1708 = vdwg.mxu0
      %v1710 = vsel %vm1661, %v1522, 0
      %v1713 = vsel %vm1665, %v1658, 0
      %1715 = vmatprep.subr.bf16.mxu0 0
      %1716 = vmatpush1.bf16.msra.mxu0 0
      %1717 = vmatprep.subr.bf16.mxu0 0
      %1718 = vmatpush1.bf16.msra.mxu0 0
      %1719 = vmatprep.subr.bf16.mxu0 0
      %1720 = vmatpush1.bf16.msra.mxu0 0
      %1721 = vmatprep.subr.bf16.mxu0 0
      %1722 = vmatpush1.bf16.msra.mxu0 0
      %1723 = vmatprep.subr.bf16.mxu0 0
      %1724 = vmatpush1.bf16.msra.mxu0 0
      %1725 = vmatprep.subr.bf16.mxu0 0
      %1726 = vmatpush1.bf16.msra.mxu0 0
      %1727 = vmatprep.subr.bf16.mxu0 0
      %1728 = vmatpush1.bf16.msra.mxu0 0
      %1729 = vmatprep.subr.bf16.mxu0 0
      %1730 = vmatpush1.bf16.msra.mxu0 %v1713
      %1731 = vmatprep.subr.bf16.mxu0 0
      %1732 = vmatpush2.bf16.msra.mxu0 0
      %1733 = vmatprep.subr.bf16.mxu0 0
      %1734 = vmatpush2.bf16.msra.mxu0 0
      %1735 = vmatprep.subr.bf16.mxu0 0
      %1736 = vmatpush2.bf16.msra.mxu0 0
      %1737 = vmatprep.subr.bf16.mxu0 0
      %1738 = vmatpush2.bf16.msra.mxu0 0
      %1739 = vmatprep.subr.bf16.mxu0 0
      %1740 = vmatpush2.bf16.msra.mxu0 0
      %1741 = vmatprep.subr.bf16.mxu0 0
      %1742 = vmatpush2.bf16.msra.mxu0 0
      %1743 = vmatprep.subr.bf16.mxu0 0
      %1744 = vmatpush2.bf16.msra.mxu0 0
      %1745 = vmatprep.subr.bf16.mxu0 0
      %1746 = vmatpush2.bf16.msra.mxu0 0
      %1747 = vmatprep.mubr.bf16.mxu0 0
      %1748 = vmatmul.mubr.bf16.gmra.mxu0 %v1710
      %v1749 = vpop.f32.mrf.mxu0
      %v1750 = vadd.f32 0.0, %v1749
      %v1751 = vpop.f32.mrf.mxu0
      %v1752 = vpop.f32.mrf.mxu0
      %v1753 = vpop.f32.mrf.mxu0
      %1754 = vdwg.mxu0
      %v1756 = vsel %vm1661, %v1523, 0
      %v1759 = vsel %vm1665, %v1659, 0
      %1761 = vmatprep.subr.bf16.mxu0 0
      %1762 = vmatpush1.bf16.msra.mxu0 0
      %1763 = vmatprep.subr.bf16.mxu0 0
      %1764 = vmatpush1.bf16.msra.mxu0 0
      %1765 = vmatprep.subr.bf16.mxu0 0
      %1766 = vmatpush1.bf16.msra.mxu0 0
      %1767 = vmatprep.subr.bf16.mxu0 0
      %1768 = vmatpush1.bf16.msra.mxu0 0
      %1769 = vmatprep.subr.bf16.mxu0 0
      %1770 = vmatpush1.bf16.msra.mxu0 0
      %1771 = vmatprep.subr.bf16.mxu0 0
      %1772 = vmatpush1.bf16.msra.mxu0 0
      %1773 = vmatprep.subr.bf16.mxu0 0
      %1774 = vmatpush1.bf16.msra.mxu0 0
      %1775 = vmatprep.subr.bf16.mxu0 0
      %1776 = vmatpush1.bf16.msra.mxu0 %v1759
      %1777 = vmatprep.subr.bf16.mxu0 0
      %1778 = vmatpush2.bf16.msra.mxu0 0
      %1779 = vmatprep.subr.bf16.mxu0 0
      %1780 = vmatpush2.bf16.msra.mxu0 0
      %1781 = vmatprep.subr.bf16.mxu0 0
      %1782 = vmatpush2.bf16.msra.mxu0 0
      %1783 = vmatprep.subr.bf16.mxu0 0
      %1784 = vmatpush2.bf16.msra.mxu0 0
      %1785 = vmatprep.subr.bf16.mxu0 0
      %1786 = vmatpush2.bf16.msra.mxu0 0
      %1787 = vmatprep.subr.bf16.mxu0 0
      %1788 = vmatpush2.bf16.msra.mxu0 0
      %1789 = vmatprep.subr.bf16.mxu0 0
      %1790 = vmatpush2.bf16.msra.mxu0 0
      %1791 = vmatprep.subr.bf16.mxu0 0
      %1792 = vmatpush2.bf16.msra.mxu0 0
      %1793 = vmatprep.mubr.bf16.mxu0 0
      %1794 = vmatmul.mubr.bf16.gmra.mxu0 %v1756
      %v1795 = vpop.f32.mrf.mxu0
      %v1796 = vadd.f32 0.0, %v1795
      %v1797 = vpop.f32.mrf.mxu0
      %v1798 = vpop.f32.mrf.mxu0
      %v1799 = vpop.f32.mrf.mxu0
      %1800 = vdwg.mxu0
      %v1802 = vsel %vm1661, %v1524, 0
      %v1805 = vsel %vm1665, %v1660, 0
      %1807 = vmatprep.subr.bf16.mxu0 0
      %1808 = vmatpush1.bf16.msra.mxu0 0
      %1809 = vmatprep.subr.bf16.mxu0 0
      %1810 = vmatpush1.bf16.msra.mxu0 0
      %1811 = vmatprep.subr.bf16.mxu0 0
      %1812 = vmatpush1.bf16.msra.mxu0 0
      %1813 = vmatprep.subr.bf16.mxu0 0
      %1814 = vmatpush1.bf16.msra.mxu0 0
      %1815 = vmatprep.subr.bf16.mxu0 0
      %1816 = vmatpush1.bf16.msra.mxu0 0
      %1817 = vmatprep.subr.bf16.mxu0 0
      %1818 = vmatpush1.bf16.msra.mxu0 0
      %1819 = vmatprep.subr.bf16.mxu0 0
      %1820 = vmatpush1.bf16.msra.mxu0 0
      %1821 = vmatprep.subr.bf16.mxu0 0
      %1822 = vmatpush1.bf16.msra.mxu0 %v1805
      %1823 = vmatprep.subr.bf16.mxu0 0
      %1824 = vmatpush2.bf16.msra.mxu0 0
      %1825 = vmatprep.subr.bf16.mxu0 0
      %1826 = vmatpush2.bf16.msra.mxu0 0
      %1827 = vmatprep.subr.bf16.mxu0 0
      %1828 = vmatpush2.bf16.msra.mxu0 0
      %1829 = vmatprep.subr.bf16.mxu0 0
      %1830 = vmatpush2.bf16.msra.mxu0 0
      %1831 = vmatprep.subr.bf16.mxu0 0
      %1832 = vmatpush2.bf16.msra.mxu0 0
      %1833 = vmatprep.subr.bf16.mxu0 0
      %1834 = vmatpush2.bf16.msra.mxu0 0
      %1835 = vmatprep.subr.bf16.mxu0 0
      %1836 = vmatpush2.bf16.msra.mxu0 0
      %1837 = vmatprep.subr.bf16.mxu0 0
      %1838 = vmatpush2.bf16.msra.mxu0 0
      %1839 = vmatprep.mubr.bf16.mxu0 0
      %1840 = vmatmul.mubr.bf16.gmra.mxu0 %v1802
      %v1841 = vpop.f32.mrf.mxu0
      %v1842 = vadd.f32 0.0, %v1841
      %v1843 = vpop.f32.mrf.mxu0
      %v1844 = vpop.f32.mrf.mxu0
      %v1845 = vpop.f32.mrf.mxu0
      %1846 = vdwg.mxu0
      %v1847 = vmul.f32 %v1704, 0.35355338
      %v1848 = vmul.f32 %v1750, 0.35355338
      %v1849 = vmul.f32 %v1796, 0.35355338
      %v1850 = vmul.f32 %v1842, 0.35355338
      %v1852 = vlaneseq
      %v1853 = vshrl.u32 %v1852, 7
      %v1854 = vsub.s32 0, %v1853
      %v1855 = vrot.slane %v1078, %v1854
      %v1857 = vadd.f32 %v1847, %v1855
      %v1858 = vadd.f32 %v1848, %v1855
      %v1859 = vadd.f32 %v1849, %v1855
      %v1860 = vadd.f32 %v1850, %v1855
      %v1861 = vsel %vm1661, %v1857, -inf
      %1862 = vmax.xlane.f32.xlu0 %v1861
      %v1863 = vpop.xlane.xlu0 %1862
      %v1864 = vsel %vm1661, %v1858, -inf
      %1865 = vmax.xlane.f32.xlu0 %v1864
      %v1866 = vpop.xlane.xlu0 %1865
      %v1867 = vsel %vm1661, %v1859, -inf
      %1868 = vmax.xlane.f32.xlu0 %v1867
      %v1869 = vpop.xlane.xlu0 %1868
      %v1870 = vsel %vm1661, %v1860, -inf
      %1871 = vmax.xlane.f32.xlu0 %v1870
      %v1872 = vpop.xlane.xlu0 %1871
      %v1873 = vsub.f32 %v1857, %v1863
      %v1874 = vsub.f32 %v1858, %v1866
      %v1875 = vsub.f32 %v1859, %v1869
      %v1876 = vsub.f32 %v1860, %v1872
      %v1877 = vmul.f32 %v1873, 1.442695
      %v1878 = vpow.pop %v1877
      %v1879 = vmul.f32 %v1874, 1.442695
      %v1880 = vpow.pop %v1879
      %v1881 = vmul.f32 %v1875, 1.442695
      %v1882 = vpow.pop %v1881
      %v1883 = vmul.f32 %v1876, 1.442695
      %v1884 = vpow.pop %v1883
      %v1885 = vsel %vm1661, %v1878, 0.0
      %1886 = vadd.xlane.f32.xlu0 %v1885
      %v1887 = vpop.xlane.xlu0 %1886
      %v1888 = vsel %vm1661, %v1880, 0.0
      %1889 = vadd.xlane.f32.xlu0 %v1888
      %v1890 = vpop.xlane.xlu0 %1889
      %v1891 = vsel %vm1661, %v1882, 0.0
      %1892 = vadd.xlane.f32.xlu0 %v1891
      %v1893 = vpop.xlane.xlu0 %1892
      %v1894 = vsel %vm1661, %v1884, 0.0
      %1895 = vadd.xlane.f32.xlu0 %v1894
      %v1896 = vpop.xlane.xlu0 %1895
      %v1897 = vrcp.pop %v1887
      %v1898 = vmul.f32 %v1878, %v1897
      %v1899 = vrcp.pop %v1890
      %v1900 = vmul.f32 %v1880, %v1899
      %v1901 = vrcp.pop %v1893
      %v1902 = vmul.f32 %v1882, %v1901
      %v1903 = vrcp.pop %v1896
      %v1904 = vmul.f32 %v1884, %v1903
      %v1905 = vpack.c.bf16 %v1898, %v1898
      %v1906 = vpack.c.bf16 %v1900, %v1900
      %v1907 = vpack.c.bf16 %v1902, %v1902
      %v1908 = vpack.c.bf16 %v1904, %v1904
      %v1910 = vsel %vm1661, %v1905, 0
      %v1913 = vsel %vm1665, %v1653, 0
      %1915 = vmatprep.subr.bf16.mxu0 0
      %1916 = vmatpush1.bf16.msra.mxu0 0
      %1917 = vmatprep.subr.bf16.mxu0 0
      %1918 = vmatpush1.bf16.msra.mxu0 0
      %1919 = vmatprep.subr.bf16.mxu0 0
      %1920 = vmatpush1.bf16.msra.mxu0 0
      %1921 = vmatprep.subr.bf16.mxu0 0
      %1922 = vmatpush1.bf16.msra.mxu0 0
      %1923 = vmatprep.subr.bf16.mxu0 0
      %1924 = vmatpush1.bf16.msra.mxu0 0
      %1925 = vmatprep.subr.bf16.mxu0 0
      %1926 = vmatpush1.bf16.msra.mxu0 0
      %1927 = vmatprep.subr.bf16.mxu0 0
      %1928 = vmatpush1.bf16.msra.mxu0 0
      %1929 = vmatprep.subr.bf16.mxu0 0
      %1930 = vmatpush1.bf16.msra.mxu0 %v1913
      %1931 = vmatprep.subr.bf16.mxu0 0
      %1932 = vmatpush2.bf16.msra.mxu0 0
      %1933 = vmatprep.subr.bf16.mxu0 0
      %1934 = vmatpush2.bf16.msra.mxu0 0
      %1935 = vmatprep.subr.bf16.mxu0 0
      %1936 = vmatpush2.bf16.msra.mxu0 0
      %1937 = vmatprep.subr.bf16.mxu0 0
      %1938 = vmatpush2.bf16.msra.mxu0 0
      %1939 = vmatprep.subr.bf16.mxu0 0
      %1940 = vmatpush2.bf16.msra.mxu0 0
      %1941 = vmatprep.subr.bf16.mxu0 0
      %1942 = vmatpush2.bf16.msra.mxu0 0
      %1943 = vmatprep.subr.bf16.mxu0 0
      %1944 = vmatpush2.bf16.msra.mxu0 0
      %1945 = vmatprep.subr.bf16.mxu0 0
      %1946 = vmatpush2.bf16.msra.mxu0 0
      %1947 = vmatprep.mubr.bf16.mxu0 0
      %1948 = vmatmul.mubr.bf16.gmra.mxu0 %v1910
      %v1949 = vpop.f32.mrf.mxu0
      %v1950 = vadd.f32 0.0, %v1949
      %v1951 = vpop.f32.mrf.mxu0
      %v1952 = vpop.f32.mrf.mxu0
      %v1953 = vpop.f32.mrf.mxu0
      %1954 = vdwg.mxu0
      %v1956 = vsel %vm1661, %v1906, 0
      %v1959 = vsel %vm1665, %v1654, 0
      %1961 = vmatprep.subr.bf16.mxu0 0
      %1962 = vmatpush1.bf16.msra.mxu0 0
      %1963 = vmatprep.subr.bf16.mxu0 0
      %1964 = vmatpush1.bf16.msra.mxu0 0
      %1965 = vmatprep.subr.bf16.mxu0 0
      %1966 = vmatpush1.bf16.msra.mxu0 0
      %1967 = vmatprep.subr.bf16.mxu0 0
      %1968 = vmatpush1.bf16.msra.mxu0 0
      %1969 = vmatprep.subr.bf16.mxu0 0
      %1970 = vmatpush1.bf16.msra.mxu0 0
      %1971 = vmatprep.subr.bf16.mxu0 0
      %1972 = vmatpush1.bf16.msra.mxu0 0
      %1973 = vmatprep.subr.bf16.mxu0 0
      %1974 = vmatpush1.bf16.msra.mxu0 0
      %1975 = vmatprep.subr.bf16.mxu0 0
      %1976 = vmatpush1.bf16.msra.mxu0 %v1959
      %1977 = vmatprep.subr.bf16.mxu0 0
      %1978 = vmatpush2.bf16.msra.mxu0 0
      %1979 = vmatprep.subr.bf16.mxu0 0
      %1980 = vmatpush2.bf16.msra.mxu0 0
      %1981 = vmatprep.subr.bf16.mxu0 0
      %1982 = vmatpush2.bf16.msra.mxu0 0
      %1983 = vmatprep.subr.bf16.mxu0 0
      %1984 = vmatpush2.bf16.msra.mxu0 0
      %1985 = vmatprep.subr.bf16.mxu0 0
      %1986 = vmatpush2.bf16.msra.mxu0 0
      %1987 = vmatprep.subr.bf16.mxu0 0
      %1988 = vmatpush2.bf16.msra.mxu0 0
      %1989 = vmatprep.subr.bf16.mxu0 0
      %1990 = vmatpush2.bf16.msra.mxu0 0
      %1991 = vmatprep.subr.bf16.mxu0 0
      %1992 = vmatpush2.bf16.msra.mxu0 0
      %1993 = vmatprep.mubr.bf16.mxu0 0
      %1994 = vmatmul.mubr.bf16.gmra.mxu0 %v1956
      %v1995 = vpop.f32.mrf.mxu0
      %v1996 = vadd.f32 0.0, %v1995
      %v1997 = vpop.f32.mrf.mxu0
      %v1998 = vpop.f32.mrf.mxu0
      %v1999 = vpop.f32.mrf.mxu0
      %2000 = vdwg.mxu0
      %v2002 = vsel %vm1661, %v1907, 0
      %v2005 = vsel %vm1665, %v1655, 0
      %2007 = vmatprep.subr.bf16.mxu0 0
      %2008 = vmatpush1.bf16.msra.mxu0 0
      %2009 = vmatprep.subr.bf16.mxu0 0
      %2010 = vmatpush1.bf16.msra.mxu0 0
      %2011 = vmatprep.subr.bf16.mxu0 0
      %2012 = vmatpush1.bf16.msra.mxu0 0
      %2013 = vmatprep.subr.bf16.mxu0 0
      %2014 = vmatpush1.bf16.msra.mxu0 0
      %2015 = vmatprep.subr.bf16.mxu0 0
      %2016 = vmatpush1.bf16.msra.mxu0 0
      %2017 = vmatprep.subr.bf16.mxu0 0
      %2018 = vmatpush1.bf16.msra.mxu0 0
      %2019 = vmatprep.subr.bf16.mxu0 0
      %2020 = vmatpush1.bf16.msra.mxu0 0
      %2021 = vmatprep.subr.bf16.mxu0 0
      %2022 = vmatpush1.bf16.msra.mxu0 %v2005
      %2023 = vmatprep.subr.bf16.mxu0 0
      %2024 = vmatpush2.bf16.msra.mxu0 0
      %2025 = vmatprep.subr.bf16.mxu0 0
      %2026 = vmatpush2.bf16.msra.mxu0 0
      %2027 = vmatprep.subr.bf16.mxu0 0
      %2028 = vmatpush2.bf16.msra.mxu0 0
      %2029 = vmatprep.subr.bf16.mxu0 0
      %2030 = vmatpush2.bf16.msra.mxu0 0
      %2031 = vmatprep.subr.bf16.mxu0 0
      %2032 = vmatpush2.bf16.msra.mxu0 0
      %2033 = vmatprep.subr.bf16.mxu0 0
      %2034 = vmatpush2.bf16.msra.mxu0 0
      %2035 = vmatprep.subr.bf16.mxu0 0
      %2036 = vmatpush2.bf16.msra.mxu0 0
      %2037 = vmatprep.subr.bf16.mxu0 0
      %2038 = vmatpush2.bf16.msra.mxu0 0
      %2039 = vmatprep.mubr.bf16.mxu0 0
      %2040 = vmatmul.mubr.bf16.gmra.mxu0 %v2002
      %v2041 = vpop.f32.mrf.mxu0
      %v2042 = vadd.f32 0.0, %v2041
      %v2043 = vpop.f32.mrf.mxu0
      %v2044 = vpop.f32.mrf.mxu0
      %v2045 = vpop.f32.mrf.mxu0
      %2046 = vdwg.mxu0
      %v2048 = vsel %vm1661, %v1908, 0
      %v2051 = vsel %vm1665, %v1656, 0
      %2053 = vmatprep.subr.bf16.mxu0 0
      %2054 = vmatpush1.bf16.msra.mxu0 0
      %2055 = vmatprep.subr.bf16.mxu0 0
      %2056 = vmatpush1.bf16.msra.mxu0 0
      %2057 = vmatprep.subr.bf16.mxu0 0
      %2058 = vmatpush1.bf16.msra.mxu0 0
      %2059 = vmatprep.subr.bf16.mxu0 0
      %2060 = vmatpush1.bf16.msra.mxu0 0
      %2061 = vmatprep.subr.bf16.mxu0 0
      %2062 = vmatpush1.bf16.msra.mxu0 0
      %2063 = vmatprep.subr.bf16.mxu0 0
      %2064 = vmatpush1.bf16.msra.mxu0 0
      %2065 = vmatprep.subr.bf16.mxu0 0
      %2066 = vmatpush1.bf16.msra.mxu0 0
      %2067 = vmatprep.subr.bf16.mxu0 0
      %2068 = vmatpush1.bf16.msra.mxu0 %v2051
      %2069 = vmatprep.subr.bf16.mxu0 0
      %2070 = vmatpush2.bf16.msra.mxu0 0
      %2071 = vmatprep.subr.bf16.mxu0 0
      %2072 = vmatpush2.bf16.msra.mxu0 0
      %2073 = vmatprep.subr.bf16.mxu0 0
      %2074 = vmatpush2.bf16.msra.mxu0 0
      %2075 = vmatprep.subr.bf16.mxu0 0
      %2076 = vmatpush2.bf16.msra.mxu0 0
      %2077 = vmatprep.subr.bf16.mxu0 0
      %2078 = vmatpush2.bf16.msra.mxu0 0
      %2079 = vmatprep.subr.bf16.mxu0 0
      %2080 = vmatpush2.bf16.msra.mxu0 0
      %2081 = vmatprep.subr.bf16.mxu0 0
      %2082 = vmatpush2.bf16.msra.mxu0 0
      %2083 = vmatprep.subr.bf16.mxu0 0
      %2084 = vmatpush2.bf16.msra.mxu0 0
      %2085 = vmatprep.mubr.bf16.mxu0 0
      %2086 = vmatmul.mubr.bf16.gmra.mxu0 %v2048
      %v2087 = vpop.f32.mrf.mxu0
      %v2088 = vadd.f32 0.0, %v2087
      %v2089 = vpop.f32.mrf.mxu0
      %v2090 = vpop.f32.mrf.mxu0
      %v2091 = vpop.f32.mrf.mxu0
      %2092 = vdwg.mxu0
      %2093 = vxpose.xlu0.b32.start [1/16] %v1950, 128
      %2094 = vxpose.xlu0.b32.cont [2/16] 0.0, 128
      %2095 = vxpose.xlu0.b32.cont [3/16] 0.0, 128
      %2096 = vxpose.xlu0.b32.cont [4/16] 0.0, 128
      %2097 = vxpose.xlu0.b32.cont [5/16] 0.0, 128
      %2098 = vxpose.xlu0.b32.cont [6/16] 0.0, 128
      %2099 = vxpose.xlu0.b32.cont [7/16] 0.0, 128
      %2100 = vxpose.xlu0.b32.cont [8/16] 0.0, 128
      %2101 = vxpose.xlu0.b32.cont [9/16] 0.0, 128
      %2102 = vxpose.xlu0.b32.cont [10/16] 0.0, 128
      %2103 = vxpose.xlu0.b32.cont [11/16] 0.0, 128
      %2104 = vxpose.xlu0.b32.cont [12/16] 0.0, 128
      %2105 = vxpose.xlu0.b32.cont [13/16] 0.0, 128
      %2106 = vxpose.xlu0.b32.cont [14/16] 0.0, 128
      %2107 = vxpose.xlu0.b32.cont [15/16] 0.0, 128
      %2108 = vxpose.xlu0.b32.end [16/16] 0.0, 128
      %v2109 = vpop.trf.xlu0
      %v2110 = vpop.trf.xlu0
      %v2111 = vpop.trf.xlu0
      %v2112 = vpop.trf.xlu0
      %v2113 = vpop.trf.xlu0
      %v2114 = vpop.trf.xlu0
      %v2115 = vpop.trf.xlu0
      %v2116 = vpop.trf.xlu0
      %v2117 = vpop.trf.xlu0
      %v2118 = vpop.trf.xlu0
      %v2119 = vpop.trf.xlu0
      %v2120 = vpop.trf.xlu0
      %v2121 = vpop.trf.xlu0
      %v2122 = vpop.trf.xlu0
      %v2123 = vpop.trf.xlu0
      %v2124 = vpop.trf.xlu0
      %2125 = vxpose.xlu0.b32.start [1/16] %v1996, 128
      %2126 = vxpose.xlu0.b32.cont [2/16] 0.0, 128
      %2127 = vxpose.xlu0.b32.cont [3/16] 0.0, 128
      %2128 = vxpose.xlu0.b32.cont [4/16] 0.0, 128
      %2129 = vxpose.xlu0.b32.cont [5/16] 0.0, 128
      %2130 = vxpose.xlu0.b32.cont [6/16] 0.0, 128
      %2131 = vxpose.xlu0.b32.cont [7/16] 0.0, 128
      %2132 = vxpose.xlu0.b32.cont [8/16] 0.0, 128
      %2133 = vxpose.xlu0.b32.cont [9/16] 0.0, 128
      %2134 = vxpose.xlu0.b32.cont [10/16] 0.0, 128
      %2135 = vxpose.xlu0.b32.cont [11/16] 0.0, 128
      %2136 = vxpose.xlu0.b32.cont [12/16] 0.0, 128
      %2137 = vxpose.xlu0.b32.cont [13/16] 0.0, 128
      %2138 = vxpose.xlu0.b32.cont [14/16] 0.0, 128
      %2139 = vxpose.xlu0.b32.cont [15/16] 0.0, 128
      %2140 = vxpose.xlu0.b32.end [16/16] 0.0, 128
      %v2141 = vpop.trf.xlu0
      %v2142 = vpop.trf.xlu0
      %v2143 = vpop.trf.xlu0
      %v2144 = vpop.trf.xlu0
      %v2145 = vpop.trf.xlu0
      %v2146 = vpop.trf.xlu0
      %v2147 = vpop.trf.xlu0
      %v2148 = vpop.trf.xlu0
      %v2149 = vpop.trf.xlu0
      %v2150 = vpop.trf.xlu0
      %v2151 = vpop.trf.xlu0
      %v2152 = vpop.trf.xlu0
      %v2153 = vpop.trf.xlu0
      %v2154 = vpop.trf.xlu0
      %v2155 = vpop.trf.xlu0
      %v2156 = vpop.trf.xlu0
      %2157 = vxpose.xlu0.b32.start [1/16] %v2042, 128
      %2158 = vxpose.xlu0.b32.cont [2/16] 0.0, 128
      %2159 = vxpose.xlu0.b32.cont [3/16] 0.0, 128
      %2160 = vxpose.xlu0.b32.cont [4/16] 0.0, 128
      %2161 = vxpose.xlu0.b32.cont [5/16] 0.0, 128
      %2162 = vxpose.xlu0.b32.cont [6/16] 0.0, 128
      %2163 = vxpose.xlu0.b32.cont [7/16] 0.0, 128
      %2164 = vxpose.xlu0.b32.cont [8/16] 0.0, 128
      %2165 = vxpose.xlu0.b32.cont [9/16] 0.0, 128
      %2166 = vxpose.xlu0.b32.cont [10/16] 0.0, 128
      %2167 = vxpose.xlu0.b32.cont [11/16] 0.0, 128
      %2168 = vxpose.xlu0.b32.cont [12/16] 0.0, 128
      %2169 = vxpose.xlu0.b32.cont [13/16] 0.0, 128
      %2170 = vxpose.xlu0.b32.cont [14/16] 0.0, 128
      %2171 = vxpose.xlu0.b32.cont [15/16] 0.0, 128
      %2172 = vxpose.xlu0.b32.end [16/16] 0.0, 128
      %v2173 = vpop.trf.xlu0
      %v2174 = vpop.trf.xlu0
      %v2175 = vpop.trf.xlu0
      %v2176 = vpop.trf.xlu0
      %v2177 = vpop.trf.xlu0
      %v2178 = vpop.trf.xlu0
      %v2179 = vpop.trf.xlu0
      %v2180 = vpop.trf.xlu0
      %v2181 = vpop.trf.xlu0
      %v2182 = vpop.trf.xlu0
      %v2183 = vpop.trf.xlu0
      %v2184 = vpop.trf.xlu0
      %v2185 = vpop.trf.xlu0
      %v2186 = vpop.trf.xlu0
      %v2187 = vpop.trf.xlu0
      %v2188 = vpop.trf.xlu0
      %2189 = vxpose.xlu0.b32.start [1/16] %v2088, 128
      %2190 = vxpose.xlu0.b32.cont [2/16] 0.0, 128
      %2191 = vxpose.xlu0.b32.cont [3/16] 0.0, 128
      %2192 = vxpose.xlu0.b32.cont [4/16] 0.0, 128
      %2193 = vxpose.xlu0.b32.cont [5/16] 0.0, 128
      %2194 = vxpose.xlu0.b32.cont [6/16] 0.0, 128
      %2195 = vxpose.xlu0.b32.cont [7/16] 0.0, 128
      %2196 = vxpose.xlu0.b32.cont [8/16] 0.0, 128
      %2197 = vxpose.xlu0.b32.cont [9/16] 0.0, 128
      %2198 = vxpose.xlu0.b32.cont [10/16] 0.0, 128
      %2199 = vxpose.xlu0.b32.cont [11/16] 0.0, 128
      %2200 = vxpose.xlu0.b32.cont [12/16] 0.0, 128
      %2201 = vxpose.xlu0.b32.cont [13/16] 0.0, 128
      %2202 = vxpose.xlu0.b32.cont [14/16] 0.0, 128
      %2203 = vxpose.xlu0.b32.cont [15/16] 0.0, 128
      %2204 = vxpose.xlu0.b32.end [16/16] 0.0, 128
      %v2205 = vpop.trf.xlu0
      %v2206 = vpop.trf.xlu0
      %v2207 = vpop.trf.xlu0
      %v2208 = vpop.trf.xlu0
      %v2209 = vpop.trf.xlu0
      %v2210 = vpop.trf.xlu0
      %v2211 = vpop.trf.xlu0
      %v2212 = vpop.trf.xlu0
      %v2213 = vpop.trf.xlu0
      %v2214 = vpop.trf.xlu0
      %v2215 = vpop.trf.xlu0
      %v2216 = vpop.trf.xlu0
      %v2217 = vpop.trf.xlu0
      %v2218 = vpop.trf.xlu0
      %v2219 = vpop.trf.xlu0
      %v2220 = vpop.trf.xlu0
      %2221 = vxpose.xlu0.b32.start [1/16] %v2109, 128
      %2222 = vxpose.xlu0.b32.cont [2/16] %v2141, 128
      %2223 = vxpose.xlu0.b32.cont [3/16] %v2173, 128
      %2224 = vxpose.xlu0.b32.cont [4/16] %v2205, 128
      %2225 = vxpose.xlu0.b32.cont [5/16] 0.0, 128
      %2226 = vxpose.xlu0.b32.cont [6/16] 0.0, 128
      %2227 = vxpose.xlu0.b32.cont [7/16] 0.0, 128
      %2228 = vxpose.xlu0.b32.cont [8/16] 0.0, 128
      %2229 = vxpose.xlu0.b32.cont [9/16] 0.0, 128
      %2230 = vxpose.xlu0.b32.cont [10/16] 0.0, 128
      %2231 = vxpose.xlu0.b32.cont [11/16] 0.0, 128
      %2232 = vxpose.xlu0.b32.cont [12/16] 0.0, 128
      %2233 = vxpose.xlu0.b32.cont [13/16] 0.0, 128
      %2234 = vxpose.xlu0.b32.cont [14/16] 0.0, 128
      %2235 = vxpose.xlu0.b32.cont [15/16] 0.0, 128
      %2236 = vxpose.xlu0.b32.end [16/16] 0.0, 128
      %v2237 = vpop.trf.xlu0
      %v2238 = vpop.trf.xlu0
      %v2239 = vpop.trf.xlu0
      %v2240 = vpop.trf.xlu0
      %v2241 = vpop.trf.xlu0
      %v2242 = vpop.trf.xlu0
      %v2243 = vpop.trf.xlu0
      %v2244 = vpop.trf.xlu0
      %v2245 = vpop.trf.xlu0
      %v2246 = vpop.trf.xlu0
      %v2247 = vpop.trf.xlu0
      %v2248 = vpop.trf.xlu0
      %v2249 = vpop.trf.xlu0
      %v2250 = vpop.trf.xlu0
      %v2251 = vpop.trf.xlu0
      %v2252 = vpop.trf.xlu0
      %v2253 = vpack.c.bf16 %v2237, %v2237
      %v2254 = vld [vmem:[%s1001] sm:$0xf]
      %v2255 = vld [vmem:[%s1001 + $0x4] sm:$0xf]
      %v2256 = vld [vmem:[%s1001 + $0x8] sm:$0xf]
      %v2257 = vld [vmem:[%s1001 + $0xc] sm:$0xf]
      %v2258 = vld [vmem:[%s1004] sm:$0x1]
      %v2260 = vlaneseq
      %v2261 = vshrl.u32 %v2260, 7
      %v2262 = vsub.s32 0, %v2261
      %v2263 = vrot.slane %v2258, %v2262
      %v2269 = vunpack.c.l.b16 %v2254
      %v2270 = vunpack.c.l.b16 %v2255
      %v2271 = vunpack.c.l.b16 %v2256
      %v2272 = vunpack.c.l.b16 %v2257
      %v2273 = vpack.c.b16 %v2270, %v2269
      %v2274 = vpack.c.b16 %v2272, %v2271
      %v2278 = vsel %vm1151, %v2253, 0
      %2280 = vmatprep.subr.bf16.mxu0 0
      %2281 = vmatpush1.bf16.msra.mxu0 0
      %2282 = vmatprep.subr.bf16.mxu0 0
      %2283 = vmatpush1.bf16.msra.mxu0 0
      %2284 = vmatprep.subr.bf16.mxu0 0
      %2285 = vmatpush1.bf16.msra.mxu0 0
      %2286 = vmatprep.subr.bf16.mxu0 0
      %2287 = vmatpush1.bf16.msra.mxu0 0
      %2288 = vmatprep.subr.bf16.mxu0 0
      %2289 = vmatpush1.bf16.msra.mxu0 0
      %2290 = vmatprep.subr.bf16.mxu0 0
      %2291 = vmatpush1.bf16.msra.mxu0 0
      %2292 = vmatprep.subr.bf16.mxu0 0
      %2293 = vmatpush1.bf16.msra.mxu0 %v2274
      %2294 = vmatprep.subr.bf16.mxu0 0
      %2295 = vmatpush1.bf16.msra.mxu0 %v2273
      %2296 = vmatprep.subr.bf16.mxu0 0
      %2297 = vmatpush2.bf16.msra.mxu0 0
      %2298 = vmatprep.subr.bf16.mxu0 0
      %2299 = vmatpush2.bf16.msra.mxu0 0
      %2300 = vmatprep.subr.bf16.mxu0 0
      %2301 = vmatpush2.bf16.msra.mxu0 0
      %2302 = vmatprep.subr.bf16.mxu0 0
      %2303 = vmatpush2.bf16.msra.mxu0 0
      %2304 = vmatprep.subr.bf16.mxu0 0
      %2305 = vmatpush2.bf16.msra.mxu0 0
      %2306 = vmatprep.subr.bf16.mxu0 0
      %2307 = vmatpush2.bf16.msra.mxu0 0
      %2308 = vmatprep.subr.bf16.mxu0 0
      %2309 = vmatpush2.bf16.msra.mxu0 0
      %2310 = vmatprep.subr.bf16.mxu0 0
      %2311 = vmatpush2.bf16.msra.mxu0 0
      %2312 = vmatprep.mubr.bf16.mxu0 0
      %2313 = vmatmul.mubr.bf16.gmra.mxu0 %v2278
      %v2314 = vpop.f32.mrf.mxu0
      %v2315 = vadd.f32 %v2263, %v2314
      %v2316 = vpop.f32.mrf.mxu0
      %v2317 = vpop.f32.mrf.mxu0
      %v2318 = vpop.f32.mrf.mxu0
      %2319 = vdwg.mxu0
      %v2320 = vadd.f32 %v2315, %v1075
      %v2321 = vld [vmem:[%s1007] sm:$0x1]
      %v2322 = vld [vmem:[%s1010] sm:$0x1]
      %v2323 = vsel %vm1151, %v2320, 0.0
      %2324 = vadd.xlane.f32.xlu0 %v2323
      %v2325 = vpop.xlane.xlu0 %2324
      %v2326 = vrcp.pop 32.0
      %v2327 = vmul.f32 %v2325, %v2326
      %v2328 = vsub.f32 %v2320, %v2327
      %v2329 = vmul.f32 %v2328, %v2328
      %v2330 = vsel %vm1151, %v2329, 0.0
      %2331 = vadd.xlane.f32.xlu0 %v2330
      %v2332 = vpop.xlane.xlu0 %2331
      %v2333 = vmul.f32 %v2332, %v2326
      %v2334 = vadd.f32 %v2333, 1e-12
      %v2335 = vrsqrt.pop %v2334
      %v2336 = vmul.f32 %v2328, %v2335
      %v2338 = vlaneseq
      %v2339 = vshrl.u32 %v2338, 7
      %v2340 = vsub.s32 0, %v2339
      %v2341 = vrot.slane %v2321, %v2340
      %v2343 = vmul.f32 %v2336, %v2341
      %v2345 = vlaneseq
      %v2346 = vshrl.u32 %v2345, 7
      %v2347 = vsub.s32 0, %v2346
      %v2348 = vrot.slane %v2322, %v2347
      %v2350 = vadd.f32 %v2343, %v2348
      %v2351 = vpack.c.bf16 %v2350, %v2350
      %v2352 = vld [vmem:[%s1015] sm:$0xf]
      %v2353 = vld [vmem:[%s1015 + $0x4] sm:$0xf]
      %v2354 = vld [vmem:[%s1015 + $0x8] sm:$0xf]
      %v2355 = vld [vmem:[%s1015 + $0xc] sm:$0xf]
      %v2356 = vld [vmem:[%s1018] sm:$0x1]
      %v2358 = vlaneseq
      %v2359 = vshrl.u32 %v2358, 7
      %v2360 = vsub.s32 0, %v2359
      %v2361 = vrot.slane %v2356, %v2360
      %v2367 = vunpack.c.l.b16 %v2352
      %v2368 = vunpack.c.l.b16 %v2353
      %v2369 = vunpack.c.l.b16 %v2354
      %v2370 = vunpack.c.l.b16 %v2355
      %v2371 = vpack.c.b16 %v2368, %v2367
      %v2372 = vpack.c.b16 %v2370, %v2369
      %v2376 = vsel %vm1151, %v2351, 0
      %2378 = vmatprep.subr.bf16.mxu0 0
      %2379 = vmatpush1.bf16.msra.mxu0 0
      %2380 = vmatprep.subr.bf16.mxu0 0
      %2381 = vmatpush1.bf16.msra.mxu0 0
      %2382 = vmatprep.subr.bf16.mxu0 0
      %2383 = vmatpush1.bf16.msra.mxu0 0
      %2384 = vmatprep.subr.bf16.mxu0 0
      %2385 = vmatpush1.bf16.msra.mxu0 0
      %2386 = vmatprep.subr.bf16.mxu0 0
      %2387 = vmatpush1.bf16.msra.mxu0 0
      %2388 = vmatprep.subr.bf16.mxu0 0
      %2389 = vmatpush1.bf16.msra.mxu0 0
      %2390 = vmatprep.subr.bf16.mxu0 0
      %2391 = vmatpush1.bf16.msra.mxu0 %v2372
      %2392 = vmatprep.subr.bf16.mxu0 0
      %2393 = vmatpush1.bf16.msra.mxu0 %v2371
      %2394 = vmatprep.subr.bf16.mxu0 0
      %2395 = vmatpush2.bf16.msra.mxu0 0
      %2396 = vmatprep.subr.bf16.mxu0 0
      %2397 = vmatpush2.bf16.msra.mxu0 0
      %2398 = vmatprep.subr.bf16.mxu0 0
      %2399 = vmatpush2.bf16.msra.mxu0 0
      %2400 = vmatprep.subr.bf16.mxu0 0
      %2401 = vmatpush2.bf16.msra.mxu0 0
      %2402 = vmatprep.subr.bf16.mxu0 0
      %2403 = vmatpush2.bf16.msra.mxu0 0
      %2404 = vmatprep.subr.bf16.mxu0 0
      %2405 = vmatpush2.bf16.msra.mxu0 0
      %2406 = vmatprep.subr.bf16.mxu0 0
      %2407 = vmatpush2.bf16.msra.mxu0 0
      %2408 = vmatprep.subr.bf16.mxu0 0
      %2409 = vmatpush2.bf16.msra.mxu0 0
      %2410 = vmatprep.mubr.bf16.mxu0 0
      %2411 = vmatmul.mubr.bf16.gmra.mxu0 %v2376
      %v2412 = vpop.f32.mrf.mxu0
      %v2413 = vadd.f32 %v2361, %v2412
      %v2414 = vpop.f32.mrf.mxu0
      %v2415 = vpop.f32.mrf.mxu0
      %v2416 = vpop.f32.mrf.mxu0
      %2417 = vdwg.mxu0
      %v2418 = vmul.f32 %v2413, 0.5
      %v2419 = vmul.f32 %v2413, 0.044715
      %v2420 = vmul.f32 %v2419, %v2413
      %v2421 = vmul.f32 %v2420, %v2413
      %v2422 = vadd.f32 %v2413, %v2421
      %v2423 = vmul.f32 %v2422, 0.7978846
      %v2424 = vtanh.pop %v2423
      %v2425 = vadd.f32 %v2424, 1.0
      %v2426 = vmul.f32 %v2418, %v2425
      %v2427 = vpack.c.bf16 %v2426, %v2426
      %v2428 = vld [vmem:[%s1023] sm:$0xf]
      %v2429 = vld [vmem:[%s1023 + $0x4] sm:$0xf]
      %v2430 = vld [vmem:[%s1023 + $0x8] sm:$0xf]
      %v2431 = vld [vmem:[%s1023 + $0xc] sm:$0xf]
      %v2432 = vld [vmem:[%s1023 + $0x10] sm:$0xf]
      %v2433 = vld [vmem:[%s1023 + $0x14] sm:$0xf]
      %v2434 = vld [vmem:[%s1023 + $0x18] sm:$0xf]
      %v2435 = vld [vmem:[%s1023 + $0x1c] sm:$0xf]
      %v2436 = vld [vmem:[%s1026] sm:$0x1]
      %v2438 = vlaneseq
      %v2439 = vshrl.u32 %v2438, 7
      %v2440 = vsub.s32 0, %v2439
      %v2441 = vrot.slane %v2436, %v2440
      %v2451 = vunpack.c.l.b16 %v2428
      %v2452 = vunpack.c.l.b16 %v2429
      %v2453 = vunpack.c.l.b16 %v2430
      %v2454 = vunpack.c.l.b16 %v2431
      %v2455 = vunpack.c.l.b16 %v2432
      %v2456 = vunpack.c.l.b16 %v2433
      %v2457 = vunpack.c.l.b16 %v2434
      %v2458 = vunpack.c.l.b16 %v2435
      %v2459 = vpack.c.b16 %v2452, %v2451
      %v2460 = vpack.c.b16 %v2454, %v2453
      %v2461 = vpack.c.b16 %v2456, %v2455
      %v2462 = vpack.c.b16 %v2458, %v2457
      %vm2467 = vcmask 523264
      %v2469 = vsel %vm2467, %v2427, 0
      %2471 = vmatprep.subr.bf16.mxu0 0
      %2472 = vmatpush1.bf16.msra.mxu0 0
      %2473 = vmatprep.subr.bf16.mxu0 0
      %2474 = vmatpush1.bf16.msra.mxu0 0
      %2475 = vmatprep.subr.bf16.mxu0 0
      %2476 = vmatpush1.bf16.msra.mxu0 0
      %2477 = vmatprep.subr.bf16.mxu0 0
      %2478 = vmatpush1.bf16.msra.mxu0 0
      %2479 = vmatprep.subr.bf16.mxu0 0
      %2480 = vmatpush1.bf16.msra.mxu0 %v2462
      %2481 = vmatprep.subr.bf16.mxu0 0
      %2482 = vmatpush1.bf16.msra.mxu0 %v2461
      %2483 = vmatprep.subr.bf16.mxu0 0
      %2484 = vmatpush1.bf16.msra.mxu0 %v2460
      %2485 = vmatprep.subr.bf16.mxu0 0
      %2486 = vmatpush1.bf16.msra.mxu0 %v2459
      %2487 = vmatprep.subr.bf16.mxu0 0
      %2488 = vmatpush2.bf16.msra.mxu0 0
      %2489 = vmatprep.subr.bf16.mxu0 0
      %2490 = vmatpush2.bf16.msra.mxu0 0
      %2491 = vmatprep.subr.bf16.mxu0 0
      %2492 = vmatpush2.bf16.msra.mxu0 0
      %2493 = vmatprep.subr.bf16.mxu0 0
      %2494 = vmatpush2.bf16.msra.mxu0 0
      %2495 = vmatprep.subr.bf16.mxu0 0
      %2496 = vmatpush2.bf16.msra.mxu0 0
      %2497 = vmatprep.subr.bf16.mxu0 0
      %2498 = vmatpush2.bf16.msra.mxu0 0
      %2499 = vmatprep.subr.bf16.mxu0 0
      %2500 = vmatpush2.bf16.msra.mxu0 0
      %2501 = vmatprep.subr.bf16.mxu0 0
      %2502 = vmatpush2.bf16.msra.mxu0 0
      %2503 = vmatprep.mubr.bf16.mxu0 0
      %2504 = vmatmul.mubr.bf16.gmra.mxu0 %v2469
      %v2505 = vpop.f32.mrf.mxu0
      %v2506 = vadd.f32 %v2441, %v2505
      %v2507 = vpop.f32.mrf.mxu0
      %v2508 = vpop.f32.mrf.mxu0
      %v2509 = vpop.f32.mrf.mxu0
      %2510 = vdwg.mxu0
      %v2511 = vadd.f32 %v2506, %v2350
      %v2512 = vld [vmem:[%s1029] sm:$0x1]
      %v2513 = vld [vmem:[%s1032] sm:$0x1]
      %v2514 = vsel %vm1151, %v2511, 0.0
      %2515 = vadd.xlane.f32.xlu0 %v2514
      %v2516 = vpop.xlane.xlu0 %2515
      %v2517 = vmul.f32 %v2516, %v2326
      %v2518 = vsub.f32 %v2511, %v2517
      %v2519 = vmul.f32 %v2518, %v2518
      %v2520 = vsel %vm1151, %v2519, 0.0
      %2521 = vadd.xlane.f32.xlu0 %v2520
      %v2522 = vpop.xlane.xlu0 %2521
      %v2523 = vmul.f32 %v2522, %v2326
      %v2524 = vadd.f32 %v2523, 1e-12
      %v2525 = vrsqrt.pop %v2524
      %v2526 = vmul.f32 %v2518, %v2525
      %v2528 = vlaneseq
      %v2529 = vshrl.u32 %v2528, 7
      %v2530 = vsub.s32 0, %v2529
      %v2531 = vrot.slane %v2512, %v2530
      %v2533 = vmul.f32 %v2526, %v2531
      %v2535 = vlaneseq
      %v2536 = vshrl.u32 %v2535, 7
      %v2537 = vsub.s32 0, %v2536
      %v2538 = vrot.slane %v2513, %v2537
      %v2540 = vadd.f32 %v2533, %v2538
      %2541 = vst.msk [vmem:[#allocation2] sm:$0xff] %vm1151, %v2540
      %p2542 = scmp.eq.s32.totalorder %s40, 1
      // Predicated region
      $region121: #{bert_classifier_forward.1} parent=115 // pred_check
        %p2543 = pneg %p2542
      $region122: #{bert_classifier_forward.1} parent=115 // pred_check_branch
        %2545 = sbr.rel (%p2543) target = $region124
      $region123: #{bert_classifier_forward.1} parent=115 // pred_region
        %v2546 = vpack.c.bf16 %v2540, %v2540
        %v2547 = vld [vmem:[%s20] sm:$0xf]
        %v2548 = vld [vmem:[%s20 + $0x4] sm:$0xf]
        %v2549 = vld [vmem:[%s20 + $0x8] sm:$0xf]
        %v2550 = vld [vmem:[%s20 + $0xc] sm:$0xf]
        %v2551 = vld [vmem:[%s21] sm:$0x1]
        %v2556 = vunpack.c.l.b16 %v2547
        %v2557 = vunpack.c.l.b16 %v2548
        %v2558 = vunpack.c.l.b16 %v2549
        %v2559 = vunpack.c.l.b16 %v2550
        %v2560 = vpack.c.b16 %v2557, %v2556
        %v2561 = vpack.c.b16 %v2559, %v2558
        %v2565 = vsel %vm1151, %v2546, 0
        %2567 = vmatprep.subr.bf16.mxu0 0
        %2568 = vmatpush1.bf16.msra.mxu0 0
        %2569 = vmatprep.subr.bf16.mxu0 0
        %2570 = vmatpush1.bf16.msra.mxu0 0
        %2571 = vmatprep.subr.bf16.mxu0 0
        %2572 = vmatpush1.bf16.msra.mxu0 0
        %2573 = vmatprep.subr.bf16.mxu0 0
        %2574 = vmatpush1.bf16.msra.mxu0 0
        %2575 = vmatprep.subr.bf16.mxu0 0
        %2576 = vmatpush1.bf16.msra.mxu0 0
        %2577 = vmatprep.subr.bf16.mxu0 0
        %2578 = vmatpush1.bf16.msra.mxu0 0
        %2579 = vmatprep.subr.bf16.mxu0 0
        %2580 = vmatpush1.bf16.msra.mxu0 %v2561
        %2581 = vmatprep.subr.bf16.mxu0 0
        %2582 = vmatpush1.bf16.msra.mxu0 %v2560
        %2583 = vmatprep.subr.bf16.mxu0 0
        %2584 = vmatpush2.bf16.msra.mxu0 0
        %2585 = vmatprep.subr.bf16.mxu0 0
        %2586 = vmatpush2.bf16.msra.mxu0 0
        %2587 = vmatprep.subr.bf16.mxu0 0
        %2588 = vmatpush2.bf16.msra.mxu0 0
        %2589 = vmatprep.subr.bf16.mxu0 0
        %2590 = vmatpush2.bf16.msra.mxu0 0
        %2591 = vmatprep.subr.bf16.mxu0 0
        %2592 = vmatpush2.bf16.msra.mxu0 0
        %2593 = vmatprep.subr.bf16.mxu0 0
        %2594 = vmatpush2.bf16.msra.mxu0 0
        %2595 = vmatprep.subr.bf16.mxu0 0
        %2596 = vmatpush2.bf16.msra.mxu0 0
        %2597 = vmatprep.subr.bf16.mxu0 0
        %2598 = vmatpush2.bf16.msra.mxu0 0
        %2599 = vmatprep.mubr.bf16.mxu0 0
        %2600 = vmatmul.mubr.bf16.gmra.mxu0 %v2565
        %v2601 = vpop.f32.mrf.mxu0
        %v2602 = vadd.f32 %v2551, %v2601
        %v2603 = vpop.f32.mrf.mxu0
        %v2604 = vpop.f32.mrf.mxu0
        %v2605 = vpop.f32.mrf.mxu0
        %2606 = vdwg.mxu0
        %v2607 = vtanh.pop %v2602
        %v2608 = vpack.c.bf16 %v2607, %v2607
        %v2609 = vld [vmem:[%s22] sm:$0xf]
        %v2610 = vld [vmem:[%s22 + $0x4] sm:$0xf]
        %v2611 = vld [vmem:[%s22 + $0x8] sm:$0xf]
        %v2612 = vld [vmem:[%s22 + $0xc] sm:$0xf]
        %v2613 = vld [vmem:[%s23] sm:$0x1]
        %v2618 = vunpack.c.l.b16 %v2609
        %v2619 = vunpack.c.l.b16 %v2610
        %v2620 = vunpack.c.l.b16 %v2611
        %v2621 = vunpack.c.l.b16 %v2612
        %v2622 = vpack.c.b16 %v2619, %v2618
        %v2623 = vpack.c.b16 %v2621, %v2620
        %v2627 = vsel %vm1151, %v2608, 0
        %2629 = vmatprep.subr.bf16.mxu0 0
        %2630 = vmatpush1.bf16.msra.mxu0 0
        %2631 = vmatprep.subr.bf16.mxu0 0
        %2632 = vmatpush1.bf16.msra.mxu0 0
        %2633 = vmatprep.subr.bf16.mxu0 0
        %2634 = vmatpush1.bf16.msra.mxu0 0
        %2635 = vmatprep.subr.bf16.mxu0 0
        %2636 = vmatpush1.bf16.msra.mxu0 0
        %2637 = vmatprep.subr.bf16.mxu0 0
        %2638 = vmatpush1.bf16.msra.mxu0 0
        %2639 = vmatprep.subr.bf16.mxu0 0
        %2640 = vmatpush1.bf16.msra.mxu0 0
        %2641 = vmatprep.subr.bf16.mxu0 0
        %2642 = vmatpush1.bf16.msra.mxu0 %v2623
        %2643 = vmatprep.subr.bf16.mxu0 0
        %2644 = vmatpush1.bf16.msra.mxu0 %v2622
        %2645 = vmatprep.subr.bf16.mxu0 0
        %2646 = vmatpush2.bf16.msra.mxu0 0
        %2647 = vmatprep.subr.bf16.mxu0 0
        %2648 = vmatpush2.bf16.msra.mxu0 0
        %2649 = vmatprep.subr.bf16.mxu0 0
        %2650 = vmatpush2.bf16.msra.mxu0 0
        %2651 = vmatprep.subr.bf16.mxu0 0
        %2652 = vmatpush2.bf16.msra.mxu0 0
        %2653 = vmatprep.subr.bf16.mxu0 0
        %2654 = vmatpush2.bf16.msra.mxu0 0
        %2655 = vmatprep.subr.bf16.mxu0 0
        %2656 = vmatpush2.bf16.msra.mxu0 0
        %2657 = vmatprep.subr.bf16.mxu0 0
        %2658 = vmatpush2.bf16.msra.mxu0 0
        %2659 = vmatprep.subr.bf16.mxu0 0
        %2660 = vmatpush2.bf16.msra.mxu0 0
        %2661 = vmatprep.mubr.bf16.mxu0 0
        %2662 = vmatmul.mubr.bf16.gmra.mxu0 %v2627
        %v2663 = vpop.f32.mrf.mxu0
        %v2664 = vadd.f32 %v2613, %v2663
        %v2665 = vpop.f32.mrf.mxu0
        %v2666 = vpop.f32.mrf.mxu0
        %v2667 = vpop.f32.mrf.mxu0
        %2668 = vdwg.mxu0
        %v2669 = vlaneseq
        %v2670 = vshrl.u32 %v2669, 7
        %v2671 = vsub.s32 0, %v2670
        %v2672 = vrot.slane %v2664, %v2671
        %2673 = vst [vmem:[%s1036] sm:$0xff] %v2672
      $region124: #{bert_classifier_forward.1} parent=115 // pred_fallthru
        _
      %p2674 = scmp.lt.s32.totalorder %s39, 1
      %s2675 = scalar_select %p2674, %s39, 1
      %s2676 = smul.addr %s2675, 8
      %s2677 = scalar_lea.vmem %s24, %s2676
      // Predicated region
      $region125: #{bert_classifier_forward.1} parent=115 // pred_check
        %p2678 = pneg %p659
      $region126: #{bert_classifier_forward.1} parent=115 // pred_check_branch
        %2680 = sbr.rel (%p2678) target = $region128
      $region127: #{bert_classifier_forward.1} parent=115 // pred_region
        _
      $region128: #{bert_classifier_forward.1} parent=115 // pred_fallthru
        _
    $region116: #{bert_classifier_forward.1} parent=5 // pred_fallthru
      _
    %p2681 = scmp.le.s32.totalorder 2, %s30
    // Predicated region
    $region129: #{bert_classifier_forward.1} parent=5 // pred_check
      %p2682 = pneg %p2681
    $region130: #{bert_classifier_forward.1} parent=5 // pred_check_branch
      %2684 = sbr.rel (%p2682) target = $region132
    $region131: #{bert_classifier_forward.1} parent=5 // pred_region
      %s2685 = ssub.s32 %s30, 2
      // Predicated region
      $region133: #{bert_classifier_forward.1} parent=131 // pred_check
        %p2686 = pneg %p665
      $region134: #{bert_classifier_forward.1} parent=131 // pred_check_branch
        %2688 = sbr.rel (%p2686) target = $region136
      $region135: #{bert_classifier_forward.1} parent=131 // pred_region
        %p2689 = scmp.lt.s32.totalorder %s41, 1
        %s2690 = scalar_select %p2689, %s41, 1
        %s2691 = smul.addr %s2690, 8
        %s2692 = scalar_lea.vmem %s24, %s2691
      $region136: #{bert_classifier_forward.1} parent=131 // pred_fallthru
        _
    $region132: #{bert_classifier_forward.1} parent=5 // pred_fallthru
      _
  $region6: #{bert_classifier_forward.1} parent=0 // loop_footer
    %s34 = sadd.s32 1, %s30
  $region7: #{bert_classifier_forward.1} parent=0 // loop_footer_branch
    %29 = sbr.rel target = $region3
  $region8: #{bert_classifier_forward.1} parent=0 // loop_exit
    _

</llo_original>
